<compile_context>
chip_gen: v7x
topology: tpu7x:2x2x1
jax: 0.10.0
libtpu: 0.0.40
codegen_flags: <defaults>
</compile_context>

<pallas_src>
import math

import jax
import jax.numpy as jnp
from jax import lax
from jax.experimental import pallas as pl
from jax.experimental.pallas import tpu as pltpu


# ------------------------------ fused kernel ----------------------------------
def _build_kernel(T, B, HP, FP, XP):
    """T = encoder seq_len, B = batch (also the decoder's step count),
    HP = padded per-gate / hidden lane width, FP = padded output feature lanes,
    XP = padded input-feature rows of the first weight block."""
    G = 4 * HP
    # Row offsets of each weight block inside the packed bf16 buffer
    # (must match the concatenation order in prepare_params).
    R1I = 0                 # enc layer-1  W_ih           (XP,  G)
    R1H = R1I + XP          # enc layer-1  W_hh           (HP,  G)
    R2S = R1H + HP          # enc layer-2  [W_ih; W_hh]   (2HP, G)
    R3I = R2S + 2 * HP      # dec layer-1  W_ih           (HP,  G)
    R3H = R3I + HP          # dec layer-1  W_hh           (HP,  G)
    R4S = R3H + HP          # dec layer-2  [W_ih; W_hh]   (2HP, G)
    RLN = R4S + 2 * HP      # output linear W^T           (HP,  G) [cols 0:FP used]

    bf16 = jnp.bfloat16
    f32 = jnp.float32

    def lstm_gates(pre, c):
        """pre: (rows, 4*HP) f32 pre-activations, gate order i|f|g|o (128-lane
        aligned slices). Returns (h_new, c_new) in f32."""
        i = jax.nn.sigmoid(pre[:, 0 * HP:1 * HP])
        f = jax.nn.sigmoid(pre[:, 1 * HP:2 * HP])
        g = jnp.tanh(pre[:, 2 * HP:3 * HP])
        o = jax.nn.sigmoid(pre[:, 3 * HP:4 * HP])
        c = f * c + i * g
        return o * jnp.tanh(c), c

    def kernel(x_ref, w_ref, b_ref, out_ref):
        # Hoisted, tile-aligned weight-block loads (one slice each, bf16).
        w1i = w_ref[R1I:R1I + XP, :]
        w1h = w_ref[R1H:R1H + HP, :]
        w2s = w_ref[R2S:R2S + 2 * HP, :]
        w3i = w_ref[R3I:R3I + HP, :]
        w3h = w_ref[R3H:R3H + HP, :]
        w4s = w_ref[R4S:R4S + 2 * HP, :]
        wln = w_ref[RLN:RLN + HP, 0:FP]
        b1 = b_ref[0:1, :]
        b2 = b_ref[8:9, :]
        b3 = b_ref[16:17, :]
        b4 = b_ref[24:25, :]
        bln = b_ref[32:33, 0:FP]

        # ---------------- encoder (two stacked LSTMs, interleaved) ----------------
        # Hoisted input projection of layer 1 for all T steps (one MXU call).
        gx1 = jnp.dot(x_ref[...], w1i, preferred_element_type=f32) + b1   # (T*B, G)

        zB = jnp.zeros((B, HP), f32)
        h1, c1, h2, c2 = zB, zB, zB, zB

        def enc2_step(h1_in, h2_in, c2_in):
            # Layer-2 step: input projection + recurrence fused into one matmul.
            zcat = jnp.concatenate([h1_in, h2_in], axis=1).astype(bf16)   # (B, 2*HP)
            pre = jnp.dot(zcat, w2s, preferred_element_type=f32) + b2
            return lstm_gates(pre, c2_in)

        for t in range(T):        # fully unrolled wavefront (T static & tiny)
            h1_prev = h1
            # Layer-1 step t (depends on h1_{t-1}).
            pre1 = gx1[t * B:(t + 1) * B, :] + jnp.dot(
                h1_prev.astype(bf16), w1h, preferred_element_type=f32)
            h1, c1 = lstm_gates(pre1, c1)
            # Layer-2 step t-1 (depends on h1_{t-1}, h2_{t-2}) -- independent of the
            # layer-1 step above, so the scheduler can overlap the two chains.
            if t >= 1:
                h2, c2 = enc2_step(h1_prev, h2, c2)
        h2, c2 = enc2_step(h1, h2, c2)        # layer-2 final step T-1
        h_emb = h2                             # (B, HP); lanes >= embedding_dim are 0

        # ----------- decoder (batch_first=False quirk) + output linear -------------
        # The PyTorch decoder scans over the *batch* axis with "batch"=seq_len and all
        # seq_len rows identical, so it runs here with batch=1 for B steps; the
        # wrapper broadcasts the result over seq_len (exact).
        gx3 = jnp.dot(h_emb.astype(bf16), w3i, preferred_element_type=f32) + b3  # (B, G)

        z1 = jnp.zeros((1, HP), f32)
        h3, c3, h4, c4 = z1, z1, z1, z1

        def dec2_step(h3_in, h4_in, c4_in):
            zcat = jnp.concatenate([h3_in, h4_in], axis=1).astype(bf16)   # (1, 2*HP)
            pre = jnp.dot(zcat, w4s, preferred_element_type=f32) + b4
            return lstm_gates(pre, c4_in)

        def emit_row(row, h4_row):
            out_ref[row:row + 1, :] = (
                jnp.dot(h4_row.astype(bf16), wln, preferred_element_type=f32) + bln)

        for s in range(B):        # decoder wavefront over its B "time" steps
            h3_prev = h3
            pre3 = gx3[s:s + 1, :] + jnp.dot(
                h3_prev.astype(bf16), w3h, preferred_element_type=f32)
            h3, c3 = lstm_gates(pre3, c3)
            if s >= 1:
                h4, c4 = dec2_step(h3_prev, h4, c4)
                emit_row(s - 1, h4)
        h4, c4 = dec2_step(h3, h4, c4)
        emit_row(B - 1, h4)

    return kernel


# --------------------------- forward-pass wrapper ------------------------------
def make_forward(seq_len, n_features, HP, FP, XP):
    @jax.jit
    def forward(wbuf, bbuf, x):
        x = x.reshape(-1, seq_len, n_features).astype(jnp.float32)
        B = x.shape[0]
        # time-major, flattened: row index = t*B + b; pad features to XP, cast bf16.
        x_tm = jnp.transpose(x, (1, 0, 2)).reshape(seq_len * B, n_features)
        x_pad = jnp.pad(x_tm, ((0, 0), (0, XP - n_features))).astype(jnp.bfloat16)

        vmem = pl.BlockSpec(memory_space=pltpu.MemorySpace.VMEM)
        out_pad = pl.pallas_call(
            _build_kernel(seq_len, B, HP, FP, XP),
            out_shape=jax.ShapeDtypeStruct((B, FP), jnp.float32),
            in_specs=[vmem, vmem, vmem],
            out_specs=vmem,
        )(x_pad, wbuf, bbuf)

        out = out_pad[:, :n_features]                           # (B, F)
        # The PyTorch model's output is exactly constant along seq_len.
        return jnp.broadcast_to(out[:, None, :], (B, seq_len, n_features))

    return forward


# --------------------------- one-time param packing ----------------------------
def _round_up(n, m):
    return ((n + m - 1) // m) * m


def _gate_pack(w_t, hp):
    """(rows, 4*Hg) -> (rows, 4*hp); gate k occupies lanes [k*hp, k*hp+Hg),
    zeros elsewhere (gate order i, f, g, o preserved)."""
    gs = jnp.split(w_t, 4, axis=1)
    return jnp.concatenate(
        [jnp.pad(g, ((0, 0), (0, hp - g.shape[1]))) for g in gs], axis=1)


def _pad_rows(w, rows):
    return jnp.pad(w, ((0, rows - w.shape[0]), (0, 0)))


def _bias_pack(p, hp):
    b = jnp.asarray(p["b_ih"], jnp.float32) + jnp.asarray(p["b_hh"], jnp.float32)
    gs = jnp.split(b, 4)
    return jnp.concatenate(
        [jnp.pad(g, (0, hp - g.shape[0])) for g in gs]).reshape(1, 4 * hp)


def prepare_params(params, n_features, embedding_dim, hidden_dim):
    """One-time packing: transpose, pre-sum biases, pad each gate block to 128 lanes,
    stack layer-2/4 [W_ih; W_hh], and concatenate everything into ONE contiguous bf16
    weight buffer + ONE f32 bias buffer (2 parameter DMAs instead of 15)."""
    HP = _round_up(max(hidden_dim, embedding_dim), 128)   # per-gate / hidden lane width
    FP = _round_up(n_features, 128)                       # output lane width
    XP = _round_up(n_features, 16)                        # bf16 sublane tile for W1_ih
    G = 4 * HP

    def wT(a):
        return jnp.asarray(a, jnp.float32).T

    p1, p2 = params["enc_hidden"], params["enc_embedding"]
    p3, p4 = params["dec_embedding"], params["dec_hidden"]

    w1i = _pad_rows(_gate_pack(wT(p1["w_ih"]), HP), XP)
    w1h = _pad_rows(_gate_pack(wT(p1["w_hh"]), HP), HP)
    w2s = jnp.concatenate([_pad_rows(_gate_pack(wT(p2["w_ih"]), HP), HP),
                           _pad_rows(_gate_pack(wT(p2["w_hh"]), HP), HP)], axis=0)
    w3i = _pad_rows(_gate_pack(wT(p3["w_ih"]), HP), HP)
    w3h = _pad_rows(_gate_pack(wT(p3["w_hh"]), HP), HP)
    w4s = jnp.concatenate([_pad_rows(_gate_pack(wT(p4["w_ih"]), HP), HP),
                           _pad_rows(_gate_pack(wT(p4["w_hh"]), HP), HP)], axis=0)
    wlin = jnp.pad(wT(params["lin_w"]),
                   ((0, HP - hidden_dim), (0, G - n_features)))

    wbuf = jnp.concatenate([w1i, w1h, w2s, w3i, w3h, w4s, wlin],
                           axis=0).astype(jnp.bfloat16)          # (XP + 8*HP, G)

    bbuf = jnp.zeros((40, G), jnp.float32)                       # 5 slots x 8 rows
    bbuf = bbuf.at[0:1].set(_bias_pack(p1, HP))
    bbuf = bbuf.at[8:9].set(_bias_pack(p2, HP))
    bbuf = bbuf.at[16:17].set(_bias_pack(p3, HP))
    bbuf = bbuf.at[24:25].set(_bias_pack(p4, HP))
    bbuf = bbuf.at[32:33, :FP].set(
        jnp.pad(jnp.asarray(params["lin_b"], jnp.float32),
                (0, FP - n_features)).reshape(1, FP))
    return wbuf, bbuf, dict(HP=HP, FP=FP, XP=XP)


# ------------------------------- param init ------------------------------------
def init_lstm_params(key, input_dim, hidden_dim):
    k = 1.0 / math.sqrt(hidden_dim)
    ks = jax.random.split(key, 4)
    return dict(
        w_ih=jax.random.uniform(ks[0], (4 * hidden_dim, input_dim), jnp.float32, -k, k),
        w_hh=jax.random.uniform(ks[1], (4 * hidden_dim, hidden_dim), jnp.float32, -k, k),
        b_ih=jax.random.uniform(ks[2], (4 * hidden_dim,), jnp.float32, -k, k),
        b_hh=jax.random.uniform(ks[3], (4 * hidden_dim,), jnp.float32, -k, k),
    )


def init_params(key, seq_len, n_features, embedding_dim, hidden_dim):
    ks = jax.random.split(key, 6)
    klin = 1.0 / math.sqrt(hidden_dim)
    return dict(
        enc_hidden=init_lstm_params(ks[0], n_features, hidden_dim),
        enc_embedding=init_lstm_params(ks[1], hidden_dim, embedding_dim),
        dec_embedding=init_lstm_params(ks[2], embedding_dim, hidden_dim),
        dec_hidden=init_lstm_params(ks[3], hidden_dim, hidden_dim),
        lin_w=jax.random.uniform(ks[4], (n_features, hidden_dim), jnp.float32, -klin, klin),
        lin_b=jax.random.uniform(ks[5], (n_features,), jnp.float32, -klin, klin),
    )


# --------------------------- pure-JAX references --------------------------------
def _lstm_ref(x_tm, p, cast=lambda a: a):
    """x_tm: (T, N, D) time-major. Returns (ys (T, N, H), h_n (N, H))."""
    w_ihT = cast(jnp.asarray(p["w_ih"], jnp.float32).T)   # (D, 4H)
    w_hhT = cast(jnp.asarray(p["w_hh"], jnp.float32).T)   # (H, 4H)
    b = (p["b_ih"] + p["b_hh"]).astype(jnp.float32)
    H, N = p["w_hh"].shape[1], x_tm.shape[1]

    def cell(carry, x_t):
        h, c = carry
        gates = (jnp.dot(cast(x_t), w_ihT, precision=lax.Precision.HIGHEST,
                         preferred_element_type=jnp.float32)
                 + jnp.dot(cast(h), w_hhT, precision=lax.Precision.HIGHEST,
                           preferred_element_type=jnp.float32) + b)
        i, f, g, o = jnp.split(gates, 4, axis=-1)
        c = jax.nn.sigmoid(f) * c + jax.nn.sigmoid(i) * jnp.tanh(g)
        h = jax.nn.sigmoid(o) * jnp.tanh(c)
        return (h, c), h

    (h, _), ys = lax.scan(cell, (jnp.zeros((N, H), jnp.float32),
                                 jnp.zeros((N, H), jnp.float32)), x_tm)
    return ys, h


def reference_forward(params, x, seq_len, n_features, cast=lambda a: a):
    x = x.reshape(-1, seq_len, n_features).astype(jnp.float32)
    B = x.shape[0]
    y1, _ = _lstm_ref(jnp.transpose(x, (1, 0, 2)), params["enc_hidden"], cast)
    _, h_emb = _lstm_ref(y1, params["enc_embedding"], cast)
    E = h_emb.shape[-1]
    z = jnp.broadcast_to(h_emb[:, None, :], (B, seq_len, E))      # (B, S, E)
    y2, _ = _lstm_ref(z, params["dec_embedding"], cast)           # scans the B axis
    y3, _ = _lstm_ref(y2, params["dec_hidden"], cast)
    lw = jnp.asarray(params["lin_w"], jnp.float32).T
    return (jnp.dot(cast(y3), cast(lw), precision=lax.Precision.HIGHEST,
                    preferred_element_type=jnp.float32)
            + params["lin_b"].astype(jnp.float32))


# ----------------------------------- main ---------------------------------------
if __name__ == "__main__":
    seq_len, n_features = 8, 4
    embedding_dim, hidden_dim = 32, 64
    B = 2

    key = jax.random.PRNGKey(0)
    kx, kp = jax.random.split(key)
    x = jax.random.normal(kx, (B, seq_len, n_features), jnp.float32)
    params = init_params(kp, seq_len, n_features, embedding_dim, hidden_dim)

    wbuf, bbuf, dims = prepare_params(params, n_features, embedding_dim, hidden_dim)
    forward = make_forward(seq_len, n_features, dims["HP"], dims["FP"], dims["XP"])

    out = jax.block_until_ready(forward(wbuf, bbuf, x))
    assert out.shape == (B, seq_len, n_features), out.shape
    assert bool(jnp.all(jnp.isfinite(out)))

    # (1) tight check vs. a bf16-operand-matched reference (same numerics as kernel)
    ref_bf = reference_forward(params, x, seq_len, n_features,
                               cast=lambda a: a.astype(jnp.bfloat16))
    err_bf = float(jnp.max(jnp.abs(out - ref_bf)))
    assert err_bf < 5e-3, f"kernel vs bf16-matched reference: max abs err {err_bf}"

    # (2) sanity check vs. the full-f32 (PyTorch-semantics) reference
    ref_f32 = reference_forward(params, x, seq_len, n_features)
    err_f32 = float(jnp.max(jnp.abs(out - ref_f32)))
    assert err_f32 < 5e-2, f"kernel vs float32 reference: max abs err {err_f32}"

    print("KERNEL_OK")
</pallas_src>

<mosaic_0001>
module attributes {stable_mosaic.version = 11 : i64} {
  func.func @kernel(%arg0: memref<16x16xbf16, #tpu.memory_space<vmem>>, %arg1: memref<1040x512xbf16, #tpu.memory_space<vmem>>, %arg2: memref<40x512xf32, #tpu.memory_space<vmem>>, %arg3: memref<2x128xf32, #tpu.memory_space<vmem>>) attributes {dimension_semantics = [], scalar_prefetch = 0 : i64, scratch_operands = 0 : i64, tpu.core_type = #tpu.core_type<tc>} {
    %c0 = arith.constant 0 : index
    %c0_0 = arith.constant 0 : index
    %0 = vector.load %arg1[%c0, %c0_0] : memref<1040x512xbf16, #tpu.memory_space<vmem>>, vector<16x512xbf16>
    %c16 = arith.constant 16 : index
    %c0_1 = arith.constant 0 : index
    %1 = vector.load %arg1[%c16, %c0_1] : memref<1040x512xbf16, #tpu.memory_space<vmem>>, vector<128x512xbf16>
    %c144 = arith.constant 144 : index
    %c0_2 = arith.constant 0 : index
    %2 = vector.load %arg1[%c144, %c0_2] : memref<1040x512xbf16, #tpu.memory_space<vmem>>, vector<256x512xbf16>
    %c400 = arith.constant 400 : index
    %c0_3 = arith.constant 0 : index
    %3 = vector.load %arg1[%c400, %c0_3] : memref<1040x512xbf16, #tpu.memory_space<vmem>>, vector<128x512xbf16>
    %c528 = arith.constant 528 : index
    %c0_4 = arith.constant 0 : index
    %4 = vector.load %arg1[%c528, %c0_4] : memref<1040x512xbf16, #tpu.memory_space<vmem>>, vector<128x512xbf16>
    %c656 = arith.constant 656 : index
    %c0_5 = arith.constant 0 : index
    %5 = vector.load %arg1[%c656, %c0_5] : memref<1040x512xbf16, #tpu.memory_space<vmem>>, vector<256x512xbf16>
    %c912 = arith.constant 912 : index
    %c0_6 = arith.constant 0 : index
    %6 = vector.load %arg1[%c912, %c0_6] : memref<1040x512xbf16, #tpu.memory_space<vmem>>, vector<128x128xbf16>
    %c0_7 = arith.constant 0 : index
    %c0_8 = arith.constant 0 : index
    %7 = vector.load %arg2[%c0_7, %c0_8] : memref<40x512xf32, #tpu.memory_space<vmem>>, vector<1x512xf32>
    %c8 = arith.constant 8 : index
    %c0_9 = arith.constant 0 : index
    %8 = vector.load %arg2[%c8, %c0_9] : memref<40x512xf32, #tpu.memory_space<vmem>>, vector<1x512xf32>
    %c16_10 = arith.constant 16 : index
    %c0_11 = arith.constant 0 : index
    %9 = vector.load %arg2[%c16_10, %c0_11] : memref<40x512xf32, #tpu.memory_space<vmem>>, vector<1x512xf32>
    %c24 = arith.constant 24 : index
    %c0_12 = arith.constant 0 : index
    %10 = vector.load %arg2[%c24, %c0_12] : memref<40x512xf32, #tpu.memory_space<vmem>>, vector<1x512xf32>
    %c32 = arith.constant 32 : index
    %c0_13 = arith.constant 0 : index
    %11 = vector.load %arg2[%c32, %c0_13] : memref<40x512xf32, #tpu.memory_space<vmem>>, vector<1x128xf32>
    %c0_14 = arith.constant 0 : index
    %c0_15 = arith.constant 0 : index
    %12 = vector.load %arg0[%c0_14, %c0_15] : memref<16x16xbf16, #tpu.memory_space<vmem>>, vector<16x16xbf16>
    %cst = arith.constant dense<0.000000e+00> : vector<16x512xf32>
    %13 = tpu.matmul %12, %0, %cst {dimension_numbers = #tpu.dot_dimension_numbers<[1], [0], [0], [1], [0, 0, 1, 1], [], []>} : vector<16x16xbf16>, vector<16x512xbf16>, vector<16x512xf32> -> vector<16x512xf32>
    %14 = vector.broadcast %7 : vector<1x512xf32> to vector<16x512xf32>
    %15 = arith.addf %13, %14 : vector<16x512xf32>
    %cst_16 = arith.constant 0.000000e+00 : f32
    %16 = vector.broadcast %cst_16 : f32 to vector<2x128xf32>
    %17 = vector.extract_strided_slice %15 {offsets = [0, 0], sizes = [2, 512], strides = [1, 1]} : vector<16x512xf32> to vector<2x512xf32>
    %18 = arith.truncf %16 : vector<2x128xf32> to vector<2x128xbf16>
    %cst_17 = arith.constant dense<0.000000e+00> : vector<2x512xf32>
    %19 = tpu.matmul %18, %1, %cst_17 {dimension_numbers = #tpu.dot_dimension_numbers<[1], [0], [0], [1], [0, 0, 1, 1], [], []>} : vector<2x128xbf16>, vector<128x512xbf16>, vector<2x512xf32> -> vector<2x512xf32>
    %20 = arith.addf %17, %19 : vector<2x512xf32>
    %21 = vector.extract_strided_slice %20 {offsets = [0, 0], sizes = [2, 128], strides = [1, 1]} : vector<2x512xf32> to vector<2x128xf32>
    %22 = arith.negf %21 : vector<2x128xf32>
    %23 = math.exp %22 : vector<2x128xf32>
    %cst_18 = arith.constant 1.000000e+00 : f32
    %24 = vector.broadcast %cst_18 : f32 to vector<2x128xf32>
    %25 = arith.addf %24, %23 : vector<2x128xf32>
    %26 = arith.divf %24, %25 : vector<2x128xf32>
    %27 = vector.extract_strided_slice %20 {offsets = [0, 128], sizes = [2, 128], strides = [1, 1]} : vector<2x512xf32> to vector<2x128xf32>
    %28 = arith.negf %27 : vector<2x128xf32>
    %29 = math.exp %28 : vector<2x128xf32>
    %cst_19 = arith.constant 1.000000e+00 : f32
    %30 = vector.broadcast %cst_19 : f32 to vector<2x128xf32>
    %31 = arith.addf %30, %29 : vector<2x128xf32>
    %32 = arith.divf %30, %31 : vector<2x128xf32>
    %33 = vector.extract_strided_slice %20 {offsets = [0, 256], sizes = [2, 128], strides = [1, 1]} : vector<2x512xf32> to vector<2x128xf32>
    %34 = math.tanh %33 : vector<2x128xf32>
    %35 = vector.extract_strided_slice %20 {offsets = [0, 384], sizes = [2, 128], strides = [1, 1]} : vector<2x512xf32> to vector<2x128xf32>
    %36 = arith.negf %35 : vector<2x128xf32>
    %37 = math.exp %36 : vector<2x128xf32>
    %cst_20 = arith.constant 1.000000e+00 : f32
    %38 = vector.broadcast %cst_20 : f32 to vector<2x128xf32>
    %39 = arith.addf %38, %37 : vector<2x128xf32>
    %40 = arith.divf %38, %39 : vector<2x128xf32>
    %41 = arith.mulf %32, %16 : vector<2x128xf32>
    %42 = arith.mulf %26, %34 : vector<2x128xf32>
    %43 = arith.addf %41, %42 : vector<2x128xf32>
    %44 = math.tanh %43 : vector<2x128xf32>
    %45 = arith.mulf %40, %44 : vector<2x128xf32>
    %46 = vector.extract_strided_slice %15 {offsets = [2, 0], sizes = [2, 512], strides = [1, 1]} : vector<16x512xf32> to vector<2x512xf32>
    %47 = arith.truncf %45 : vector<2x128xf32> to vector<2x128xbf16>
    %cst_21 = arith.constant dense<0.000000e+00> : vector<2x512xf32>
    %48 = tpu.matmul %47, %1, %cst_21 {dimension_numbers = #tpu.dot_dimension_numbers<[1], [0], [0], [1], [0, 0, 1, 1], [], []>} : vector<2x128xbf16>, vector<128x512xbf16>, vector<2x512xf32> -> vector<2x512xf32>
    %49 = arith.addf %46, %48 : vector<2x512xf32>
    %50 = vector.extract_strided_slice %49 {offsets = [0, 0], sizes = [2, 128], strides = [1, 1]} : vector<2x512xf32> to vector<2x128xf32>
    %51 = arith.negf %50 : vector<2x128xf32>
    %52 = math.exp %51 : vector<2x128xf32>
    %cst_22 = arith.constant 1.000000e+00 : f32
    %53 = vector.broadcast %cst_22 : f32 to vector<2x128xf32>
    %54 = arith.addf %53, %52 : vector<2x128xf32>
    %55 = arith.divf %53, %54 : vector<2x128xf32>
    %56 = vector.extract_strided_slice %49 {offsets = [0, 128], sizes = [2, 128], strides = [1, 1]} : vector<2x512xf32> to vector<2x128xf32>
    %57 = arith.negf %56 : vector<2x128xf32>
    %58 = math.exp %57 : vector<2x128xf32>
    %cst_23 = arith.constant 1.000000e+00 : f32
    %59 = vector.broadcast %cst_23 : f32 to vector<2x128xf32>
    %60 = arith.addf %59, %58 : vector<2x128xf32>
    %61 = arith.divf %59, %60 : vector<2x128xf32>
    %62 = vector.extract_strided_slice %49 {offsets = [0, 256], sizes = [2, 128], strides = [1, 1]} : vector<2x512xf32> to vector<2x128xf32>
    %63 = math.tanh %62 : vector<2x128xf32>
    %64 = vector.extract_strided_slice %49 {offsets = [0, 384], sizes = [2, 128], strides = [1, 1]} : vector<2x512xf32> to vector<2x128xf32>
    %65 = arith.negf %64 : vector<2x128xf32>
    %66 = math.exp %65 : vector<2x128xf32>
    %cst_24 = arith.constant 1.000000e+00 : f32
    %67 = vector.broadcast %cst_24 : f32 to vector<2x128xf32>
    %68 = arith.addf %67, %66 : vector<2x128xf32>
    %69 = arith.divf %67, %68 : vector<2x128xf32>
    %70 = arith.mulf %61, %43 : vector<2x128xf32>
    %71 = arith.mulf %55, %63 : vector<2x128xf32>
    %72 = arith.addf %70, %71 : vector<2x128xf32>
    %73 = math.tanh %72 : vector<2x128xf32>
    %74 = arith.mulf %69, %73 : vector<2x128xf32>
    %75 = tpu.concatenate %45, %16 in 1 : vector<2x128xf32>, vector<2x128xf32> -> vector<2x256xf32>
    %76 = arith.truncf %75 : vector<2x256xf32> to vector<2x256xbf16>
    %cst_25 = arith.constant dense<0.000000e+00> : vector<2x512xf32>
    %77 = tpu.matmul %76, %2, %cst_25 {dimension_numbers = #tpu.dot_dimension_numbers<[1], [0], [0], [1], [0, 0, 1, 1], [], []>} : vector<2x256xbf16>, vector<256x512xbf16>, vector<2x512xf32> -> vector<2x512xf32>
    %78 = vector.broadcast %8 : vector<1x512xf32> to vector<2x512xf32>
    %79 = arith.addf %77, %78 : vector<2x512xf32>
    %80 = vector.extract_strided_slice %79 {offsets = [0, 0], sizes = [2, 128], strides = [1, 1]} : vector<2x512xf32> to vector<2x128xf32>
    %81 = arith.negf %80 : vector<2x128xf32>
    %82 = math.exp %81 : vector<2x128xf32>
    %cst_26 = arith.constant 1.000000e+00 : f32
    %83 = vector.broadcast %cst_26 : f32 to vector<2x128xf32>
    %84 = arith.addf %83, %82 : vector<2x128xf32>
    %85 = arith.divf %83, %84 : vector<2x128xf32>
    %86 = vector.extract_strided_slice %79 {offsets = [0, 128], sizes = [2, 128], strides = [1, 1]} : vector<2x512xf32> to vector<2x128xf32>
    %87 = arith.negf %86 : vector<2x128xf32>
    %88 = math.exp %87 : vector<2x128xf32>
    %cst_27 = arith.constant 1.000000e+00 : f32
    %89 = vector.broadcast %cst_27 : f32 to vector<2x128xf32>
    %90 = arith.addf %89, %88 : vector<2x128xf32>
    %91 = arith.divf %89, %90 : vector<2x128xf32>
    %92 = vector.extract_strided_slice %79 {offsets = [0, 256], sizes = [2, 128], strides = [1, 1]} : vector<2x512xf32> to vector<2x128xf32>
    %93 = math.tanh %92 : vector<2x128xf32>
    %94 = vector.extract_strided_slice %79 {offsets = [0, 384], sizes = [2, 128], strides = [1, 1]} : vector<2x512xf32> to vector<2x128xf32>
    %95 = arith.negf %94 : vector<2x128xf32>
    %96 = math.exp %95 : vector<2x128xf32>
    %cst_28 = arith.constant 1.000000e+00 : f32
    %97 = vector.broadcast %cst_28 : f32 to vector<2x128xf32>
    %98 = arith.addf %97, %96 : vector<2x128xf32>
    %99 = arith.divf %97, %98 : vector<2x128xf32>
    %100 = arith.mulf %91, %16 : vector<2x128xf32>
    %101 = arith.mulf %85, %93 : vector<2x128xf32>
    %102 = arith.addf %100, %101 : vector<2x128xf32>
    %103 = math.tanh %102 : vector<2x128xf32>
    %104 = arith.mulf %99, %103 : vector<2x128xf32>
    %105 = vector.extract_strided_slice %15 {offsets = [4, 0], sizes = [2, 512], strides = [1, 1]} : vector<16x512xf32> to vector<2x512xf32>
    %106 = arith.truncf %74 : vector<2x128xf32> to vector<2x128xbf16>
    %cst_29 = arith.constant dense<0.000000e+00> : vector<2x512xf32>
    %107 = tpu.matmul %106, %1, %cst_29 {dimension_numbers = #tpu.dot_dimension_numbers<[1], [0], [0], [1], [0, 0, 1, 1], [], []>} : vector<2x128xbf16>, vector<128x512xbf16>, vector<2x512xf32> -> vector<2x512xf32>
    %108 = arith.addf %105, %107 : vector<2x512xf32>
    %109 = vector.extract_strided_slice %108 {offsets = [0, 0], sizes = [2, 128], strides = [1, 1]} : vector<2x512xf32> to vector<2x128xf32>
    %110 = arith.negf %109 : vector<2x128xf32>
    %111 = math.exp %110 : vector<2x128xf32>
    %cst_30 = arith.constant 1.000000e+00 : f32
    %112 = vector.broadcast %cst_30 : f32 to vector<2x128xf32>
    %113 = arith.addf %112, %111 : vector<2x128xf32>
    %114 = arith.divf %112, %113 : vector<2x128xf32>
    %115 = vector.extract_strided_slice %108 {offsets = [0, 128], sizes = [2, 128], strides = [1, 1]} : vector<2x512xf32> to vector<2x128xf32>
    %116 = arith.negf %115 : vector<2x128xf32>
    %117 = math.exp %116 : vector<2x128xf32>
    %cst_31 = arith.constant 1.000000e+00 : f32
    %118 = vector.broadcast %cst_31 : f32 to vector<2x128xf32>
    %119 = arith.addf %118, %117 : vector<2x128xf32>
    %120 = arith.divf %118, %119 : vector<2x128xf32>
    %121 = vector.extract_strided_slice %108 {offsets = [0, 256], sizes = [2, 128], strides = [1, 1]} : vector<2x512xf32> to vector<2x128xf32>
    %122 = math.tanh %121 : vector<2x128xf32>
    %123 = vector.extract_strided_slice %108 {offsets = [0, 384], sizes = [2, 128], strides = [1, 1]} : vector<2x512xf32> to vector<2x128xf32>
    %124 = arith.negf %123 : vector<2x128xf32>
    %125 = math.exp %124 : vector<2x128xf32>
    %cst_32 = arith.constant 1.000000e+00 : f32
    %126 = vector.broadcast %cst_32 : f32 to vector<2x128xf32>
    %127 = arith.addf %126, %125 : vector<2x128xf32>
    %128 = arith.divf %126, %127 : vector<2x128xf32>
    %129 = arith.mulf %120, %72 : vector<2x128xf32>
    %130 = arith.mulf %114, %122 : vector<2x128xf32>
    %131 = arith.addf %129, %130 : vector<2x128xf32>
    %132 = math.tanh %131 : vector<2x128xf32>
    %133 = arith.mulf %128, %132 : vector<2x128xf32>
    %134 = tpu.concatenate %74, %104 in 1 : vector<2x128xf32>, vector<2x128xf32> -> vector<2x256xf32>
    %135 = arith.truncf %134 : vector<2x256xf32> to vector<2x256xbf16>
    %cst_33 = arith.constant dense<0.000000e+00> : vector<2x512xf32>
    %136 = tpu.matmul %135, %2, %cst_33 {dimension_numbers = #tpu.dot_dimension_numbers<[1], [0], [0], [1], [0, 0, 1, 1], [], []>} : vector<2x256xbf16>, vector<256x512xbf16>, vector<2x512xf32> -> vector<2x512xf32>
    %137 = vector.broadcast %8 : vector<1x512xf32> to vector<2x512xf32>
    %138 = arith.addf %136, %137 : vector<2x512xf32>
    %139 = vector.extract_strided_slice %138 {offsets = [0, 0], sizes = [2, 128], strides = [1, 1]} : vector<2x512xf32> to vector<2x128xf32>
    %140 = arith.negf %139 : vector<2x128xf32>
    %141 = math.exp %140 : vector<2x128xf32>
    %cst_34 = arith.constant 1.000000e+00 : f32
    %142 = vector.broadcast %cst_34 : f32 to vector<2x128xf32>
    %143 = arith.addf %142, %141 : vector<2x128xf32>
    %144 = arith.divf %142, %143 : vector<2x128xf32>
    %145 = vector.extract_strided_slice %138 {offsets = [0, 128], sizes = [2, 128], strides = [1, 1]} : vector<2x512xf32> to vector<2x128xf32>
    %146 = arith.negf %145 : vector<2x128xf32>
    %147 = math.exp %146 : vector<2x128xf32>
    %cst_35 = arith.constant 1.000000e+00 : f32
    %148 = vector.broadcast %cst_35 : f32 to vector<2x128xf32>
    %149 = arith.addf %148, %147 : vector<2x128xf32>
    %150 = arith.divf %148, %149 : vector<2x128xf32>
    %151 = vector.extract_strided_slice %138 {offsets = [0, 256], sizes = [2, 128], strides = [1, 1]} : vector<2x512xf32> to vector<2x128xf32>
    %152 = math.tanh %151 : vector<2x128xf32>
    %153 = vector.extract_strided_slice %138 {offsets = [0, 384], sizes = [2, 128], strides = [1, 1]} : vector<2x512xf32> to vector<2x128xf32>
    %154 = arith.negf %153 : vector<2x128xf32>
    %155 = math.exp %154 : vector<2x128xf32>
    %cst_36 = arith.constant 1.000000e+00 : f32
    %156 = vector.broadcast %cst_36 : f32 to vector<2x128xf32>
    %157 = arith.addf %156, %155 : vector<2x128xf32>
    %158 = arith.divf %156, %157 : vector<2x128xf32>
    %159 = arith.mulf %150, %102 : vector<2x128xf32>
    %160 = arith.mulf %144, %152 : vector<2x128xf32>
    %161 = arith.addf %159, %160 : vector<2x128xf32>
    %162 = math.tanh %161 : vector<2x128xf32>
    %163 = arith.mulf %158, %162 : vector<2x128xf32>
    %164 = vector.extract_strided_slice %15 {offsets = [6, 0], sizes = [2, 512], strides = [1, 1]} : vector<16x512xf32> to vector<2x512xf32>
    %165 = arith.truncf %133 : vector<2x128xf32> to vector<2x128xbf16>
    %cst_37 = arith.constant dense<0.000000e+00> : vector<2x512xf32>
    %166 = tpu.matmul %165, %1, %cst_37 {dimension_numbers = #tpu.dot_dimension_numbers<[1], [0], [0], [1], [0, 0, 1, 1], [], []>} : vector<2x128xbf16>, vector<128x512xbf16>, vector<2x512xf32> -> vector<2x512xf32>
    %167 = arith.addf %164, %166 : vector<2x512xf32>
    %168 = vector.extract_strided_slice %167 {offsets = [0, 0], sizes = [2, 128], strides = [1, 1]} : vector<2x512xf32> to vector<2x128xf32>
    %169 = arith.negf %168 : vector<2x128xf32>
    %170 = math.exp %169 : vector<2x128xf32>
    %cst_38 = arith.constant 1.000000e+00 : f32
    %171 = vector.broadcast %cst_38 : f32 to vector<2x128xf32>
    %172 = arith.addf %171, %170 : vector<2x128xf32>
    %173 = arith.divf %171, %172 : vector<2x128xf32>
    %174 = vector.extract_strided_slice %167 {offsets = [0, 128], sizes = [2, 128], strides = [1, 1]} : vector<2x512xf32> to vector<2x128xf32>
    %175 = arith.negf %174 : vector<2x128xf32>
    %176 = math.exp %175 : vector<2x128xf32>
    %cst_39 = arith.constant 1.000000e+00 : f32
    %177 = vector.broadcast %cst_39 : f32 to vector<2x128xf32>
    %178 = arith.addf %177, %176 : vector<2x128xf32>
    %179 = arith.divf %177, %178 : vector<2x128xf32>
    %180 = vector.extract_strided_slice %167 {offsets = [0, 256], sizes = [2, 128], strides = [1, 1]} : vector<2x512xf32> to vector<2x128xf32>
    %181 = math.tanh %180 : vector<2x128xf32>
    %182 = vector.extract_strided_slice %167 {offsets = [0, 384], sizes = [2, 128], strides = [1, 1]} : vector<2x512xf32> to vector<2x128xf32>
    %183 = arith.negf %182 : vector<2x128xf32>
    %184 = math.exp %183 : vector<2x128xf32>
    %cst_40 = arith.constant 1.000000e+00 : f32
    %185 = vector.broadcast %cst_40 : f32 to vector<2x128xf32>
    %186 = arith.addf %185, %184 : vector<2x128xf32>
    %187 = arith.divf %185, %186 : vector<2x128xf32>
    %188 = arith.mulf %179, %131 : vector<2x128xf32>
    %189 = arith.mulf %173, %181 : vector<2x128xf32>
    %190 = arith.addf %188, %189 : vector<2x128xf32>
    %191 = math.tanh %190 : vector<2x128xf32>
    %192 = arith.mulf %187, %191 : vector<2x128xf32>
    %193 = tpu.concatenate %133, %163 in 1 : vector<2x128xf32>, vector<2x128xf32> -> vector<2x256xf32>
    %194 = arith.truncf %193 : vector<2x256xf32> to vector<2x256xbf16>
    %cst_41 = arith.constant dense<0.000000e+00> : vector<2x512xf32>
    %195 = tpu.matmul %194, %2, %cst_41 {dimension_numbers = #tpu.dot_dimension_numbers<[1], [0], [0], [1], [0, 0, 1, 1], [], []>} : vector<2x256xbf16>, vector<256x512xbf16>, vector<2x512xf32> -> vector<2x512xf32>
    %196 = vector.broadcast %8 : vector<1x512xf32> to vector<2x512xf32>
    %197 = arith.addf %195, %196 : vector<2x512xf32>
    %198 = vector.extract_strided_slice %197 {offsets = [0, 0], sizes = [2, 128], strides = [1, 1]} : vector<2x512xf32> to vector<2x128xf32>
    %199 = arith.negf %198 : vector<2x128xf32>
    %200 = math.exp %199 : vector<2x128xf32>
    %cst_42 = arith.constant 1.000000e+00 : f32
    %201 = vector.broadcast %cst_42 : f32 to vector<2x128xf32>
    %202 = arith.addf %201, %200 : vector<2x128xf32>
    %203 = arith.divf %201, %202 : vector<2x128xf32>
    %204 = vector.extract_strided_slice %197 {offsets = [0, 128], sizes = [2, 128], strides = [1, 1]} : vector<2x512xf32> to vector<2x128xf32>
    %205 = arith.negf %204 : vector<2x128xf32>
    %206 = math.exp %205 : vector<2x128xf32>
    %cst_43 = arith.constant 1.000000e+00 : f32
    %207 = vector.broadcast %cst_43 : f32 to vector<2x128xf32>
    %208 = arith.addf %207, %206 : vector<2x128xf32>
    %209 = arith.divf %207, %208 : vector<2x128xf32>
    %210 = vector.extract_strided_slice %197 {offsets = [0, 256], sizes = [2, 128], strides = [1, 1]} : vector<2x512xf32> to vector<2x128xf32>
    %211 = math.tanh %210 : vector<2x128xf32>
    %212 = vector.extract_strided_slice %197 {offsets = [0, 384], sizes = [2, 128], strides = [1, 1]} : vector<2x512xf32> to vector<2x128xf32>
    %213 = arith.negf %212 : vector<2x128xf32>
    %214 = math.exp %213 : vector<2x128xf32>
    %cst_44 = arith.constant 1.000000e+00 : f32
    %215 = vector.broadcast %cst_44 : f32 to vector<2x128xf32>
    %216 = arith.addf %215, %214 : vector<2x128xf32>
    %217 = arith.divf %215, %216 : vector<2x128xf32>
    %218 = arith.mulf %209, %161 : vector<2x128xf32>
    %219 = arith.mulf %203, %211 : vector<2x128xf32>
    %220 = arith.addf %218, %219 : vector<2x128xf32>
    %221 = math.tanh %220 : vector<2x128xf32>
    %222 = arith.mulf %217, %221 : vector<2x128xf32>
    %223 = vector.extract_strided_slice %15 {offsets = [8, 0], sizes = [2, 512], strides = [1, 1]} : vector<16x512xf32> to vector<2x512xf32>
    %224 = arith.truncf %192 : vector<2x128xf32> to vector<2x128xbf16>
    %cst_45 = arith.constant dense<0.000000e+00> : vector<2x512xf32>
    %225 = tpu.matmul %224, %1, %cst_45 {dimension_numbers = #tpu.dot_dimension_numbers<[1], [0], [0], [1], [0, 0, 1, 1], [], []>} : vector<2x128xbf16>, vector<128x512xbf16>, vector<2x512xf32> -> vector<2x512xf32>
    %226 = arith.addf %223, %225 : vector<2x512xf32>
    %227 = vector.extract_strided_slice %226 {offsets = [0, 0], sizes = [2, 128], strides = [1, 1]} : vector<2x512xf32> to vector<2x128xf32>
    %228 = arith.negf %227 : vector<2x128xf32>
    %229 = math.exp %228 : vector<2x128xf32>
    %cst_46 = arith.constant 1.000000e+00 : f32
    %230 = vector.broadcast %cst_46 : f32 to vector<2x128xf32>
    %231 = arith.addf %230, %229 : vector<2x128xf32>
    %232 = arith.divf %230, %231 : vector<2x128xf32>
    %233 = vector.extract_strided_slice %226 {offsets = [0, 128], sizes = [2, 128], strides = [1, 1]} : vector<2x512xf32> to vector<2x128xf32>
    %234 = arith.negf %233 : vector<2x128xf32>
    %235 = math.exp %234 : vector<2x128xf32>
    %cst_47 = arith.constant 1.000000e+00 : f32
    %236 = vector.broadcast %cst_47 : f32 to vector<2x128xf32>
    %237 = arith.addf %236, %235 : vector<2x128xf32>
    %238 = arith.divf %236, %237 : vector<2x128xf32>
    %239 = vector.extract_strided_slice %226 {offsets = [0, 256], sizes = [2, 128], strides = [1, 1]} : vector<2x512xf32> to vector<2x128xf32>
    %240 = math.tanh %239 : vector<2x128xf32>
    %241 = vector.extract_strided_slice %226 {offsets = [0, 384], sizes = [2, 128], strides = [1, 1]} : vector<2x512xf32> to vector<2x128xf32>
    %242 = arith.negf %241 : vector<2x128xf32>
    %243 = math.exp %242 : vector<2x128xf32>
    %cst_48 = arith.constant 1.000000e+00 : f32
    %244 = vector.broadcast %cst_48 : f32 to vector<2x128xf32>
    %245 = arith.addf %244, %243 : vector<2x128xf32>
    %246 = arith.divf %244, %245 : vector<2x128xf32>
    %247 = arith.mulf %238, %190 : vector<2x128xf32>
    %248 = arith.mulf %232, %240 : vector<2x128xf32>
    %249 = arith.addf %247, %248 : vector<2x128xf32>
    %250 = math.tanh %249 : vector<2x128xf32>
    %251 = arith.mulf %246, %250 : vector<2x128xf32>
    %252 = tpu.concatenate %192, %222 in 1 : vector<2x128xf32>, vector<2x128xf32> -> vector<2x256xf32>
    %253 = arith.truncf %252 : vector<2x256xf32> to vector<2x256xbf16>
    %cst_49 = arith.constant dense<0.000000e+00> : vector<2x512xf32>
    %254 = tpu.matmul %253, %2, %cst_49 {dimension_numbers = #tpu.dot_dimension_numbers<[1], [0], [0], [1], [0, 0, 1, 1], [], []>} : vector<2x256xbf16>, vector<256x512xbf16>, vector<2x512xf32> -> vector<2x512xf32>
    %255 = vector.broadcast %8 : vector<1x512xf32> to vector<2x512xf32>
    %256 = arith.addf %254, %255 : vector<2x512xf32>
    %257 = vector.extract_strided_slice %256 {offsets = [0, 0], sizes = [2, 128], strides = [1, 1]} : vector<2x512xf32> to vector<2x128xf32>
    %258 = arith.negf %257 : vector<2x128xf32>
    %259 = math.exp %258 : vector<2x128xf32>
    %cst_50 = arith.constant 1.000000e+00 : f32
    %260 = vector.broadcast %cst_50 : f32 to vector<2x128xf32>
    %261 = arith.addf %260, %259 : vector<2x128xf32>
    %262 = arith.divf %260, %261 : vector<2x128xf32>
    %263 = vector.extract_strided_slice %256 {offsets = [0, 128], sizes = [2, 128], strides = [1, 1]} : vector<2x512xf32> to vector<2x128xf32>
    %264 = arith.negf %263 : vector<2x128xf32>
    %265 = math.exp %264 : vector<2x128xf32>
    %cst_51 = arith.constant 1.000000e+00 : f32
    %266 = vector.broadcast %cst_51 : f32 to vector<2x128xf32>
    %267 = arith.addf %266, %265 : vector<2x128xf32>
    %268 = arith.divf %266, %267 : vector<2x128xf32>
    %269 = vector.extract_strided_slice %256 {offsets = [0, 256], sizes = [2, 128], strides = [1, 1]} : vector<2x512xf32> to vector<2x128xf32>
    %270 = math.tanh %269 : vector<2x128xf32>
    %271 = vector.extract_strided_slice %256 {offsets = [0, 384], sizes = [2, 128], strides = [1, 1]} : vector<2x512xf32> to vector<2x128xf32>
    %272 = arith.negf %271 : vector<2x128xf32>
    %273 = math.exp %272 : vector<2x128xf32>
    %cst_52 = arith.constant 1.000000e+00 : f32
    %274 = vector.broadcast %cst_52 : f32 to vector<2x128xf32>
    %275 = arith.addf %274, %273 : vector<2x128xf32>
    %276 = arith.divf %274, %275 : vector<2x128xf32>
    %277 = arith.mulf %268, %220 : vector<2x128xf32>
    %278 = arith.mulf %262, %270 : vector<2x128xf32>
    %279 = arith.addf %277, %278 : vector<2x128xf32>
    %280 = math.tanh %279 : vector<2x128xf32>
    %281 = arith.mulf %276, %280 : vector<2x128xf32>
    %282 = vector.extract_strided_slice %15 {offsets = [10, 0], sizes = [2, 512], strides = [1, 1]} : vector<16x512xf32> to vector<2x512xf32>
    %283 = arith.truncf %251 : vector<2x128xf32> to vector<2x128xbf16>
    %cst_53 = arith.constant dense<0.000000e+00> : vector<2x512xf32>
    %284 = tpu.matmul %283, %1, %cst_53 {dimension_numbers = #tpu.dot_dimension_numbers<[1], [0], [0], [1], [0, 0, 1, 1], [], []>} : vector<2x128xbf16>, vector<128x512xbf16>, vector<2x512xf32> -> vector<2x512xf32>
    %285 = arith.addf %282, %284 : vector<2x512xf32>
    %286 = vector.extract_strided_slice %285 {offsets = [0, 0], sizes = [2, 128], strides = [1, 1]} : vector<2x512xf32> to vector<2x128xf32>
    %287 = arith.negf %286 : vector<2x128xf32>
    %288 = math.exp %287 : vector<2x128xf32>
    %cst_54 = arith.constant 1.000000e+00 : f32
    %289 = vector.broadcast %cst_54 : f32 to vector<2x128xf32>
    %290 = arith.addf %289, %288 : vector<2x128xf32>
    %291 = arith.divf %289, %290 : vector<2x128xf32>
    %292 = vector.extract_strided_slice %285 {offsets = [0, 128], sizes = [2, 128], strides = [1, 1]} : vector<2x512xf32> to vector<2x128xf32>
    %293 = arith.negf %292 : vector<2x128xf32>
    %294 = math.exp %293 : vector<2x128xf32>
    %cst_55 = arith.constant 1.000000e+00 : f32
    %295 = vector.broadcast %cst_55 : f32 to vector<2x128xf32>
    %296 = arith.addf %295, %294 : vector<2x128xf32>
    %297 = arith.divf %295, %296 : vector<2x128xf32>
    %298 = vector.extract_strided_slice %285 {offsets = [0, 256], sizes = [2, 128], strides = [1, 1]} : vector<2x512xf32> to vector<2x128xf32>
    %299 = math.tanh %298 : vector<2x128xf32>
    %300 = vector.extract_strided_slice %285 {offsets = [0, 384], sizes = [2, 128], strides = [1, 1]} : vector<2x512xf32> to vector<2x128xf32>
    %301 = arith.negf %300 : vector<2x128xf32>
    %302 = math.exp %301 : vector<2x128xf32>
    %cst_56 = arith.constant 1.000000e+00 : f32
    %303 = vector.broadcast %cst_56 : f32 to vector<2x128xf32>
    %304 = arith.addf %303, %302 : vector<2x128xf32>
    %305 = arith.divf %303, %304 : vector<2x128xf32>
    %306 = arith.mulf %297, %249 : vector<2x128xf32>
    %307 = arith.mulf %291, %299 : vector<2x128xf32>
    %308 = arith.addf %306, %307 : vector<2x128xf32>
    %309 = math.tanh %308 : vector<2x128xf32>
    %310 = arith.mulf %305, %309 : vector<2x128xf32>
    %311 = tpu.concatenate %251, %281 in 1 : vector<2x128xf32>, vector<2x128xf32> -> vector<2x256xf32>
    %312 = arith.truncf %311 : vector<2x256xf32> to vector<2x256xbf16>
    %cst_57 = arith.constant dense<0.000000e+00> : vector<2x512xf32>
    %313 = tpu.matmul %312, %2, %cst_57 {dimension_numbers = #tpu.dot_dimension_numbers<[1], [0], [0], [1], [0, 0, 1, 1], [], []>} : vector<2x256xbf16>, vector<256x512xbf16>, vector<2x512xf32> -> vector<2x512xf32>
    %314 = vector.broadcast %8 : vector<1x512xf32> to vector<2x512xf32>
    %315 = arith.addf %313, %314 : vector<2x512xf32>
    %316 = vector.extract_strided_slice %315 {offsets = [0, 0], sizes = [2, 128], strides = [1, 1]} : vector<2x512xf32> to vector<2x128xf32>
    %317 = arith.negf %316 : vector<2x128xf32>
    %318 = math.exp %317 : vector<2x128xf32>
    %cst_58 = arith.constant 1.000000e+00 : f32
    %319 = vector.broadcast %cst_58 : f32 to vector<2x128xf32>
    %320 = arith.addf %319, %318 : vector<2x128xf32>
    %321 = arith.divf %319, %320 : vector<2x128xf32>
    %322 = vector.extract_strided_slice %315 {offsets = [0, 128], sizes = [2, 128], strides = [1, 1]} : vector<2x512xf32> to vector<2x128xf32>
    %323 = arith.negf %322 : vector<2x128xf32>
    %324 = math.exp %323 : vector<2x128xf32>
    %cst_59 = arith.constant 1.000000e+00 : f32
    %325 = vector.broadcast %cst_59 : f32 to vector<2x128xf32>
    %326 = arith.addf %325, %324 : vector<2x128xf32>
    %327 = arith.divf %325, %326 : vector<2x128xf32>
    %328 = vector.extract_strided_slice %315 {offsets = [0, 256], sizes = [2, 128], strides = [1, 1]} : vector<2x512xf32> to vector<2x128xf32>
    %329 = math.tanh %328 : vector<2x128xf32>
    %330 = vector.extract_strided_slice %315 {offsets = [0, 384], sizes = [2, 128], strides = [1, 1]} : vector<2x512xf32> to vector<2x128xf32>
    %331 = arith.negf %330 : vector<2x128xf32>
    %332 = math.exp %331 : vector<2x128xf32>
    %cst_60 = arith.constant 1.000000e+00 : f32
    %333 = vector.broadcast %cst_60 : f32 to vector<2x128xf32>
    %334 = arith.addf %333, %332 : vector<2x128xf32>
    %335 = arith.divf %333, %334 : vector<2x128xf32>
    %336 = arith.mulf %327, %279 : vector<2x128xf32>
    %337 = arith.mulf %321, %329 : vector<2x128xf32>
    %338 = arith.addf %336, %337 : vector<2x128xf32>
    %339 = math.tanh %338 : vector<2x128xf32>
    %340 = arith.mulf %335, %339 : vector<2x128xf32>
    %341 = vector.extract_strided_slice %15 {offsets = [12, 0], sizes = [2, 512], strides = [1, 1]} : vector<16x512xf32> to vector<2x512xf32>
    %342 = arith.truncf %310 : vector<2x128xf32> to vector<2x128xbf16>
    %cst_61 = arith.constant dense<0.000000e+00> : vector<2x512xf32>
    %343 = tpu.matmul %342, %1, %cst_61 {dimension_numbers = #tpu.dot_dimension_numbers<[1], [0], [0], [1], [0, 0, 1, 1], [], []>} : vector<2x128xbf16>, vector<128x512xbf16>, vector<2x512xf32> -> vector<2x512xf32>
    %344 = arith.addf %341, %343 : vector<2x512xf32>
    %345 = vector.extract_strided_slice %344 {offsets = [0, 0], sizes = [2, 128], strides = [1, 1]} : vector<2x512xf32> to vector<2x128xf32>
    %346 = arith.negf %345 : vector<2x128xf32>
    %347 = math.exp %346 : vector<2x128xf32>
    %cst_62 = arith.constant 1.000000e+00 : f32
    %348 = vector.broadcast %cst_62 : f32 to vector<2x128xf32>
    %349 = arith.addf %348, %347 : vector<2x128xf32>
    %350 = arith.divf %348, %349 : vector<2x128xf32>
    %351 = vector.extract_strided_slice %344 {offsets = [0, 128], sizes = [2, 128], strides = [1, 1]} : vector<2x512xf32> to vector<2x128xf32>
    %352 = arith.negf %351 : vector<2x128xf32>
    %353 = math.exp %352 : vector<2x128xf32>
    %cst_63 = arith.constant 1.000000e+00 : f32
    %354 = vector.broadcast %cst_63 : f32 to vector<2x128xf32>
    %355 = arith.addf %354, %353 : vector<2x128xf32>
    %356 = arith.divf %354, %355 : vector<2x128xf32>
    %357 = vector.extract_strided_slice %344 {offsets = [0, 256], sizes = [2, 128], strides = [1, 1]} : vector<2x512xf32> to vector<2x128xf32>
    %358 = math.tanh %357 : vector<2x128xf32>
    %359 = vector.extract_strided_slice %344 {offsets = [0, 384], sizes = [2, 128], strides = [1, 1]} : vector<2x512xf32> to vector<2x128xf32>
    %360 = arith.negf %359 : vector<2x128xf32>
    %361 = math.exp %360 : vector<2x128xf32>
    %cst_64 = arith.constant 1.000000e+00 : f32
    %362 = vector.broadcast %cst_64 : f32 to vector<2x128xf32>
    %363 = arith.addf %362, %361 : vector<2x128xf32>
    %364 = arith.divf %362, %363 : vector<2x128xf32>
    %365 = arith.mulf %356, %308 : vector<2x128xf32>
    %366 = arith.mulf %350, %358 : vector<2x128xf32>
    %367 = arith.addf %365, %366 : vector<2x128xf32>
    %368 = math.tanh %367 : vector<2x128xf32>
    %369 = arith.mulf %364, %368 : vector<2x128xf32>
    %370 = tpu.concatenate %310, %340 in 1 : vector<2x128xf32>, vector<2x128xf32> -> vector<2x256xf32>
    %371 = arith.truncf %370 : vector<2x256xf32> to vector<2x256xbf16>
    %cst_65 = arith.constant dense<0.000000e+00> : vector<2x512xf32>
    %372 = tpu.matmul %371, %2, %cst_65 {dimension_numbers = #tpu.dot_dimension_numbers<[1], [0], [0], [1], [0, 0, 1, 1], [], []>} : vector<2x256xbf16>, vector<256x512xbf16>, vector<2x512xf32> -> vector<2x512xf32>
    %373 = vector.broadcast %8 : vector<1x512xf32> to vector<2x512xf32>
    %374 = arith.addf %372, %373 : vector<2x512xf32>
    %375 = vector.extract_strided_slice %374 {offsets = [0, 0], sizes = [2, 128], strides = [1, 1]} : vector<2x512xf32> to vector<2x128xf32>
    %376 = arith.negf %375 : vector<2x128xf32>
    %377 = math.exp %376 : vector<2x128xf32>
    %cst_66 = arith.constant 1.000000e+00 : f32
    %378 = vector.broadcast %cst_66 : f32 to vector<2x128xf32>
    %379 = arith.addf %378, %377 : vector<2x128xf32>
    %380 = arith.divf %378, %379 : vector<2x128xf32>
    %381 = vector.extract_strided_slice %374 {offsets = [0, 128], sizes = [2, 128], strides = [1, 1]} : vector<2x512xf32> to vector<2x128xf32>
    %382 = arith.negf %381 : vector<2x128xf32>
    %383 = math.exp %382 : vector<2x128xf32>
    %cst_67 = arith.constant 1.000000e+00 : f32
    %384 = vector.broadcast %cst_67 : f32 to vector<2x128xf32>
    %385 = arith.addf %384, %383 : vector<2x128xf32>
    %386 = arith.divf %384, %385 : vector<2x128xf32>
    %387 = vector.extract_strided_slice %374 {offsets = [0, 256], sizes = [2, 128], strides = [1, 1]} : vector<2x512xf32> to vector<2x128xf32>
    %388 = math.tanh %387 : vector<2x128xf32>
    %389 = vector.extract_strided_slice %374 {offsets = [0, 384], sizes = [2, 128], strides = [1, 1]} : vector<2x512xf32> to vector<2x128xf32>
    %390 = arith.negf %389 : vector<2x128xf32>
    %391 = math.exp %390 : vector<2x128xf32>
    %cst_68 = arith.constant 1.000000e+00 : f32
    %392 = vector.broadcast %cst_68 : f32 to vector<2x128xf32>
    %393 = arith.addf %392, %391 : vector<2x128xf32>
    %394 = arith.divf %392, %393 : vector<2x128xf32>
    %395 = arith.mulf %386, %338 : vector<2x128xf32>
    %396 = arith.mulf %380, %388 : vector<2x128xf32>
    %397 = arith.addf %395, %396 : vector<2x128xf32>
    %398 = math.tanh %397 : vector<2x128xf32>
    %399 = arith.mulf %394, %398 : vector<2x128xf32>
    %400 = vector.extract_strided_slice %15 {offsets = [14, 0], sizes = [2, 512], strides = [1, 1]} : vector<16x512xf32> to vector<2x512xf32>
    %401 = arith.truncf %369 : vector<2x128xf32> to vector<2x128xbf16>
    %cst_69 = arith.constant dense<0.000000e+00> : vector<2x512xf32>
    %402 = tpu.matmul %401, %1, %cst_69 {dimension_numbers = #tpu.dot_dimension_numbers<[1], [0], [0], [1], [0, 0, 1, 1], [], []>} : vector<2x128xbf16>, vector<128x512xbf16>, vector<2x512xf32> -> vector<2x512xf32>
    %403 = arith.addf %400, %402 : vector<2x512xf32>
    %404 = vector.extract_strided_slice %403 {offsets = [0, 0], sizes = [2, 128], strides = [1, 1]} : vector<2x512xf32> to vector<2x128xf32>
    %405 = arith.negf %404 : vector<2x128xf32>
    %406 = math.exp %405 : vector<2x128xf32>
    %cst_70 = arith.constant 1.000000e+00 : f32
    %407 = vector.broadcast %cst_70 : f32 to vector<2x128xf32>
    %408 = arith.addf %407, %406 : vector<2x128xf32>
    %409 = arith.divf %407, %408 : vector<2x128xf32>
    %410 = vector.extract_strided_slice %403 {offsets = [0, 128], sizes = [2, 128], strides = [1, 1]} : vector<2x512xf32> to vector<2x128xf32>
    %411 = arith.negf %410 : vector<2x128xf32>
    %412 = math.exp %411 : vector<2x128xf32>
    %cst_71 = arith.constant 1.000000e+00 : f32
    %413 = vector.broadcast %cst_71 : f32 to vector<2x128xf32>
    %414 = arith.addf %413, %412 : vector<2x128xf32>
    %415 = arith.divf %413, %414 : vector<2x128xf32>
    %416 = vector.extract_strided_slice %403 {offsets = [0, 256], sizes = [2, 128], strides = [1, 1]} : vector<2x512xf32> to vector<2x128xf32>
    %417 = math.tanh %416 : vector<2x128xf32>
    %418 = vector.extract_strided_slice %403 {offsets = [0, 384], sizes = [2, 128], strides = [1, 1]} : vector<2x512xf32> to vector<2x128xf32>
    %419 = arith.negf %418 : vector<2x128xf32>
    %420 = math.exp %419 : vector<2x128xf32>
    %cst_72 = arith.constant 1.000000e+00 : f32
    %421 = vector.broadcast %cst_72 : f32 to vector<2x128xf32>
    %422 = arith.addf %421, %420 : vector<2x128xf32>
    %423 = arith.divf %421, %422 : vector<2x128xf32>
    %424 = arith.mulf %415, %367 : vector<2x128xf32>
    %425 = arith.mulf %409, %417 : vector<2x128xf32>
    %426 = arith.addf %424, %425 : vector<2x128xf32>
    %427 = math.tanh %426 : vector<2x128xf32>
    %428 = arith.mulf %423, %427 : vector<2x128xf32>
    %429 = tpu.concatenate %369, %399 in 1 : vector<2x128xf32>, vector<2x128xf32> -> vector<2x256xf32>
    %430 = arith.truncf %429 : vector<2x256xf32> to vector<2x256xbf16>
    %cst_73 = arith.constant dense<0.000000e+00> : vector<2x512xf32>
    %431 = tpu.matmul %430, %2, %cst_73 {dimension_numbers = #tpu.dot_dimension_numbers<[1], [0], [0], [1], [0, 0, 1, 1], [], []>} : vector<2x256xbf16>, vector<256x512xbf16>, vector<2x512xf32> -> vector<2x512xf32>
    %432 = vector.broadcast %8 : vector<1x512xf32> to vector<2x512xf32>
    %433 = arith.addf %431, %432 : vector<2x512xf32>
    %434 = vector.extract_strided_slice %433 {offsets = [0, 0], sizes = [2, 128], strides = [1, 1]} : vector<2x512xf32> to vector<2x128xf32>
    %435 = arith.negf %434 : vector<2x128xf32>
    %436 = math.exp %435 : vector<2x128xf32>
    %cst_74 = arith.constant 1.000000e+00 : f32
    %437 = vector.broadcast %cst_74 : f32 to vector<2x128xf32>
    %438 = arith.addf %437, %436 : vector<2x128xf32>
    %439 = arith.divf %437, %438 : vector<2x128xf32>
    %440 = vector.extract_strided_slice %433 {offsets = [0, 128], sizes = [2, 128], strides = [1, 1]} : vector<2x512xf32> to vector<2x128xf32>
    %441 = arith.negf %440 : vector<2x128xf32>
    %442 = math.exp %441 : vector<2x128xf32>
    %cst_75 = arith.constant 1.000000e+00 : f32
    %443 = vector.broadcast %cst_75 : f32 to vector<2x128xf32>
    %444 = arith.addf %443, %442 : vector<2x128xf32>
    %445 = arith.divf %443, %444 : vector<2x128xf32>
    %446 = vector.extract_strided_slice %433 {offsets = [0, 256], sizes = [2, 128], strides = [1, 1]} : vector<2x512xf32> to vector<2x128xf32>
    %447 = math.tanh %446 : vector<2x128xf32>
    %448 = vector.extract_strided_slice %433 {offsets = [0, 384], sizes = [2, 128], strides = [1, 1]} : vector<2x512xf32> to vector<2x128xf32>
    %449 = arith.negf %448 : vector<2x128xf32>
    %450 = math.exp %449 : vector<2x128xf32>
    %cst_76 = arith.constant 1.000000e+00 : f32
    %451 = vector.broadcast %cst_76 : f32 to vector<2x128xf32>
    %452 = arith.addf %451, %450 : vector<2x128xf32>
    %453 = arith.divf %451, %452 : vector<2x128xf32>
    %454 = arith.mulf %445, %397 : vector<2x128xf32>
    %455 = arith.mulf %439, %447 : vector<2x128xf32>
    %456 = arith.addf %454, %455 : vector<2x128xf32>
    %457 = math.tanh %456 : vector<2x128xf32>
    %458 = arith.mulf %453, %457 : vector<2x128xf32>
    %459 = tpu.concatenate %428, %458 in 1 : vector<2x128xf32>, vector<2x128xf32> -> vector<2x256xf32>
    %460 = arith.truncf %459 : vector<2x256xf32> to vector<2x256xbf16>
    %cst_77 = arith.constant dense<0.000000e+00> : vector<2x512xf32>
    %461 = tpu.matmul %460, %2, %cst_77 {dimension_numbers = #tpu.dot_dimension_numbers<[1], [0], [0], [1], [0, 0, 1, 1], [], []>} : vector<2x256xbf16>, vector<256x512xbf16>, vector<2x512xf32> -> vector<2x512xf32>
    %462 = vector.broadcast %8 : vector<1x512xf32> to vector<2x512xf32>
    %463 = arith.addf %461, %462 : vector<2x512xf32>
    %464 = vector.extract_strided_slice %463 {offsets = [0, 0], sizes = [2, 128], strides = [1, 1]} : vector<2x512xf32> to vector<2x128xf32>
    %465 = arith.negf %464 : vector<2x128xf32>
    %466 = math.exp %465 : vector<2x128xf32>
    %cst_78 = arith.constant 1.000000e+00 : f32
    %467 = vector.broadcast %cst_78 : f32 to vector<2x128xf32>
    %468 = arith.addf %467, %466 : vector<2x128xf32>
    %469 = arith.divf %467, %468 : vector<2x128xf32>
    %470 = vector.extract_strided_slice %463 {offsets = [0, 128], sizes = [2, 128], strides = [1, 1]} : vector<2x512xf32> to vector<2x128xf32>
    %471 = arith.negf %470 : vector<2x128xf32>
    %472 = math.exp %471 : vector<2x128xf32>
    %cst_79 = arith.constant 1.000000e+00 : f32
    %473 = vector.broadcast %cst_79 : f32 to vector<2x128xf32>
    %474 = arith.addf %473, %472 : vector<2x128xf32>
    %475 = arith.divf %473, %474 : vector<2x128xf32>
    %476 = vector.extract_strided_slice %463 {offsets = [0, 256], sizes = [2, 128], strides = [1, 1]} : vector<2x512xf32> to vector<2x128xf32>
    %477 = math.tanh %476 : vector<2x128xf32>
    %478 = vector.extract_strided_slice %463 {offsets = [0, 384], sizes = [2, 128], strides = [1, 1]} : vector<2x512xf32> to vector<2x128xf32>
    %479 = arith.negf %478 : vector<2x128xf32>
    %480 = math.exp %479 : vector<2x128xf32>
    %cst_80 = arith.constant 1.000000e+00 : f32
    %481 = vector.broadcast %cst_80 : f32 to vector<2x128xf32>
    %482 = arith.addf %481, %480 : vector<2x128xf32>
    %483 = arith.divf %481, %482 : vector<2x128xf32>
    %484 = arith.mulf %475, %456 : vector<2x128xf32>
    %485 = arith.mulf %469, %477 : vector<2x128xf32>
    %486 = arith.addf %484, %485 : vector<2x128xf32>
    %487 = math.tanh %486 : vector<2x128xf32>
    %488 = arith.mulf %483, %487 : vector<2x128xf32>
    %489 = arith.truncf %488 : vector<2x128xf32> to vector<2x128xbf16>
    %cst_81 = arith.constant dense<0.000000e+00> : vector<2x512xf32>
    %490 = tpu.matmul %489, %3, %cst_81 {dimension_numbers = #tpu.dot_dimension_numbers<[1], [0], [0], [1], [0, 0, 1, 1], [], []>} : vector<2x128xbf16>, vector<128x512xbf16>, vector<2x512xf32> -> vector<2x512xf32>
    %491 = vector.broadcast %9 : vector<1x512xf32> to vector<2x512xf32>
    %492 = arith.addf %490, %491 : vector<2x512xf32>
    %cst_82 = arith.constant 0.000000e+00 : f32
    %493 = vector.broadcast %cst_82 : f32 to vector<1x128xf32>
    %494 = vector.extract_strided_slice %492 {offsets = [0, 0], sizes = [1, 512], strides = [1, 1]} : vector<2x512xf32> to vector<1x512xf32>
    %495 = arith.truncf %493 : vector<1x128xf32> to vector<1x128xbf16>
    %cst_83 = arith.constant dense<0.000000e+00> : vector<1x512xf32>
    %496 = tpu.matmul %495, %4, %cst_83 {dimension_numbers = #tpu.dot_dimension_numbers<[1], [0], [0], [1], [0, 0, 1, 1], [], []>} : vector<1x128xbf16>, vector<128x512xbf16>, vector<1x512xf32> -> vector<1x512xf32>
    %497 = arith.addf %494, %496 : vector<1x512xf32>
    %498 = vector.extract_strided_slice %497 {offsets = [0, 0], sizes = [1, 128], strides = [1, 1]} : vector<1x512xf32> to vector<1x128xf32>
    %499 = arith.negf %498 : vector<1x128xf32>
    %500 = math.exp %499 : vector<1x128xf32>
    %cst_84 = arith.constant 1.000000e+00 : f32
    %501 = vector.broadcast %cst_84 : f32 to vector<1x128xf32>
    %502 = arith.addf %501, %500 : vector<1x128xf32>
    %503 = arith.divf %501, %502 : vector<1x128xf32>
    %504 = vector.extract_strided_slice %497 {offsets = [0, 128], sizes = [1, 128], strides = [1, 1]} : vector<1x512xf32> to vector<1x128xf32>
    %505 = arith.negf %504 : vector<1x128xf32>
    %506 = math.exp %505 : vector<1x128xf32>
    %cst_85 = arith.constant 1.000000e+00 : f32
    %507 = vector.broadcast %cst_85 : f32 to vector<1x128xf32>
    %508 = arith.addf %507, %506 : vector<1x128xf32>
    %509 = arith.divf %507, %508 : vector<1x128xf32>
    %510 = vector.extract_strided_slice %497 {offsets = [0, 256], sizes = [1, 128], strides = [1, 1]} : vector<1x512xf32> to vector<1x128xf32>
    %511 = math.tanh %510 : vector<1x128xf32>
    %512 = vector.extract_strided_slice %497 {offsets = [0, 384], sizes = [1, 128], strides = [1, 1]} : vector<1x512xf32> to vector<1x128xf32>
    %513 = arith.negf %512 : vector<1x128xf32>
    %514 = math.exp %513 : vector<1x128xf32>
    %cst_86 = arith.constant 1.000000e+00 : f32
    %515 = vector.broadcast %cst_86 : f32 to vector<1x128xf32>
    %516 = arith.addf %515, %514 : vector<1x128xf32>
    %517 = arith.divf %515, %516 : vector<1x128xf32>
    %518 = arith.mulf %509, %493 : vector<1x128xf32>
    %519 = arith.mulf %503, %511 : vector<1x128xf32>
    %520 = arith.addf %518, %519 : vector<1x128xf32>
    %521 = math.tanh %520 : vector<1x128xf32>
    %522 = arith.mulf %517, %521 : vector<1x128xf32>
    %523 = vector.extract_strided_slice %492 {offsets = [1, 0], sizes = [1, 512], strides = [1, 1]} : vector<2x512xf32> to vector<1x512xf32>
    %524 = arith.truncf %522 : vector<1x128xf32> to vector<1x128xbf16>
    %cst_87 = arith.constant dense<0.000000e+00> : vector<1x512xf32>
    %525 = tpu.matmul %524, %4, %cst_87 {dimension_numbers = #tpu.dot_dimension_numbers<[1], [0], [0], [1], [0, 0, 1, 1], [], []>} : vector<1x128xbf16>, vector<128x512xbf16>, vector<1x512xf32> -> vector<1x512xf32>
    %526 = arith.addf %523, %525 : vector<1x512xf32>
    %527 = vector.extract_strided_slice %526 {offsets = [0, 0], sizes = [1, 128], strides = [1, 1]} : vector<1x512xf32> to vector<1x128xf32>
    %528 = arith.negf %527 : vector<1x128xf32>
    %529 = math.exp %528 : vector<1x128xf32>
    %cst_88 = arith.constant 1.000000e+00 : f32
    %530 = vector.broadcast %cst_88 : f32 to vector<1x128xf32>
    %531 = arith.addf %530, %529 : vector<1x128xf32>
    %532 = arith.divf %530, %531 : vector<1x128xf32>
    %533 = vector.extract_strided_slice %526 {offsets = [0, 128], sizes = [1, 128], strides = [1, 1]} : vector<1x512xf32> to vector<1x128xf32>
    %534 = arith.negf %533 : vector<1x128xf32>
    %535 = math.exp %534 : vector<1x128xf32>
    %cst_89 = arith.constant 1.000000e+00 : f32
    %536 = vector.broadcast %cst_89 : f32 to vector<1x128xf32>
    %537 = arith.addf %536, %535 : vector<1x128xf32>
    %538 = arith.divf %536, %537 : vector<1x128xf32>
    %539 = vector.extract_strided_slice %526 {offsets = [0, 256], sizes = [1, 128], strides = [1, 1]} : vector<1x512xf32> to vector<1x128xf32>
    %540 = math.tanh %539 : vector<1x128xf32>
    %541 = vector.extract_strided_slice %526 {offsets = [0, 384], sizes = [1, 128], strides = [1, 1]} : vector<1x512xf32> to vector<1x128xf32>
    %542 = arith.negf %541 : vector<1x128xf32>
    %543 = math.exp %542 : vector<1x128xf32>
    %cst_90 = arith.constant 1.000000e+00 : f32
    %544 = vector.broadcast %cst_90 : f32 to vector<1x128xf32>
    %545 = arith.addf %544, %543 : vector<1x128xf32>
    %546 = arith.divf %544, %545 : vector<1x128xf32>
    %547 = arith.mulf %538, %520 : vector<1x128xf32>
    %548 = arith.mulf %532, %540 : vector<1x128xf32>
    %549 = arith.addf %547, %548 : vector<1x128xf32>
    %550 = math.tanh %549 : vector<1x128xf32>
    %551 = arith.mulf %546, %550 : vector<1x128xf32>
    %552 = tpu.concatenate %522, %493 in 1 : vector<1x128xf32>, vector<1x128xf32> -> vector<1x256xf32>
    %553 = arith.truncf %552 : vector<1x256xf32> to vector<1x256xbf16>
    %cst_91 = arith.constant dense<0.000000e+00> : vector<1x512xf32>
    %554 = tpu.matmul %553, %5, %cst_91 {dimension_numbers = #tpu.dot_dimension_numbers<[1], [0], [0], [1], [0, 0, 1, 1], [], []>} : vector<1x256xbf16>, vector<256x512xbf16>, vector<1x512xf32> -> vector<1x512xf32>
    %555 = arith.addf %554, %10 : vector<1x512xf32>
    %556 = vector.extract_strided_slice %555 {offsets = [0, 0], sizes = [1, 128], strides = [1, 1]} : vector<1x512xf32> to vector<1x128xf32>
    %557 = arith.negf %556 : vector<1x128xf32>
    %558 = math.exp %557 : vector<1x128xf32>
    %cst_92 = arith.constant 1.000000e+00 : f32
    %559 = vector.broadcast %cst_92 : f32 to vector<1x128xf32>
    %560 = arith.addf %559, %558 : vector<1x128xf32>
    %561 = arith.divf %559, %560 : vector<1x128xf32>
    %562 = vector.extract_strided_slice %555 {offsets = [0, 128], sizes = [1, 128], strides = [1, 1]} : vector<1x512xf32> to vector<1x128xf32>
    %563 = arith.negf %562 : vector<1x128xf32>
    %564 = math.exp %563 : vector<1x128xf32>
    %cst_93 = arith.constant 1.000000e+00 : f32
    %565 = vector.broadcast %cst_93 : f32 to vector<1x128xf32>
    %566 = arith.addf %565, %564 : vector<1x128xf32>
    %567 = arith.divf %565, %566 : vector<1x128xf32>
    %568 = vector.extract_strided_slice %555 {offsets = [0, 256], sizes = [1, 128], strides = [1, 1]} : vector<1x512xf32> to vector<1x128xf32>
    %569 = math.tanh %568 : vector<1x128xf32>
    %570 = vector.extract_strided_slice %555 {offsets = [0, 384], sizes = [1, 128], strides = [1, 1]} : vector<1x512xf32> to vector<1x128xf32>
    %571 = arith.negf %570 : vector<1x128xf32>
    %572 = math.exp %571 : vector<1x128xf32>
    %cst_94 = arith.constant 1.000000e+00 : f32
    %573 = vector.broadcast %cst_94 : f32 to vector<1x128xf32>
    %574 = arith.addf %573, %572 : vector<1x128xf32>
    %575 = arith.divf %573, %574 : vector<1x128xf32>
    %576 = arith.mulf %567, %493 : vector<1x128xf32>
    %577 = arith.mulf %561, %569 : vector<1x128xf32>
    %578 = arith.addf %576, %577 : vector<1x128xf32>
    %579 = math.tanh %578 : vector<1x128xf32>
    %580 = arith.mulf %575, %579 : vector<1x128xf32>
    %581 = arith.truncf %580 : vector<1x128xf32> to vector<1x128xbf16>
    %cst_95 = arith.constant dense<0.000000e+00> : vector<1x128xf32>
    %582 = tpu.matmul %581, %6, %cst_95 {dimension_numbers = #tpu.dot_dimension_numbers<[1], [0], [0], [1], [0, 0, 1, 1], [], []>} : vector<1x128xbf16>, vector<128x128xbf16>, vector<1x128xf32> -> vector<1x128xf32>
    %583 = arith.addf %582, %11 : vector<1x128xf32>
    %c0_96 = arith.constant 0 : index
    %c0_97 = arith.constant 0 : index
    %584 = vector.load %arg3[%c0_96, %c0_97] : memref<2x128xf32, #tpu.memory_space<vmem>>, vector<1x128xf32>
    tpu.vector_store %arg3[%c0_96, %c0_97], %583 {strides = array<i32>} : memref<2x128xf32, #tpu.memory_space<vmem>>, vector<1x128xf32>,
    %585 = tpu.concatenate %551, %580 in 1 : vector<1x128xf32>, vector<1x128xf32> -> vector<1x256xf32>
    %586 = arith.truncf %585 : vector<1x256xf32> to vector<1x256xbf16>
    %cst_98 = arith.constant dense<0.000000e+00> : vector<1x512xf32>
    %587 = tpu.matmul %586, %5, %cst_98 {dimension_numbers = #tpu.dot_dimension_numbers<[1], [0], [0], [1], [0, 0, 1, 1], [], []>} : vector<1x256xbf16>, vector<256x512xbf16>, vector<1x512xf32> -> vector<1x512xf32>
    %588 = arith.addf %587, %10 : vector<1x512xf32>
    %589 = vector.extract_strided_slice %588 {offsets = [0, 0], sizes = [1, 128], strides = [1, 1]} : vector<1x512xf32> to vector<1x128xf32>
    %590 = arith.negf %589 : vector<1x128xf32>
    %591 = math.exp %590 : vector<1x128xf32>
    %cst_99 = arith.constant 1.000000e+00 : f32
    %592 = vector.broadcast %cst_99 : f32 to vector<1x128xf32>
    %593 = arith.addf %592, %591 : vector<1x128xf32>
    %594 = arith.divf %592, %593 : vector<1x128xf32>
    %595 = vector.extract_strided_slice %588 {offsets = [0, 128], sizes = [1, 128], strides = [1, 1]} : vector<1x512xf32> to vector<1x128xf32>
    %596 = arith.negf %595 : vector<1x128xf32>
    %597 = math.exp %596 : vector<1x128xf32>
    %cst_100 = arith.constant 1.000000e+00 : f32
    %598 = vector.broadcast %cst_100 : f32 to vector<1x128xf32>
    %599 = arith.addf %598, %597 : vector<1x128xf32>
    %600 = arith.divf %598, %599 : vector<1x128xf32>
    %601 = vector.extract_strided_slice %588 {offsets = [0, 256], sizes = [1, 128], strides = [1, 1]} : vector<1x512xf32> to vector<1x128xf32>
    %602 = math.tanh %601 : vector<1x128xf32>
    %603 = vector.extract_strided_slice %588 {offsets = [0, 384], sizes = [1, 128], strides = [1, 1]} : vector<1x512xf32> to vector<1x128xf32>
    %604 = arith.negf %603 : vector<1x128xf32>
    %605 = math.exp %604 : vector<1x128xf32>
    %cst_101 = arith.constant 1.000000e+00 : f32
    %606 = vector.broadcast %cst_101 : f32 to vector<1x128xf32>
    %607 = arith.addf %606, %605 : vector<1x128xf32>
    %608 = arith.divf %606, %607 : vector<1x128xf32>
    %609 = arith.mulf %600, %578 : vector<1x128xf32>
    %610 = arith.mulf %594, %602 : vector<1x128xf32>
    %611 = arith.addf %609, %610 : vector<1x128xf32>
    %612 = math.tanh %611 : vector<1x128xf32>
    %613 = arith.mulf %608, %612 : vector<1x128xf32>
    %614 = arith.truncf %613 : vector<1x128xf32> to vector<1x128xbf16>
    %cst_102 = arith.constant dense<0.000000e+00> : vector<1x128xf32>
    %615 = tpu.matmul %614, %6, %cst_102 {dimension_numbers = #tpu.dot_dimension_numbers<[1], [0], [0], [1], [0, 0, 1, 1], [], []>} : vector<1x128xbf16>, vector<128x128xbf16>, vector<1x128xf32> -> vector<1x128xf32>
    %616 = arith.addf %615, %11 : vector<1x128xf32>
    %c1 = arith.constant 1 : index
    %c0_103 = arith.constant 0 : index
    %617 = vector.load %arg3[%c1, %c0_103] : memref<2x128xf32, #tpu.memory_space<vmem>>, vector<1x128xf32>
    tpu.vector_store %arg3[%c1, %c0_103], %616 {strides = array<i32>} : memref<2x128xf32, #tpu.memory_space<vmem>>, vector<1x128xf32>,
    return
  }
}

</mosaic_0001>

<llo_original>
// kernel: forward.1
$region0: #{forward.1}
  #allocation0 [shape = 'u32[]', space=smem, size = 0x4, offset = 0x4, fixed_abs, tag = 'smem constant byte address 0x4 - core index']
  #allocation1 [shape = 'u32[144,128]{1,0:T(1,128)}', space=vmem, size = 0x12000, scoped, tag = 'internal scratch']
  %s0 = inlined_call_operand.vmem [shape: bf16[16,16], index: 0, kind: input, shape index: {}]
  %s1 = inlined_call_operand.hbm [shape: bf16[1040,512], index: 1, kind: input, shape index: {}]
  %s2 = inlined_call_operand.hbm [shape: f32[40,512], index: 2, kind: input, shape index: {}]
  %s3 = inlined_call_operand.vmem [shape: f32[2,128], index: 3, kind: output, shape index: {}]
  %s4 = sld [smem:[#allocation0]]
  $region30: #{forward.1} parent=0
    _
  %s6 = ssub.s32 1, %s4
  %s7 = scalar_select 0, %s6, %s4
  $region1: #{forward.1} parent=0
    #allocation2 [shape = 'u8[1064960]{0}', space=vmem, size = 0x104000, scoped, tag = 'input window, operand 1, single buffered']
    #allocation3 [shape = 's32[1]{0}', space=sflag, size = 0x4, scoped, tag = 'scoped memory for forward.1']
    #allocation4 [shape = 'u8[81920]{0}', space=vmem, size = 0x14000, scoped, tag = 'input window, operand 2, single buffered']
    #allocation5 [shape = 's32[1]{0}', space=sflag, size = 0x4, scoped, tag = 'scoped memory for forward.1']
    %8 = vsyncpa [#allocation3], 0
    %9 = vsyncpa [#allocation5], 0
    // Predicated region
    $region2: #{forward.1} parent=1 // pred_check
      _
    $region3: #{forward.1} parent=1 // pred_check_branch
      %11 = sbr.rel (0) target = $region5
    $region4: #{forward.1} parent=1 // pred_region
      _
    $region5: #{forward.1} parent=1 // pred_fallthru
      _
    // Predicated region
    $region6: #{forward.1} parent=1 // pred_check
      _
    $region7: #{forward.1} parent=1 // pred_check_branch
      %13 = sbr.rel (0) target = $region9
    $region8: #{forward.1} parent=1 // pred_region
      %s15 = ssub.s32 33280, 33280
      %16 = vsyncadd [#allocation3], %s15
      %s17 = sshll.u32 [#allocation2], 4
      %s18 = int_to_ptr.vmem [resolvable:$true] %s17
      %23 = dma.hbm_to_vmem [thread:$0]  %s1, 33280, %s18, [#allocation3], 256, 256, 16
    $region9: #{forward.1} parent=1 // pred_fallthru
      _
    // Predicated region
    $region10: #{forward.1} parent=1 // pred_check
      _
    $region11: #{forward.1} parent=1 // pred_check_branch
      %25 = sbr.rel (0) target = $region13
    $region12: #{forward.1} parent=1 // pred_region
      %s27 = ssub.s32 2560, 2560
      %28 = vsyncadd [#allocation5], %s27
      %s29 = sshll.u32 [#allocation4], 4
      %s30 = int_to_ptr.vmem [resolvable:$true] %s29
      %35 = dma.hbm_to_vmem [thread:$0]  %s2, 2560, %s30, [#allocation5], 512, 512, 32
    $region13: #{forward.1} parent=1 // pred_fallthru
      _
    // Predicated region
    $region14: #{forward.1} parent=1 // pred_check
      _
    $region15: #{forward.1} parent=1 // pred_check_branch
      %37 = sbr.rel (0) target = $region17
    $region16: #{forward.1} parent=1 // pred_region
      %38 = dma.done [#allocation3], 33280
    $region17: #{forward.1} parent=1 // pred_fallthru
      _
    // Predicated region
    $region18: #{forward.1} parent=1 // pred_check
      _
    $region19: #{forward.1} parent=1 // pred_check_branch
      %40 = sbr.rel (0) target = $region21
    $region20: #{forward.1} parent=1 // pred_region
      %41 = dma.done [#allocation5], 2560
    $region21: #{forward.1} parent=1 // pred_fallthru
      _
    %v43 = vld [vmem:[#allocation2] sm:$0xff]
    %v44 = vld [vmem:[#allocation2 + $0x8] sm:$0xff]
    %v45 = vld [vmem:[#allocation2 + $0x10] sm:$0xff]
    %v46 = vld [vmem:[#allocation2 + $0x18] sm:$0xff]
    %v47 = vld [vmem:[#allocation2 + $0x20] sm:$0xff]
    %v48 = vld [vmem:[#allocation2 + $0x28] sm:$0xff]
    %v49 = vld [vmem:[#allocation2 + $0x30] sm:$0xff]
    %v50 = vld [vmem:[#allocation2 + $0x38] sm:$0xff]
    %v51 = vld [vmem:[#allocation2 + $0x40] sm:$0xff]
    %v52 = vld [vmem:[#allocation2 + $0x48] sm:$0xff]
    %v53 = vld [vmem:[#allocation2 + $0x50] sm:$0xff]
    %v54 = vld [vmem:[#allocation2 + $0x58] sm:$0xff]
    %v55 = vld [vmem:[#allocation2 + $0x60] sm:$0xff]
    %v56 = vld [vmem:[#allocation2 + $0x68] sm:$0xff]
    %v57 = vld [vmem:[#allocation2 + $0x70] sm:$0xff]
    %v58 = vld [vmem:[#allocation2 + $0x78] sm:$0xff]
    %v59 = vld [vmem:[#allocation2 + $0x80] sm:$0xff]
    %v60 = vld [vmem:[#allocation2 + $0x88] sm:$0xff]
    %v61 = vld [vmem:[#allocation2 + $0x90] sm:$0xff]
    %v62 = vld [vmem:[#allocation2 + $0x98] sm:$0xff]
    %v63 = vld [vmem:[#allocation2 + $0xa0] sm:$0xff]
    %v64 = vld [vmem:[#allocation2 + $0xa8] sm:$0xff]
    %v65 = vld [vmem:[#allocation2 + $0xb0] sm:$0xff]
    %v66 = vld [vmem:[#allocation2 + $0xb8] sm:$0xff]
    %v67 = vld [vmem:[#allocation2 + $0xc0] sm:$0xff]
    %v68 = vld [vmem:[#allocation2 + $0xc8] sm:$0xff]
    %v69 = vld [vmem:[#allocation2 + $0xd0] sm:$0xff]
    %v70 = vld [vmem:[#allocation2 + $0xd8] sm:$0xff]
    %v71 = vld [vmem:[#allocation2 + $0xe0] sm:$0xff]
    %v72 = vld [vmem:[#allocation2 + $0xe8] sm:$0xff]
    %v73 = vld [vmem:[#allocation2 + $0xf0] sm:$0xff]
    %v74 = vld [vmem:[#allocation2 + $0xf8] sm:$0xff]
    %v75 = vld [vmem:[#allocation2 + $0x100] sm:$0xff]
    %v76 = vld [vmem:[#allocation2 + $0x108] sm:$0xff]
    %v77 = vld [vmem:[#allocation2 + $0x110] sm:$0xff]
    %v78 = vld [vmem:[#allocation2 + $0x118] sm:$0xff]
    %v79 = vld [vmem:[#allocation2 + $0x120] sm:$0xff]
    %v80 = vld [vmem:[#allocation2 + $0x128] sm:$0xff]
    %v81 = vld [vmem:[#allocation2 + $0x130] sm:$0xff]
    %v82 = vld [vmem:[#allocation2 + $0x138] sm:$0xff]
    %v83 = vld [vmem:[#allocation2 + $0x140] sm:$0xff]
    %v84 = vld [vmem:[#allocation2 + $0x148] sm:$0xff]
    %v85 = vld [vmem:[#allocation2 + $0x150] sm:$0xff]
    %v86 = vld [vmem:[#allocation2 + $0x158] sm:$0xff]
    %v87 = vld [vmem:[#allocation2 + $0x160] sm:$0xff]
    %v88 = vld [vmem:[#allocation2 + $0x168] sm:$0xff]
    %v89 = vld [vmem:[#allocation2 + $0x170] sm:$0xff]
    %v90 = vld [vmem:[#allocation2 + $0x178] sm:$0xff]
    %v91 = vld [vmem:[#allocation2 + $0x180] sm:$0xff]
    %v92 = vld [vmem:[#allocation2 + $0x188] sm:$0xff]
    %v93 = vld [vmem:[#allocation2 + $0x190] sm:$0xff]
    %v94 = vld [vmem:[#allocation2 + $0x198] sm:$0xff]
    %v95 = vld [vmem:[#allocation2 + $0x1a0] sm:$0xff]
    %v96 = vld [vmem:[#allocation2 + $0x1a8] sm:$0xff]
    %v97 = vld [vmem:[#allocation2 + $0x1b0] sm:$0xff]
    %v98 = vld [vmem:[#allocation2 + $0x1b8] sm:$0xff]
    %v99 = vld [vmem:[#allocation2 + $0x1c0] sm:$0xff]
    %v100 = vld [vmem:[#allocation2 + $0x1c8] sm:$0xff]
    %v101 = vld [vmem:[#allocation2 + $0x1d0] sm:$0xff]
    %v102 = vld [vmem:[#allocation2 + $0x1d8] sm:$0xff]
    %v103 = vld [vmem:[#allocation2 + $0x1e0] sm:$0xff]
    %v104 = vld [vmem:[#allocation2 + $0x1e8] sm:$0xff]
    %v105 = vld [vmem:[#allocation2 + $0x1f0] sm:$0xff]
    %v106 = vld [vmem:[#allocation2 + $0x1f8] sm:$0xff]
    %v107 = vld [vmem:[#allocation2 + $0x200] sm:$0xff]
    %v108 = vld [vmem:[#allocation2 + $0x208] sm:$0xff]
    %v109 = vld [vmem:[#allocation2 + $0x210] sm:$0xff]
    %v110 = vld [vmem:[#allocation2 + $0x218] sm:$0xff]
    %v111 = vld [vmem:[#allocation2 + $0x220] sm:$0xff]
    %v112 = vld [vmem:[#allocation2 + $0x228] sm:$0xff]
    %v113 = vld [vmem:[#allocation2 + $0x230] sm:$0xff]
    %v114 = vld [vmem:[#allocation2 + $0x238] sm:$0xff]
    %v115 = vld [vmem:[#allocation2 + $0x240] sm:$0xff]
    %v116 = vld [vmem:[#allocation2 + $0x248] sm:$0xff]
    %v117 = vld [vmem:[#allocation2 + $0x250] sm:$0xff]
    %v118 = vld [vmem:[#allocation2 + $0x258] sm:$0xff]
    %v119 = vld [vmem:[#allocation2 + $0x260] sm:$0xff]
    %v120 = vld [vmem:[#allocation2 + $0x268] sm:$0xff]
    %v121 = vld [vmem:[#allocation2 + $0x270] sm:$0xff]
    %v122 = vld [vmem:[#allocation2 + $0x278] sm:$0xff]
    %v123 = vld [vmem:[#allocation2 + $0x280] sm:$0xff]
    %v124 = vld [vmem:[#allocation2 + $0x288] sm:$0xff]
    %v125 = vld [vmem:[#allocation2 + $0x290] sm:$0xff]
    %v126 = vld [vmem:[#allocation2 + $0x298] sm:$0xff]
    %v127 = vld [vmem:[#allocation2 + $0x2a0] sm:$0xff]
    %v128 = vld [vmem:[#allocation2 + $0x2a8] sm:$0xff]
    %v129 = vld [vmem:[#allocation2 + $0x2b0] sm:$0xff]
    %v130 = vld [vmem:[#allocation2 + $0x2b8] sm:$0xff]
    %v131 = vld [vmem:[#allocation2 + $0x2c0] sm:$0xff]
    %v132 = vld [vmem:[#allocation2 + $0x2c8] sm:$0xff]
    %v133 = vld [vmem:[#allocation2 + $0x2d0] sm:$0xff]
    %v134 = vld [vmem:[#allocation2 + $0x2d8] sm:$0xff]
    %v135 = vld [vmem:[#allocation2 + $0x2e0] sm:$0xff]
    %v136 = vld [vmem:[#allocation2 + $0x2e8] sm:$0xff]
    %v137 = vld [vmem:[#allocation2 + $0x2f0] sm:$0xff]
    %v138 = vld [vmem:[#allocation2 + $0x2f8] sm:$0xff]
    %v139 = vld [vmem:[#allocation2 + $0x300] sm:$0xff]
    %v140 = vld [vmem:[#allocation2 + $0x308] sm:$0xff]
    %v141 = vld [vmem:[#allocation2 + $0x310] sm:$0xff]
    %v142 = vld [vmem:[#allocation2 + $0x318] sm:$0xff]
    %v143 = vld [vmem:[#allocation2 + $0x320] sm:$0xff]
    %v144 = vld [vmem:[#allocation2 + $0x328] sm:$0xff]
    %v145 = vld [vmem:[#allocation2 + $0x330] sm:$0xff]
    %v146 = vld [vmem:[#allocation2 + $0x338] sm:$0xff]
    %v147 = vld [vmem:[#allocation2 + $0x340] sm:$0xff]
    %v148 = vld [vmem:[#allocation2 + $0x348] sm:$0xff]
    %v149 = vld [vmem:[#allocation2 + $0x350] sm:$0xff]
    %v150 = vld [vmem:[#allocation2 + $0x358] sm:$0xff]
    %v151 = vld [vmem:[#allocation2 + $0x360] sm:$0xff]
    %v152 = vld [vmem:[#allocation2 + $0x368] sm:$0xff]
    %v153 = vld [vmem:[#allocation2 + $0x370] sm:$0xff]
    %v154 = vld [vmem:[#allocation2 + $0x378] sm:$0xff]
    %v155 = vld [vmem:[#allocation2 + $0x380] sm:$0xff]
    %v156 = vld [vmem:[#allocation2 + $0x388] sm:$0xff]
    %v157 = vld [vmem:[#allocation2 + $0x390] sm:$0xff]
    %v158 = vld [vmem:[#allocation2 + $0x398] sm:$0xff]
    %v159 = vld [vmem:[#allocation2 + $0x3a0] sm:$0xff]
    %v160 = vld [vmem:[#allocation2 + $0x3a8] sm:$0xff]
    %v161 = vld [vmem:[#allocation2 + $0x3b0] sm:$0xff]
    %v162 = vld [vmem:[#allocation2 + $0x3b8] sm:$0xff]
    %v163 = vld [vmem:[#allocation2 + $0x3c0] sm:$0xff]
    %v164 = vld [vmem:[#allocation2 + $0x3c8] sm:$0xff]
    %v165 = vld [vmem:[#allocation2 + $0x3d0] sm:$0xff]
    %v166 = vld [vmem:[#allocation2 + $0x3d8] sm:$0xff]
    %v167 = vld [vmem:[#allocation2 + $0x3e0] sm:$0xff]
    %v168 = vld [vmem:[#allocation2 + $0x3e8] sm:$0xff]
    %v169 = vld [vmem:[#allocation2 + $0x3f0] sm:$0xff]
    %v170 = vld [vmem:[#allocation2 + $0x3f8] sm:$0xff]
    %v171 = vld [vmem:[#allocation2 + $0x400] sm:$0xff]
    %v172 = vld [vmem:[#allocation2 + $0x408] sm:$0xff]
    %v173 = vld [vmem:[#allocation2 + $0x410] sm:$0xff]
    %v174 = vld [vmem:[#allocation2 + $0x418] sm:$0xff]
    %v175 = vld [vmem:[#allocation2 + $0x420] sm:$0xff]
    %v176 = vld [vmem:[#allocation2 + $0x428] sm:$0xff]
    %v177 = vld [vmem:[#allocation2 + $0x430] sm:$0xff]
    %v178 = vld [vmem:[#allocation2 + $0x438] sm:$0xff]
    %v179 = vld [vmem:[#allocation2 + $0x440] sm:$0xff]
    %v180 = vld [vmem:[#allocation2 + $0x448] sm:$0xff]
    %v181 = vld [vmem:[#allocation2 + $0x450] sm:$0xff]
    %v182 = vld [vmem:[#allocation2 + $0x458] sm:$0xff]
    %v183 = vld [vmem:[#allocation2 + $0x460] sm:$0xff]
    %v184 = vld [vmem:[#allocation2 + $0x468] sm:$0xff]
    %v185 = vld [vmem:[#allocation2 + $0x470] sm:$0xff]
    %v186 = vld [vmem:[#allocation2 + $0x478] sm:$0xff]
    %v187 = vld [vmem:[#allocation2 + $0x480] sm:$0xff]
    %v188 = vld [vmem:[#allocation2 + $0x488] sm:$0xff]
    %v189 = vld [vmem:[#allocation2 + $0x490] sm:$0xff]
    %v190 = vld [vmem:[#allocation2 + $0x498] sm:$0xff]
    %v191 = vld [vmem:[#allocation2 + $0x4a0] sm:$0xff]
    %v192 = vld [vmem:[#allocation2 + $0x4a8] sm:$0xff]
    %v193 = vld [vmem:[#allocation2 + $0x4b0] sm:$0xff]
    %v194 = vld [vmem:[#allocation2 + $0x4b8] sm:$0xff]
    %v195 = vld [vmem:[#allocation2 + $0x4c0] sm:$0xff]
    %v196 = vld [vmem:[#allocation2 + $0x4c8] sm:$0xff]
    %v197 = vld [vmem:[#allocation2 + $0x4d0] sm:$0xff]
    %v198 = vld [vmem:[#allocation2 + $0x4d8] sm:$0xff]
    %v199 = vld [vmem:[#allocation2 + $0x4e0] sm:$0xff]
    %v200 = vld [vmem:[#allocation2 + $0x4e8] sm:$0xff]
    %v201 = vld [vmem:[#allocation2 + $0x4f0] sm:$0xff]
    %v202 = vld [vmem:[#allocation2 + $0x4f8] sm:$0xff]
    %v203 = vld [vmem:[#allocation2 + $0x500] sm:$0xff]
    %v204 = vld [vmem:[#allocation2 + $0x508] sm:$0xff]
    %v205 = vld [vmem:[#allocation2 + $0x510] sm:$0xff]
    %v206 = vld [vmem:[#allocation2 + $0x518] sm:$0xff]
    %v207 = vld [vmem:[#allocation2 + $0x520] sm:$0xff]
    %v208 = vld [vmem:[#allocation2 + $0x528] sm:$0xff]
    %v209 = vld [vmem:[#allocation2 + $0x530] sm:$0xff]
    %v210 = vld [vmem:[#allocation2 + $0x538] sm:$0xff]
    %v211 = vld [vmem:[#allocation2 + $0x540] sm:$0xff]
    %v212 = vld [vmem:[#allocation2 + $0x548] sm:$0xff]
    %v213 = vld [vmem:[#allocation2 + $0x550] sm:$0xff]
    %v214 = vld [vmem:[#allocation2 + $0x558] sm:$0xff]
    %v215 = vld [vmem:[#allocation2 + $0x560] sm:$0xff]
    %v216 = vld [vmem:[#allocation2 + $0x568] sm:$0xff]
    %v217 = vld [vmem:[#allocation2 + $0x570] sm:$0xff]
    %v218 = vld [vmem:[#allocation2 + $0x578] sm:$0xff]
    %v219 = vld [vmem:[#allocation2 + $0x580] sm:$0xff]
    %v220 = vld [vmem:[#allocation2 + $0x588] sm:$0xff]
    %v221 = vld [vmem:[#allocation2 + $0x590] sm:$0xff]
    %v222 = vld [vmem:[#allocation2 + $0x598] sm:$0xff]
    %v223 = vld [vmem:[#allocation2 + $0x5a0] sm:$0xff]
    %v224 = vld [vmem:[#allocation2 + $0x5a8] sm:$0xff]
    %v225 = vld [vmem:[#allocation2 + $0x5b0] sm:$0xff]
    %v226 = vld [vmem:[#allocation2 + $0x5b8] sm:$0xff]
    %v227 = vld [vmem:[#allocation2 + $0x5c0] sm:$0xff]
    %v228 = vld [vmem:[#allocation2 + $0x5c8] sm:$0xff]
    %v229 = vld [vmem:[#allocation2 + $0x5d0] sm:$0xff]
    %v230 = vld [vmem:[#allocation2 + $0x5d8] sm:$0xff]
    %v231 = vld [vmem:[#allocation2 + $0x5e0] sm:$0xff]
    %v232 = vld [vmem:[#allocation2 + $0x5e8] sm:$0xff]
    %v233 = vld [vmem:[#allocation2 + $0x5f0] sm:$0xff]
    %v234 = vld [vmem:[#allocation2 + $0x5f8] sm:$0xff]
    %v235 = vld [vmem:[#allocation2 + $0x600] sm:$0xff]
    %v236 = vld [vmem:[#allocation2 + $0x608] sm:$0xff]
    %v237 = vld [vmem:[#allocation2 + $0x610] sm:$0xff]
    %v238 = vld [vmem:[#allocation2 + $0x618] sm:$0xff]
    %v239 = vld [vmem:[#allocation2 + $0x620] sm:$0xff]
    %v240 = vld [vmem:[#allocation2 + $0x628] sm:$0xff]
    %v241 = vld [vmem:[#allocation2 + $0x630] sm:$0xff]
    %v242 = vld [vmem:[#allocation2 + $0x638] sm:$0xff]
    %v243 = vld [vmem:[#allocation2 + $0x640] sm:$0xff]
    %v244 = vld [vmem:[#allocation2 + $0x648] sm:$0xff]
    %v245 = vld [vmem:[#allocation2 + $0x650] sm:$0xff]
    %v246 = vld [vmem:[#allocation2 + $0x658] sm:$0xff]
    %v247 = vld [vmem:[#allocation2 + $0x660] sm:$0xff]
    %v248 = vld [vmem:[#allocation2 + $0x668] sm:$0xff]
    %v249 = vld [vmem:[#allocation2 + $0x670] sm:$0xff]
    %v250 = vld [vmem:[#allocation2 + $0x678] sm:$0xff]
    %v251 = vld [vmem:[#allocation2 + $0x680] sm:$0xff]
    %v252 = vld [vmem:[#allocation2 + $0x688] sm:$0xff]
    %v253 = vld [vmem:[#allocation2 + $0x690] sm:$0xff]
    %v254 = vld [vmem:[#allocation2 + $0x698] sm:$0xff]
    %v255 = vld [vmem:[#allocation2 + $0x6a0] sm:$0xff]
    %v256 = vld [vmem:[#allocation2 + $0x6a8] sm:$0xff]
    %v257 = vld [vmem:[#allocation2 + $0x6b0] sm:$0xff]
    %v258 = vld [vmem:[#allocation2 + $0x6b8] sm:$0xff]
    %v259 = vld [vmem:[#allocation2 + $0x6c0] sm:$0xff]
    %v260 = vld [vmem:[#allocation2 + $0x6c8] sm:$0xff]
    %v261 = vld [vmem:[#allocation2 + $0x6d0] sm:$0xff]
    %v262 = vld [vmem:[#allocation2 + $0x6d8] sm:$0xff]
    %v263 = vld [vmem:[#allocation2 + $0x6e0] sm:$0xff]
    %v264 = vld [vmem:[#allocation2 + $0x6e8] sm:$0xff]
    %v265 = vld [vmem:[#allocation2 + $0x6f0] sm:$0xff]
    %v266 = vld [vmem:[#allocation2 + $0x6f8] sm:$0xff]
    %v267 = vld [vmem:[#allocation2 + $0x700] sm:$0xff]
    %v268 = vld [vmem:[#allocation2 + $0x708] sm:$0xff]
    %v269 = vld [vmem:[#allocation2 + $0x710] sm:$0xff]
    %v270 = vld [vmem:[#allocation2 + $0x718] sm:$0xff]
    %v271 = vld [vmem:[#allocation2 + $0x720] sm:$0xf]
    %v272 = vld [vmem:[#allocation2 + $0x730] sm:$0xf]
    %v273 = vld [vmem:[#allocation2 + $0x740] sm:$0xf]
    %v274 = vld [vmem:[#allocation2 + $0x750] sm:$0xf]
    %v275 = vld [vmem:[#allocation2 + $0x760] sm:$0xf]
    %v276 = vld [vmem:[#allocation2 + $0x770] sm:$0xf]
    %v277 = vld [vmem:[#allocation2 + $0x780] sm:$0xf]
    %v278 = vld [vmem:[#allocation2 + $0x790] sm:$0xf]
    %v279 = vld [vmem:[#allocation2 + $0x7a0] sm:$0xf]
    %v280 = vld [vmem:[#allocation2 + $0x7b0] sm:$0xf]
    %v281 = vld [vmem:[#allocation2 + $0x7c0] sm:$0xf]
    %v282 = vld [vmem:[#allocation2 + $0x7d0] sm:$0xf]
    %v283 = vld [vmem:[#allocation2 + $0x7e0] sm:$0xf]
    %v284 = vld [vmem:[#allocation2 + $0x7f0] sm:$0xf]
    %v285 = vld [vmem:[#allocation2 + $0x800] sm:$0xf]
    %v286 = vld [vmem:[#allocation2 + $0x810] sm:$0xf]
    %v287 = vld [vmem:[#allocation4] ss:$8 sm:$0xf]
    %s288 = scalar_lea.vmem [#allocation4], 32
    %v289 = vld [vmem:[%s288] ss:$8 sm:$0xf]
    %s290 = scalar_lea.vmem [#allocation4], 64
    %v291 = vld [vmem:[%s290] ss:$8 sm:$0xf]
    %s292 = scalar_lea.vmem [#allocation4], 96
    %v293 = vld [vmem:[%s292] ss:$8 sm:$0xf]
    %v294 = vld [vmem:[#allocation4 + $0x80] ss:$0 sm:$0xff]
    %v295 = vld [vmem:[%s0] sm:$0xf]
    %v296 = vld [vmem:[%s0 + $0x4] sm:$0xf]
    %v298 = vlaneseq
    %v299 = vshrl.u32 %v298, 7
    %v300 = vsub.s32 0, %v299
    %v301 = vrot.slane %v287, %v300
    %v302 = vlaneseq
    %v303 = vshrl.u32 %v302, 7
    %v304 = vsub.s32 1, %v303
    %v305 = vrot.slane %v287, %v304
    %v306 = vlaneseq
    %v307 = vshrl.u32 %v306, 7
    %v308 = vsub.s32 2, %v307
    %v309 = vrot.slane %v287, %v308
    %v310 = vlaneseq
    %v311 = vshrl.u32 %v310, 7
    %v312 = vsub.s32 3, %v311
    %v313 = vrot.slane %v287, %v312
    %v320 = vunpack.c.l.b16 %v295
    %v321 = vunpack.c.l.b16 %v296
    %v322 = vpack.c.b16 %v321, %v320
    %v327 = vunpack.c.l.b16 %v43
    %v328 = vunpack.c.h.b16 %v43
    %v329 = vunpack.c.l.b16 %v44
    %v330 = vunpack.c.h.b16 %v44
    %v331 = vunpack.c.l.b16 %v45
    %v332 = vunpack.c.h.b16 %v45
    %v333 = vunpack.c.l.b16 %v46
    %v334 = vunpack.c.h.b16 %v46
    %v335 = vpack.c.b16 %v331, %v327
    %v336 = vpack.c.b16 %v332, %v328
    %v337 = vpack.c.b16 %v333, %v329
    %v338 = vpack.c.b16 %v334, %v330
    %vm343 = vcmask 130048
    %v345 = vsel %vm343, %v322, 0
    %347 = vmatprep.subr.bf16.mxu0 %v336
    %348 = vmatpush1.bf16.msra.mxu0 %v335
    %349 = vmatprep.subr.bf16.mxu0 0
    %350 = vmatpush1.bf16.msra.mxu0 0
    %351 = vmatprep.subr.bf16.mxu0 0
    %352 = vmatpush1.bf16.msra.mxu0 0
    %353 = vmatprep.subr.bf16.mxu0 0
    %354 = vmatpush1.bf16.msra.mxu0 0
    %355 = vmatprep.subr.bf16.mxu0 0
    %356 = vmatpush1.bf16.msra.mxu0 0
    %357 = vmatprep.subr.bf16.mxu0 0
    %358 = vmatpush1.bf16.msra.mxu0 0
    %359 = vmatprep.subr.bf16.mxu0 0
    %360 = vmatpush1.bf16.msra.mxu0 0
    %361 = vmatprep.subr.bf16.mxu0 0
    %362 = vmatpush1.bf16.msra.mxu0 0
    %363 = vmatprep.subr.bf16.mxu0 0
    %364 = vmatpush1.bf16.msra.mxu0 0
    %365 = vmatprep.subr.bf16.mxu0 0
    %366 = vmatpush1.bf16.msra.mxu0 0
    %367 = vmatprep.subr.bf16.mxu0 0
    %368 = vmatpush1.bf16.msra.mxu0 0
    %369 = vmatprep.subr.bf16.mxu0 0
    %370 = vmatpush1.bf16.msra.mxu0 0
    %371 = vmatprep.subr.bf16.mxu0 0
    %372 = vmatpush1.bf16.msra.mxu0 0
    %373 = vmatprep.subr.bf16.mxu0 0
    %374 = vmatpush1.bf16.msra.mxu0 0
    %375 = vmatprep.subr.bf16.mxu0 0
    %376 = vmatpush1.bf16.msra.mxu0 0
    %377 = vmatprep.subr.bf16.mxu0 0
    %378 = vmatpush1.bf16.msra.mxu0 0
    %379 = vmatprep.mubr.bf16.mxu0 0
    %380 = vmatmul.mubr.bf16.gmra.mrb[0].mxu0 %v345
    %v381 = vpop.f32.mrb[0].mxu0
    %v382 = vadd.f32 %v301, %v381
    %v383 = vpop.f32.mrb[0].mxu0
    %v384 = vadd.f32 %v305, %v383
    %v385 = vpop.f32.mrb[0].mxu0
    %v386 = vadd.f32 %v301, %v385
    %v387 = vpop.f32.mrb[0].mxu0
    %v388 = vadd.f32 %v305, %v387
    %389 = vdwg.mxu0
    %390 = vmatprep.subr.bf16.mxu0 %v338
    %391 = vmatpush1.bf16.msra.mxu0 %v337
    %392 = vmatprep.subr.bf16.mxu0 0
    %393 = vmatpush1.bf16.msra.mxu0 0
    %394 = vmatprep.subr.bf16.mxu0 0
    %395 = vmatpush1.bf16.msra.mxu0 0
    %396 = vmatprep.subr.bf16.mxu0 0
    %397 = vmatpush1.bf16.msra.mxu0 0
    %398 = vmatprep.subr.bf16.mxu0 0
    %399 = vmatpush1.bf16.msra.mxu0 0
    %400 = vmatprep.subr.bf16.mxu0 0
    %401 = vmatpush1.bf16.msra.mxu0 0
    %402 = vmatprep.subr.bf16.mxu0 0
    %403 = vmatpush1.bf16.msra.mxu0 0
    %404 = vmatprep.subr.bf16.mxu0 0
    %405 = vmatpush1.bf16.msra.mxu0 0
    %406 = vmatprep.subr.bf16.mxu0 0
    %407 = vmatpush1.bf16.msra.mxu0 0
    %408 = vmatprep.subr.bf16.mxu0 0
    %409 = vmatpush1.bf16.msra.mxu0 0
    %410 = vmatprep.subr.bf16.mxu0 0
    %411 = vmatpush1.bf16.msra.mxu0 0
    %412 = vmatprep.subr.bf16.mxu0 0
    %413 = vmatpush1.bf16.msra.mxu0 0
    %414 = vmatprep.subr.bf16.mxu0 0
    %415 = vmatpush1.bf16.msra.mxu0 0
    %416 = vmatprep.subr.bf16.mxu0 0
    %417 = vmatpush1.bf16.msra.mxu0 0
    %418 = vmatprep.subr.bf16.mxu0 0
    %419 = vmatpush1.bf16.msra.mxu0 0
    %420 = vmatprep.subr.bf16.mxu0 0
    %421 = vmatpush1.bf16.msra.mxu0 0
    %422 = vmatprep.mubr.bf16.mxu0 0
    %423 = vmatmul.mubr.bf16.gmra.mrb[0].mxu0 %v345
    %v424 = vpop.f32.mrb[0].mxu0
    %v425 = vadd.f32 %v309, %v424
    %v426 = vpop.f32.mrb[0].mxu0
    %v427 = vadd.f32 %v313, %v426
    %v428 = vpop.f32.mrb[0].mxu0
    %v429 = vadd.f32 %v309, %v428
    %v430 = vpop.f32.mrb[0].mxu0
    %v431 = vadd.f32 %v313, %v430
    %432 = vdwg.mxu0
    %v465 = vunpack.c.l.b16 %v47
    %v466 = vunpack.c.h.b16 %v47
    %v467 = vunpack.c.l.b16 %v48
    %v468 = vunpack.c.h.b16 %v48
    %v469 = vunpack.c.l.b16 %v49
    %v470 = vunpack.c.h.b16 %v49
    %v471 = vunpack.c.l.b16 %v50
    %v472 = vunpack.c.h.b16 %v50
    %v473 = vunpack.c.l.b16 %v51
    %v474 = vunpack.c.h.b16 %v51
    %v475 = vunpack.c.l.b16 %v52
    %v476 = vunpack.c.h.b16 %v52
    %v477 = vunpack.c.l.b16 %v53
    %v478 = vunpack.c.h.b16 %v53
    %v479 = vunpack.c.l.b16 %v54
    %v480 = vunpack.c.h.b16 %v54
    %v481 = vunpack.c.l.b16 %v55
    %v482 = vunpack.c.h.b16 %v55
    %v483 = vunpack.c.l.b16 %v56
    %v484 = vunpack.c.h.b16 %v56
    %v485 = vunpack.c.l.b16 %v57
    %v486 = vunpack.c.h.b16 %v57
    %v487 = vunpack.c.l.b16 %v58
    %v488 = vunpack.c.h.b16 %v58
    %v489 = vunpack.c.l.b16 %v59
    %v490 = vunpack.c.h.b16 %v59
    %v491 = vunpack.c.l.b16 %v60
    %v492 = vunpack.c.h.b16 %v60
    %v493 = vunpack.c.l.b16 %v61
    %v494 = vunpack.c.h.b16 %v61
    %v495 = vunpack.c.l.b16 %v62
    %v496 = vunpack.c.h.b16 %v62
    %v497 = vunpack.c.l.b16 %v63
    %v498 = vunpack.c.h.b16 %v63
    %v499 = vunpack.c.l.b16 %v64
    %v500 = vunpack.c.h.b16 %v64
    %v501 = vunpack.c.l.b16 %v65
    %v502 = vunpack.c.h.b16 %v65
    %v503 = vunpack.c.l.b16 %v66
    %v504 = vunpack.c.h.b16 %v66
    %v505 = vunpack.c.l.b16 %v67
    %v506 = vunpack.c.h.b16 %v67
    %v507 = vunpack.c.l.b16 %v68
    %v508 = vunpack.c.h.b16 %v68
    %v509 = vunpack.c.l.b16 %v69
    %v510 = vunpack.c.h.b16 %v69
    %v511 = vunpack.c.l.b16 %v70
    %v512 = vunpack.c.h.b16 %v70
    %v513 = vunpack.c.l.b16 %v71
    %v514 = vunpack.c.h.b16 %v71
    %v515 = vunpack.c.l.b16 %v72
    %v516 = vunpack.c.h.b16 %v72
    %v517 = vunpack.c.l.b16 %v73
    %v518 = vunpack.c.h.b16 %v73
    %v519 = vunpack.c.l.b16 %v74
    %v520 = vunpack.c.h.b16 %v74
    %v521 = vunpack.c.l.b16 %v75
    %v522 = vunpack.c.h.b16 %v75
    %v523 = vunpack.c.l.b16 %v76
    %v524 = vunpack.c.h.b16 %v76
    %v525 = vunpack.c.l.b16 %v77
    %v526 = vunpack.c.h.b16 %v77
    %v527 = vunpack.c.l.b16 %v78
    %v528 = vunpack.c.h.b16 %v78
    %v529 = vpack.c.b16 %v469, %v465
    %v530 = vpack.c.b16 %v470, %v466
    %v531 = vpack.c.b16 %v471, %v467
    %v532 = vpack.c.b16 %v472, %v468
    %v533 = vpack.c.b16 %v477, %v473
    %v534 = vpack.c.b16 %v478, %v474
    %v535 = vpack.c.b16 %v479, %v475
    %v536 = vpack.c.b16 %v480, %v476
    %v537 = vpack.c.b16 %v485, %v481
    %v538 = vpack.c.b16 %v486, %v482
    %v539 = vpack.c.b16 %v487, %v483
    %v540 = vpack.c.b16 %v488, %v484
    %v541 = vpack.c.b16 %v493, %v489
    %v542 = vpack.c.b16 %v494, %v490
    %v543 = vpack.c.b16 %v495, %v491
    %v544 = vpack.c.b16 %v496, %v492
    %v545 = vpack.c.b16 %v501, %v497
    %v546 = vpack.c.b16 %v502, %v498
    %v547 = vpack.c.b16 %v503, %v499
    %v548 = vpack.c.b16 %v504, %v500
    %v549 = vpack.c.b16 %v509, %v505
    %v550 = vpack.c.b16 %v510, %v506
    %v551 = vpack.c.b16 %v511, %v507
    %v552 = vpack.c.b16 %v512, %v508
    %v553 = vpack.c.b16 %v517, %v513
    %v554 = vpack.c.b16 %v518, %v514
    %v555 = vpack.c.b16 %v519, %v515
    %v556 = vpack.c.b16 %v520, %v516
    %v557 = vpack.c.b16 %v525, %v521
    %v558 = vpack.c.b16 %v526, %v522
    %v559 = vpack.c.b16 %v527, %v523
    %v560 = vpack.c.b16 %v528, %v524
    %593 = vmatprep.subr.bf16.mxu0 %v530
    %594 = vmatpush1.bf16.msra.mxu0 %v529
    %595 = vmatprep.subr.bf16.mxu0 %v534
    %596 = vmatpush1.bf16.msra.mxu0 %v533
    %597 = vmatprep.subr.bf16.mxu0 %v538
    %598 = vmatpush1.bf16.msra.mxu0 %v537
    %599 = vmatprep.subr.bf16.mxu0 %v542
    %600 = vmatpush1.bf16.msra.mxu0 %v541
    %601 = vmatprep.subr.bf16.mxu0 %v546
    %602 = vmatpush1.bf16.msra.mxu0 %v545
    %603 = vmatprep.subr.bf16.mxu0 %v550
    %604 = vmatpush1.bf16.msra.mxu0 %v549
    %605 = vmatprep.subr.bf16.mxu0 %v554
    %606 = vmatpush1.bf16.msra.mxu0 %v553
    %607 = vmatprep.subr.bf16.mxu0 %v558
    %608 = vmatpush1.bf16.msra.mxu0 %v557
    %609 = vmatprep.subr.bf16.mxu0 0
    %610 = vmatpush1.bf16.msra.mxu0 0
    %611 = vmatprep.subr.bf16.mxu0 0
    %612 = vmatpush1.bf16.msra.mxu0 0
    %613 = vmatprep.subr.bf16.mxu0 0
    %614 = vmatpush1.bf16.msra.mxu0 0
    %615 = vmatprep.subr.bf16.mxu0 0
    %616 = vmatpush1.bf16.msra.mxu0 0
    %617 = vmatprep.subr.bf16.mxu0 0
    %618 = vmatpush1.bf16.msra.mxu0 0
    %619 = vmatprep.subr.bf16.mxu0 0
    %620 = vmatpush1.bf16.msra.mxu0 0
    %621 = vmatprep.subr.bf16.mxu0 0
    %622 = vmatpush1.bf16.msra.mxu0 0
    %623 = vmatprep.subr.bf16.mxu0 0
    %624 = vmatpush1.bf16.msra.mxu0 0
    %625 = vmatprep.mubr.bf16.mxu0 0
    %626 = vmatmul.mubr.bf16.gmra.mrb[0].mxu0 0
    %v627 = vpop.f32.mrb[0].mxu0
    %v628 = vadd.f32 0.0, %v627
    %v629 = vpop.f32.mrb[0].mxu0
    %v630 = vadd.f32 0.0, %v629
    %v631 = vpop.f32.mrb[0].mxu0
    %v632 = vpop.f32.mrb[0].mxu0
    %633 = vdwg.mxu0
    %634 = vmatprep.subr.bf16.mxu0 %v532
    %635 = vmatpush1.bf16.msra.mxu0 %v531
    %636 = vmatprep.subr.bf16.mxu0 %v536
    %637 = vmatpush1.bf16.msra.mxu0 %v535
    %638 = vmatprep.subr.bf16.mxu0 %v540
    %639 = vmatpush1.bf16.msra.mxu0 %v539
    %640 = vmatprep.subr.bf16.mxu0 %v544
    %641 = vmatpush1.bf16.msra.mxu0 %v543
    %642 = vmatprep.subr.bf16.mxu0 %v548
    %643 = vmatpush1.bf16.msra.mxu0 %v547
    %644 = vmatprep.subr.bf16.mxu0 %v552
    %645 = vmatpush1.bf16.msra.mxu0 %v551
    %646 = vmatprep.subr.bf16.mxu0 %v556
    %647 = vmatpush1.bf16.msra.mxu0 %v555
    %648 = vmatprep.subr.bf16.mxu0 %v560
    %649 = vmatpush1.bf16.msra.mxu0 %v559
    %650 = vmatprep.subr.bf16.mxu0 0
    %651 = vmatpush1.bf16.msra.mxu0 0
    %652 = vmatprep.subr.bf16.mxu0 0
    %653 = vmatpush1.bf16.msra.mxu0 0
    %654 = vmatprep.subr.bf16.mxu0 0
    %655 = vmatpush1.bf16.msra.mxu0 0
    %656 = vmatprep.subr.bf16.mxu0 0
    %657 = vmatpush1.bf16.msra.mxu0 0
    %658 = vmatprep.subr.bf16.mxu0 0
    %659 = vmatpush1.bf16.msra.mxu0 0
    %660 = vmatprep.subr.bf16.mxu0 0
    %661 = vmatpush1.bf16.msra.mxu0 0
    %662 = vmatprep.subr.bf16.mxu0 0
    %663 = vmatpush1.bf16.msra.mxu0 0
    %664 = vmatprep.subr.bf16.mxu0 0
    %665 = vmatpush1.bf16.msra.mxu0 0
    %666 = vmatprep.mubr.bf16.mxu0 0
    %667 = vmatmul.mubr.bf16.gmra.mrb[0].mxu0 0
    %v668 = vpop.f32.mrb[0].mxu0
    %v669 = vadd.f32 0.0, %v668
    %v670 = vpop.f32.mrb[0].mxu0
    %v671 = vadd.f32 0.0, %v670
    %v672 = vpop.f32.mrb[0].mxu0
    %v673 = vpop.f32.mrb[0].mxu0
    %674 = vdwg.mxu0
    %v675 = vadd.f32 %v382, %v628
    %v676 = vadd.f32 %v384, %v630
    %v677 = vadd.f32 %v425, %v669
    %v678 = vadd.f32 %v427, %v671
    %v679 = vxor.u32 %v675, 2147483648
    %v680 = vmul.f32 %v679, 1.442695
    %v681 = vpow.pop %v680
    %v682 = vadd.f32 %v681, 1.0
    %v683 = vrcp.pop %v682
    %v684 = vmul.f32 1.0, %v683
    %v685 = vxor.u32 %v676, 2147483648
    %v686 = vmul.f32 %v685, 1.442695
    %v687 = vpow.pop %v686
    %v688 = vadd.f32 %v687, 1.0
    %v689 = vrcp.pop %v688
    %v690 = vmul.f32 1.0, %v689
    %v691 = vtanh.pop %v677
    %v692 = vxor.u32 %v678, 2147483648
    %v693 = vmul.f32 %v692, 1.442695
    %v694 = vpow.pop %v693
    %v695 = vadd.f32 %v694, 1.0
    %v696 = vrcp.pop %v695
    %v697 = vmul.f32 1.0, %v696
    %v698 = vmul.f32 %v690, 0.0
    %v699 = vmul.f32 %v684, %v691
    %v700 = vadd.f32 %v698, %v699
    %v701 = vtanh.pop %v700
    %v702 = vmul.f32 %v697, %v701
    %v703 = vpack.c.bf16 %v702, %v702
    %704 = vmatprep.subr.bf16.mxu0 %v530
    %705 = vmatpush1.bf16.msra.mxu0 %v529
    %706 = vmatprep.subr.bf16.mxu0 %v534
    %707 = vmatpush1.bf16.msra.mxu0 %v533
    %708 = vmatprep.subr.bf16.mxu0 %v538
    %709 = vmatpush1.bf16.msra.mxu0 %v537
    %710 = vmatprep.subr.bf16.mxu0 %v542
    %711 = vmatpush1.bf16.msra.mxu0 %v541
    %712 = vmatprep.subr.bf16.mxu0 %v546
    %713 = vmatpush1.bf16.msra.mxu0 %v545
    %714 = vmatprep.subr.bf16.mxu0 %v550
    %715 = vmatpush1.bf16.msra.mxu0 %v549
    %716 = vmatprep.subr.bf16.mxu0 %v554
    %717 = vmatpush1.bf16.msra.mxu0 %v553
    %718 = vmatprep.subr.bf16.mxu0 %v558
    %719 = vmatpush1.bf16.msra.mxu0 %v557
    %720 = vmatprep.subr.bf16.mxu0 0
    %721 = vmatpush1.bf16.msra.mxu0 0
    %722 = vmatprep.subr.bf16.mxu0 0
    %723 = vmatpush1.bf16.msra.mxu0 0
    %724 = vmatprep.subr.bf16.mxu0 0
    %725 = vmatpush1.bf16.msra.mxu0 0
    %726 = vmatprep.subr.bf16.mxu0 0
    %727 = vmatpush1.bf16.msra.mxu0 0
    %728 = vmatprep.subr.bf16.mxu0 0
    %729 = vmatpush1.bf16.msra.mxu0 0
    %730 = vmatprep.subr.bf16.mxu0 0
    %731 = vmatpush1.bf16.msra.mxu0 0
    %732 = vmatprep.subr.bf16.mxu0 0
    %733 = vmatpush1.bf16.msra.mxu0 0
    %734 = vmatprep.subr.bf16.mxu0 0
    %735 = vmatpush1.bf16.msra.mxu0 0
    %736 = vmatprep.mubr.bf16.mxu0 0
    %737 = vmatmul.mubr.bf16.gmra.mrb[0].mxu0 %v703
    %v738 = vpop.f32.mrb[0].mxu0
    %v739 = vadd.f32 0.0, %v738
    %v740 = vpop.f32.mrb[0].mxu0
    %v741 = vadd.f32 0.0, %v740
    %v742 = vpop.f32.mrb[0].mxu0
    %v743 = vpop.f32.mrb[0].mxu0
    %744 = vdwg.mxu0
    %745 = vmatprep.subr.bf16.mxu0 %v532
    %746 = vmatpush1.bf16.msra.mxu0 %v531
    %747 = vmatprep.subr.bf16.mxu0 %v536
    %748 = vmatpush1.bf16.msra.mxu0 %v535
    %749 = vmatprep.subr.bf16.mxu0 %v540
    %750 = vmatpush1.bf16.msra.mxu0 %v539
    %751 = vmatprep.subr.bf16.mxu0 %v544
    %752 = vmatpush1.bf16.msra.mxu0 %v543
    %753 = vmatprep.subr.bf16.mxu0 %v548
    %754 = vmatpush1.bf16.msra.mxu0 %v547
    %755 = vmatprep.subr.bf16.mxu0 %v552
    %756 = vmatpush1.bf16.msra.mxu0 %v551
    %757 = vmatprep.subr.bf16.mxu0 %v556
    %758 = vmatpush1.bf16.msra.mxu0 %v555
    %759 = vmatprep.subr.bf16.mxu0 %v560
    %760 = vmatpush1.bf16.msra.mxu0 %v559
    %761 = vmatprep.subr.bf16.mxu0 0
    %762 = vmatpush1.bf16.msra.mxu0 0
    %763 = vmatprep.subr.bf16.mxu0 0
    %764 = vmatpush1.bf16.msra.mxu0 0
    %765 = vmatprep.subr.bf16.mxu0 0
    %766 = vmatpush1.bf16.msra.mxu0 0
    %767 = vmatprep.subr.bf16.mxu0 0
    %768 = vmatpush1.bf16.msra.mxu0 0
    %769 = vmatprep.subr.bf16.mxu0 0
    %770 = vmatpush1.bf16.msra.mxu0 0
    %771 = vmatprep.subr.bf16.mxu0 0
    %772 = vmatpush1.bf16.msra.mxu0 0
    %773 = vmatprep.subr.bf16.mxu0 0
    %774 = vmatpush1.bf16.msra.mxu0 0
    %775 = vmatprep.subr.bf16.mxu0 0
    %776 = vmatpush1.bf16.msra.mxu0 0
    %777 = vmatprep.mubr.bf16.mxu0 0
    %778 = vmatmul.mubr.bf16.gmra.mrb[0].mxu0 %v703
    %v779 = vpop.f32.mrb[0].mxu0
    %v780 = vadd.f32 0.0, %v779
    %v781 = vpop.f32.mrb[0].mxu0
    %v782 = vadd.f32 0.0, %v781
    %v783 = vpop.f32.mrb[0].mxu0
    %v784 = vpop.f32.mrb[0].mxu0
    %785 = vdwg.mxu0
    %v790 = vrot.slane %v739, 6
    %v791 = vrot.slane %v741, 6
    %v792 = vrot.slane %v780, 6
    %v793 = vrot.slane %v782, 6
    %v798 = vadd.f32 %v382, %v790
    %v799 = vadd.f32 %v384, %v791
    %v800 = vadd.f32 %v425, %v792
    %v801 = vadd.f32 %v427, %v793
    %v802 = vxor.u32 %v798, 2147483648
    %v803 = vmul.f32 %v802, 1.442695
    %v804 = vpow.pop %v803
    %v805 = vadd.f32 %v804, 1.0
    %v806 = vrcp.pop %v805
    %v807 = vmul.f32 1.0, %v806
    %v808 = vxor.u32 %v799, 2147483648
    %v809 = vmul.f32 %v808, 1.442695
    %v810 = vpow.pop %v809
    %v811 = vadd.f32 %v810, 1.0
    %v812 = vrcp.pop %v811
    %v813 = vmul.f32 1.0, %v812
    %v814 = vtanh.pop %v800
    %v815 = vxor.u32 %v801, 2147483648
    %v816 = vmul.f32 %v815, 1.442695
    %v817 = vpow.pop %v816
    %v818 = vadd.f32 %v817, 1.0
    %v819 = vrcp.pop %v818
    %v820 = vmul.f32 1.0, %v819
    %v822 = vrot.slane %v700, 6
    %v824 = vmul.f32 %v813, %v822
    %v825 = vmul.f32 %v807, %v814
    %v826 = vadd.f32 %v824, %v825
    %v827 = vtanh.pop %v826
    %v828 = vmul.f32 %v820, %v827
    %v829 = vpack.c.bf16 0.0, 0.0
    %v831 = vlaneseq
    %v832 = vshrl.u32 %v831, 7
    %v833 = vsub.s32 0, %v832
    %v834 = vrot.slane %v289, %v833
    %v835 = vlaneseq
    %v836 = vshrl.u32 %v835, 7
    %v837 = vsub.s32 1, %v836
    %v838 = vrot.slane %v289, %v837
    %v839 = vlaneseq
    %v840 = vshrl.u32 %v839, 7
    %v841 = vsub.s32 2, %v840
    %v842 = vrot.slane %v289, %v841
    %v843 = vlaneseq
    %v844 = vshrl.u32 %v843, 7
    %v845 = vsub.s32 3, %v844
    %v846 = vrot.slane %v289, %v845
    %v915 = vunpack.c.l.b16 %v79
    %v916 = vunpack.c.h.b16 %v79
    %v917 = vunpack.c.l.b16 %v80
    %v918 = vunpack.c.h.b16 %v80
    %v919 = vunpack.c.l.b16 %v81
    %v920 = vunpack.c.h.b16 %v81
    %v921 = vunpack.c.l.b16 %v82
    %v922 = vunpack.c.h.b16 %v82
    %v923 = vunpack.c.l.b16 %v83
    %v924 = vunpack.c.h.b16 %v83
    %v925 = vunpack.c.l.b16 %v84
    %v926 = vunpack.c.h.b16 %v84
    %v927 = vunpack.c.l.b16 %v85
    %v928 = vunpack.c.h.b16 %v85
    %v929 = vunpack.c.l.b16 %v86
    %v930 = vunpack.c.h.b16 %v86
    %v931 = vunpack.c.l.b16 %v87
    %v932 = vunpack.c.h.b16 %v87
    %v933 = vunpack.c.l.b16 %v88
    %v934 = vunpack.c.h.b16 %v88
    %v935 = vunpack.c.l.b16 %v89
    %v936 = vunpack.c.h.b16 %v89
    %v937 = vunpack.c.l.b16 %v90
    %v938 = vunpack.c.h.b16 %v90
    %v939 = vunpack.c.l.b16 %v91
    %v940 = vunpack.c.h.b16 %v91
    %v941 = vunpack.c.l.b16 %v92
    %v942 = vunpack.c.h.b16 %v92
    %v943 = vunpack.c.l.b16 %v93
    %v944 = vunpack.c.h.b16 %v93
    %v945 = vunpack.c.l.b16 %v94
    %v946 = vunpack.c.h.b16 %v94
    %v947 = vunpack.c.l.b16 %v95
    %v948 = vunpack.c.h.b16 %v95
    %v949 = vunpack.c.l.b16 %v96
    %v950 = vunpack.c.h.b16 %v96
    %v951 = vunpack.c.l.b16 %v97
    %v952 = vunpack.c.h.b16 %v97
    %v953 = vunpack.c.l.b16 %v98
    %v954 = vunpack.c.h.b16 %v98
    %v955 = vunpack.c.l.b16 %v99
    %v956 = vunpack.c.h.b16 %v99
    %v957 = vunpack.c.l.b16 %v100
    %v958 = vunpack.c.h.b16 %v100
    %v959 = vunpack.c.l.b16 %v101
    %v960 = vunpack.c.h.b16 %v101
    %v961 = vunpack.c.l.b16 %v102
    %v962 = vunpack.c.h.b16 %v102
    %v963 = vunpack.c.l.b16 %v103
    %v964 = vunpack.c.h.b16 %v103
    %v965 = vunpack.c.l.b16 %v104
    %v966 = vunpack.c.h.b16 %v104
    %v967 = vunpack.c.l.b16 %v105
    %v968 = vunpack.c.h.b16 %v105
    %v969 = vunpack.c.l.b16 %v106
    %v970 = vunpack.c.h.b16 %v106
    %v971 = vunpack.c.l.b16 %v107
    %v972 = vunpack.c.h.b16 %v107
    %v973 = vunpack.c.l.b16 %v108
    %v974 = vunpack.c.h.b16 %v108
    %v975 = vunpack.c.l.b16 %v109
    %v976 = vunpack.c.h.b16 %v109
    %v977 = vunpack.c.l.b16 %v110
    %v978 = vunpack.c.h.b16 %v110
    %v979 = vunpack.c.l.b16 %v111
    %v980 = vunpack.c.h.b16 %v111
    %v981 = vunpack.c.l.b16 %v112
    %v982 = vunpack.c.h.b16 %v112
    %v983 = vunpack.c.l.b16 %v113
    %v984 = vunpack.c.h.b16 %v113
    %v985 = vunpack.c.l.b16 %v114
    %v986 = vunpack.c.h.b16 %v114
    %v987 = vunpack.c.l.b16 %v115
    %v988 = vunpack.c.h.b16 %v115
    %v989 = vunpack.c.l.b16 %v116
    %v990 = vunpack.c.h.b16 %v116
    %v991 = vunpack.c.l.b16 %v117
    %v992 = vunpack.c.h.b16 %v117
    %v993 = vunpack.c.l.b16 %v118
    %v994 = vunpack.c.h.b16 %v118
    %v995 = vunpack.c.l.b16 %v119
    %v996 = vunpack.c.h.b16 %v119
    %v997 = vunpack.c.l.b16 %v120
    %v998 = vunpack.c.h.b16 %v120
    %v999 = vunpack.c.l.b16 %v121
    %v1000 = vunpack.c.h.b16 %v121
    %v1001 = vunpack.c.l.b16 %v122
    %v1002 = vunpack.c.h.b16 %v122
    %v1003 = vunpack.c.l.b16 %v123
    %v1004 = vunpack.c.h.b16 %v123
    %v1005 = vunpack.c.l.b16 %v124
    %v1006 = vunpack.c.h.b16 %v124
    %v1007 = vunpack.c.l.b16 %v125
    %v1008 = vunpack.c.h.b16 %v125
    %v1009 = vunpack.c.l.b16 %v126
    %v1010 = vunpack.c.h.b16 %v126
    %v1011 = vunpack.c.l.b16 %v127
    %v1012 = vunpack.c.h.b16 %v127
    %v1013 = vunpack.c.l.b16 %v128
    %v1014 = vunpack.c.h.b16 %v128
    %v1015 = vunpack.c.l.b16 %v129
    %v1016 = vunpack.c.h.b16 %v129
    %v1017 = vunpack.c.l.b16 %v130
    %v1018 = vunpack.c.h.b16 %v130
    %v1019 = vunpack.c.l.b16 %v131
    %v1020 = vunpack.c.h.b16 %v131
    %v1021 = vunpack.c.l.b16 %v132
    %v1022 = vunpack.c.h.b16 %v132
    %v1023 = vunpack.c.l.b16 %v133
    %v1024 = vunpack.c.h.b16 %v133
    %v1025 = vunpack.c.l.b16 %v134
    %v1026 = vunpack.c.h.b16 %v134
    %v1027 = vunpack.c.l.b16 %v135
    %v1028 = vunpack.c.h.b16 %v135
    %v1029 = vunpack.c.l.b16 %v136
    %v1030 = vunpack.c.h.b16 %v136
    %v1031 = vunpack.c.l.b16 %v137
    %v1032 = vunpack.c.h.b16 %v137
    %v1033 = vunpack.c.l.b16 %v138
    %v1034 = vunpack.c.h.b16 %v138
    %v1035 = vunpack.c.l.b16 %v139
    %v1036 = vunpack.c.h.b16 %v139
    %v1037 = vunpack.c.l.b16 %v140
    %v1038 = vunpack.c.h.b16 %v140
    %v1039 = vunpack.c.l.b16 %v141
    %v1040 = vunpack.c.h.b16 %v141
    %v1041 = vunpack.c.l.b16 %v142
    %v1042 = vunpack.c.h.b16 %v142
    %v1043 = vpack.c.b16 %v919, %v915
    %v1044 = vpack.c.b16 %v920, %v916
    %v1045 = vpack.c.b16 %v921, %v917
    %v1046 = vpack.c.b16 %v922, %v918
    %v1047 = vpack.c.b16 %v927, %v923
    %v1048 = vpack.c.b16 %v928, %v924
    %v1049 = vpack.c.b16 %v929, %v925
    %v1050 = vpack.c.b16 %v930, %v926
    %v1051 = vpack.c.b16 %v935, %v931
    %v1052 = vpack.c.b16 %v936, %v932
    %v1053 = vpack.c.b16 %v937, %v933
    %v1054 = vpack.c.b16 %v938, %v934
    %v1055 = vpack.c.b16 %v943, %v939
    %v1056 = vpack.c.b16 %v944, %v940
    %v1057 = vpack.c.b16 %v945, %v941
    %v1058 = vpack.c.b16 %v946, %v942
    %v1059 = vpack.c.b16 %v951, %v947
    %v1060 = vpack.c.b16 %v952, %v948
    %v1061 = vpack.c.b16 %v953, %v949
    %v1062 = vpack.c.b16 %v954, %v950
    %v1063 = vpack.c.b16 %v959, %v955
    %v1064 = vpack.c.b16 %v960, %v956
    %v1065 = vpack.c.b16 %v961, %v957
    %v1066 = vpack.c.b16 %v962, %v958
    %v1067 = vpack.c.b16 %v967, %v963
    %v1068 = vpack.c.b16 %v968, %v964
    %v1069 = vpack.c.b16 %v969, %v965
    %v1070 = vpack.c.b16 %v970, %v966
    %v1071 = vpack.c.b16 %v975, %v971
    %v1072 = vpack.c.b16 %v976, %v972
    %v1073 = vpack.c.b16 %v977, %v973
    %v1074 = vpack.c.b16 %v978, %v974
    %v1075 = vpack.c.b16 %v983, %v979
    %v1076 = vpack.c.b16 %v984, %v980
    %v1077 = vpack.c.b16 %v985, %v981
    %v1078 = vpack.c.b16 %v986, %v982
    %v1079 = vpack.c.b16 %v991, %v987
    %v1080 = vpack.c.b16 %v992, %v988
    %v1081 = vpack.c.b16 %v993, %v989
    %v1082 = vpack.c.b16 %v994, %v990
    %v1083 = vpack.c.b16 %v999, %v995
    %v1084 = vpack.c.b16 %v1000, %v996
    %v1085 = vpack.c.b16 %v1001, %v997
    %v1086 = vpack.c.b16 %v1002, %v998
    %v1087 = vpack.c.b16 %v1007, %v1003
    %v1088 = vpack.c.b16 %v1008, %v1004
    %v1089 = vpack.c.b16 %v1009, %v1005
    %v1090 = vpack.c.b16 %v1010, %v1006
    %v1091 = vpack.c.b16 %v1015, %v1011
    %v1092 = vpack.c.b16 %v1016, %v1012
    %v1093 = vpack.c.b16 %v1017, %v1013
    %v1094 = vpack.c.b16 %v1018, %v1014
    %v1095 = vpack.c.b16 %v1023, %v1019
    %v1096 = vpack.c.b16 %v1024, %v1020
    %v1097 = vpack.c.b16 %v1025, %v1021
    %v1098 = vpack.c.b16 %v1026, %v1022
    %v1099 = vpack.c.b16 %v1031, %v1027
    %v1100 = vpack.c.b16 %v1032, %v1028
    %v1101 = vpack.c.b16 %v1033, %v1029
    %v1102 = vpack.c.b16 %v1034, %v1030
    %v1103 = vpack.c.b16 %v1039, %v1035
    %v1104 = vpack.c.b16 %v1040, %v1036
    %v1105 = vpack.c.b16 %v1041, %v1037
    %v1106 = vpack.c.b16 %v1042, %v1038
    %1171 = vmatprep.subr.bf16.mxu0 %v1044
    %1172 = vmatpush1.bf16.msra.mxu0 %v1043
    %1173 = vmatprep.subr.bf16.mxu0 %v1048
    %1174 = vmatpush1.bf16.msra.mxu0 %v1047
    %1175 = vmatprep.subr.bf16.mxu0 %v1052
    %1176 = vmatpush1.bf16.msra.mxu0 %v1051
    %1177 = vmatprep.subr.bf16.mxu0 %v1056
    %1178 = vmatpush1.bf16.msra.mxu0 %v1055
    %1179 = vmatprep.subr.bf16.mxu0 %v1060
    %1180 = vmatpush1.bf16.msra.mxu0 %v1059
    %1181 = vmatprep.subr.bf16.mxu0 %v1064
    %1182 = vmatpush1.bf16.msra.mxu0 %v1063
    %1183 = vmatprep.subr.bf16.mxu0 %v1068
    %1184 = vmatpush1.bf16.msra.mxu0 %v1067
    %1185 = vmatprep.subr.bf16.mxu0 %v1072
    %1186 = vmatpush1.bf16.msra.mxu0 %v1071
    %1187 = vmatprep.subr.bf16.mxu0 %v1076
    %1188 = vmatpush1.bf16.msra.mxu0 %v1075
    %1189 = vmatprep.subr.bf16.mxu0 %v1080
    %1190 = vmatpush1.bf16.msra.mxu0 %v1079
    %1191 = vmatprep.subr.bf16.mxu0 %v1084
    %1192 = vmatpush1.bf16.msra.mxu0 %v1083
    %1193 = vmatprep.subr.bf16.mxu0 %v1088
    %1194 = vmatpush1.bf16.msra.mxu0 %v1087
    %1195 = vmatprep.subr.bf16.mxu0 %v1092
    %1196 = vmatpush1.bf16.msra.mxu0 %v1091
    %1197 = vmatprep.subr.bf16.mxu0 %v1096
    %1198 = vmatpush1.bf16.msra.mxu0 %v1095
    %1199 = vmatprep.subr.bf16.mxu0 %v1100
    %1200 = vmatpush1.bf16.msra.mxu0 %v1099
    %1201 = vmatprep.subr.bf16.mxu0 %v1104
    %1202 = vmatpush1.bf16.msra.mxu0 %v1103
    %1203 = vmatprep.mubr.bf16.mxu0 %v829
    %1204 = vmatmul.mubr.bf16.gmra.mrb[0].mxu0 %v703
    %v1205 = vpop.f32.mrb[0].mxu0
    %v1206 = vadd.f32 %v834, %v1205
    %v1207 = vpop.f32.mrb[0].mxu0
    %v1208 = vadd.f32 %v838, %v1207
    %v1209 = vpop.f32.mrb[0].mxu0
    %v1210 = vpop.f32.mrb[0].mxu0
    %1211 = vdwg.mxu0
    %1212 = vmatprep.subr.bf16.mxu0 %v1046
    %1213 = vmatpush1.bf16.msra.mxu0 %v1045
    %1214 = vmatprep.subr.bf16.mxu0 %v1050
    %1215 = vmatpush1.bf16.msra.mxu0 %v1049
    %1216 = vmatprep.subr.bf16.mxu0 %v1054
    %1217 = vmatpush1.bf16.msra.mxu0 %v1053
    %1218 = vmatprep.subr.bf16.mxu0 %v1058
    %1219 = vmatpush1.bf16.msra.mxu0 %v1057
    %1220 = vmatprep.subr.bf16.mxu0 %v1062
    %1221 = vmatpush1.bf16.msra.mxu0 %v1061
    %1222 = vmatprep.subr.bf16.mxu0 %v1066
    %1223 = vmatpush1.bf16.msra.mxu0 %v1065
    %1224 = vmatprep.subr.bf16.mxu0 %v1070
    %1225 = vmatpush1.bf16.msra.mxu0 %v1069
    %1226 = vmatprep.subr.bf16.mxu0 %v1074
    %1227 = vmatpush1.bf16.msra.mxu0 %v1073
    %1228 = vmatprep.subr.bf16.mxu0 %v1078
    %1229 = vmatpush1.bf16.msra.mxu0 %v1077
    %1230 = vmatprep.subr.bf16.mxu0 %v1082
    %1231 = vmatpush1.bf16.msra.mxu0 %v1081
    %1232 = vmatprep.subr.bf16.mxu0 %v1086
    %1233 = vmatpush1.bf16.msra.mxu0 %v1085
    %1234 = vmatprep.subr.bf16.mxu0 %v1090
    %1235 = vmatpush1.bf16.msra.mxu0 %v1089
    %1236 = vmatprep.subr.bf16.mxu0 %v1094
    %1237 = vmatpush1.bf16.msra.mxu0 %v1093
    %1238 = vmatprep.subr.bf16.mxu0 %v1098
    %1239 = vmatpush1.bf16.msra.mxu0 %v1097
    %1240 = vmatprep.subr.bf16.mxu0 %v1102
    %1241 = vmatpush1.bf16.msra.mxu0 %v1101
    %1242 = vmatprep.subr.bf16.mxu0 %v1106
    %1243 = vmatpush1.bf16.msra.mxu0 %v1105
    %1244 = vmatprep.mubr.bf16.mxu0 %v829
    %1245 = vmatmul.mubr.bf16.gmra.mrb[0].mxu0 %v703
    %v1246 = vpop.f32.mrb[0].mxu0
    %v1247 = vadd.f32 %v842, %v1246
    %v1248 = vpop.f32.mrb[0].mxu0
    %v1249 = vadd.f32 %v846, %v1248
    %v1250 = vpop.f32.mrb[0].mxu0
    %v1251 = vpop.f32.mrb[0].mxu0
    %1252 = vdwg.mxu0
    %v1253 = vxor.u32 %v1206, 2147483648
    %v1254 = vmul.f32 %v1253, 1.442695
    %v1255 = vpow.pop %v1254
    %v1256 = vadd.f32 %v1255, 1.0
    %v1257 = vrcp.pop %v1256
    %v1258 = vmul.f32 1.0, %v1257
    %v1259 = vxor.u32 %v1208, 2147483648
    %v1260 = vmul.f32 %v1259, 1.442695
    %v1261 = vpow.pop %v1260
    %v1262 = vadd.f32 %v1261, 1.0
    %v1263 = vrcp.pop %v1262
    %v1264 = vmul.f32 1.0, %v1263
    %v1265 = vtanh.pop %v1247
    %v1266 = vxor.u32 %v1249, 2147483648
    %v1267 = vmul.f32 %v1266, 1.442695
    %v1268 = vpow.pop %v1267
    %v1269 = vadd.f32 %v1268, 1.0
    %v1270 = vrcp.pop %v1269
    %v1271 = vmul.f32 1.0, %v1270
    %v1272 = vmul.f32 %v1264, 0.0
    %v1273 = vmul.f32 %v1258, %v1265
    %v1274 = vadd.f32 %v1272, %v1273
    %v1275 = vtanh.pop %v1274
    %v1276 = vmul.f32 %v1271, %v1275
    %v1277 = vpack.c.bf16 %v828, %v828
    %v1279 = vrot.slane %v1277, 1
    %1281 = vmatprep.subr.bf16.mxu0 %v530
    %1282 = vmatpush1.bf16.msra.mxu0 %v529
    %1283 = vmatprep.subr.bf16.mxu0 %v534
    %1284 = vmatpush1.bf16.msra.mxu0 %v533
    %1285 = vmatprep.subr.bf16.mxu0 %v538
    %1286 = vmatpush1.bf16.msra.mxu0 %v537
    %1287 = vmatprep.subr.bf16.mxu0 %v542
    %1288 = vmatpush1.bf16.msra.mxu0 %v541
    %1289 = vmatprep.subr.bf16.mxu0 %v546
    %1290 = vmatpush1.bf16.msra.mxu0 %v545
    %1291 = vmatprep.subr.bf16.mxu0 %v550
    %1292 = vmatpush1.bf16.msra.mxu0 %v549
    %1293 = vmatprep.subr.bf16.mxu0 %v554
    %1294 = vmatpush1.bf16.msra.mxu0 %v553
    %1295 = vmatprep.subr.bf16.mxu0 %v558
    %1296 = vmatpush1.bf16.msra.mxu0 %v557
    %1297 = vmatprep.subr.bf16.mxu0 0
    %1298 = vmatpush1.bf16.msra.mxu0 0
    %1299 = vmatprep.subr.bf16.mxu0 0
    %1300 = vmatpush1.bf16.msra.mxu0 0
    %1301 = vmatprep.subr.bf16.mxu0 0
    %1302 = vmatpush1.bf16.msra.mxu0 0
    %1303 = vmatprep.subr.bf16.mxu0 0
    %1304 = vmatpush1.bf16.msra.mxu0 0
    %1305 = vmatprep.subr.bf16.mxu0 0
    %1306 = vmatpush1.bf16.msra.mxu0 0
    %1307 = vmatprep.subr.bf16.mxu0 0
    %1308 = vmatpush1.bf16.msra.mxu0 0
    %1309 = vmatprep.subr.bf16.mxu0 0
    %1310 = vmatpush1.bf16.msra.mxu0 0
    %1311 = vmatprep.subr.bf16.mxu0 0
    %1312 = vmatpush1.bf16.msra.mxu0 0
    %1313 = vmatprep.mubr.bf16.mxu0 0
    %1314 = vmatmul.mubr.bf16.gmra.mrb[0].mxu0 %v1279
    %v1315 = vpop.f32.mrb[0].mxu0
    %v1316 = vadd.f32 0.0, %v1315
    %v1317 = vpop.f32.mrb[0].mxu0
    %v1318 = vadd.f32 0.0, %v1317
    %v1319 = vpop.f32.mrb[0].mxu0
    %v1320 = vpop.f32.mrb[0].mxu0
    %1321 = vdwg.mxu0
    %1322 = vmatprep.subr.bf16.mxu0 %v532
    %1323 = vmatpush1.bf16.msra.mxu0 %v531
    %1324 = vmatprep.subr.bf16.mxu0 %v536
    %1325 = vmatpush1.bf16.msra.mxu0 %v535
    %1326 = vmatprep.subr.bf16.mxu0 %v540
    %1327 = vmatpush1.bf16.msra.mxu0 %v539
    %1328 = vmatprep.subr.bf16.mxu0 %v544
    %1329 = vmatpush1.bf16.msra.mxu0 %v543
    %1330 = vmatprep.subr.bf16.mxu0 %v548
    %1331 = vmatpush1.bf16.msra.mxu0 %v547
    %1332 = vmatprep.subr.bf16.mxu0 %v552
    %1333 = vmatpush1.bf16.msra.mxu0 %v551
    %1334 = vmatprep.subr.bf16.mxu0 %v556
    %1335 = vmatpush1.bf16.msra.mxu0 %v555
    %1336 = vmatprep.subr.bf16.mxu0 %v560
    %1337 = vmatpush1.bf16.msra.mxu0 %v559
    %1338 = vmatprep.subr.bf16.mxu0 0
    %1339 = vmatpush1.bf16.msra.mxu0 0
    %1340 = vmatprep.subr.bf16.mxu0 0
    %1341 = vmatpush1.bf16.msra.mxu0 0
    %1342 = vmatprep.subr.bf16.mxu0 0
    %1343 = vmatpush1.bf16.msra.mxu0 0
    %1344 = vmatprep.subr.bf16.mxu0 0
    %1345 = vmatpush1.bf16.msra.mxu0 0
    %1346 = vmatprep.subr.bf16.mxu0 0
    %1347 = vmatpush1.bf16.msra.mxu0 0
    %1348 = vmatprep.subr.bf16.mxu0 0
    %1349 = vmatpush1.bf16.msra.mxu0 0
    %1350 = vmatprep.subr.bf16.mxu0 0
    %1351 = vmatpush1.bf16.msra.mxu0 0
    %1352 = vmatprep.subr.bf16.mxu0 0
    %1353 = vmatpush1.bf16.msra.mxu0 0
    %1354 = vmatprep.mubr.bf16.mxu0 0
    %1355 = vmatmul.mubr.bf16.gmra.mrb[0].mxu0 %v1279
    %v1356 = vpop.f32.mrb[0].mxu0
    %v1357 = vadd.f32 0.0, %v1356
    %v1358 = vpop.f32.mrb[0].mxu0
    %v1359 = vadd.f32 0.0, %v1358
    %v1360 = vpop.f32.mrb[0].mxu0
    %v1361 = vpop.f32.mrb[0].mxu0
    %1362 = vdwg.mxu0
    %v1367 = vrot.slane %v1316, 4
    %v1368 = vrot.slane %v1318, 4
    %v1369 = vrot.slane %v1357, 4
    %v1370 = vrot.slane %v1359, 4
    %v1375 = vadd.f32 %v382, %v1367
    %v1376 = vadd.f32 %v384, %v1368
    %v1377 = vadd.f32 %v425, %v1369
    %v1378 = vadd.f32 %v427, %v1370
    %v1379 = vxor.u32 %v1375, 2147483648
    %v1380 = vmul.f32 %v1379, 1.442695
    %v1381 = vpow.pop %v1380
    %v1382 = vadd.f32 %v1381, 1.0
    %v1383 = vrcp.pop %v1382
    %v1384 = vmul.f32 1.0, %v1383
    %v1385 = vxor.u32 %v1376, 2147483648
    %v1386 = vmul.f32 %v1385, 1.442695
    %v1387 = vpow.pop %v1386
    %v1388 = vadd.f32 %v1387, 1.0
    %v1389 = vrcp.pop %v1388
    %v1390 = vmul.f32 1.0, %v1389
    %v1391 = vtanh.pop %v1377
    %v1392 = vxor.u32 %v1378, 2147483648
    %v1393 = vmul.f32 %v1392, 1.442695
    %v1394 = vpow.pop %v1393
    %v1395 = vadd.f32 %v1394, 1.0
    %v1396 = vrcp.pop %v1395
    %v1397 = vmul.f32 1.0, %v1396
    %v1399 = vrot.slane %v826, 6
    %v1401 = vmul.f32 %v1390, %v1399
    %v1402 = vmul.f32 %v1384, %v1391
    %v1403 = vadd.f32 %v1401, %v1402
    %v1404 = vtanh.pop %v1403
    %v1405 = vmul.f32 %v1397, %v1404
    %v1407 = vrot.slane %v1276, 6
    %v1409 = vpack.c.bf16 %v1407, %v1407
    %v1411 = vrot.slane %v1409, 1
    %1413 = vmatprep.subr.bf16.mxu0 %v1044
    %1414 = vmatpush1.bf16.msra.mxu0 %v1043
    %1415 = vmatprep.subr.bf16.mxu0 %v1048
    %1416 = vmatpush1.bf16.msra.mxu0 %v1047
    %1417 = vmatprep.subr.bf16.mxu0 %v1052
    %1418 = vmatpush1.bf16.msra.mxu0 %v1051
    %1419 = vmatprep.subr.bf16.mxu0 %v1056
    %1420 = vmatpush1.bf16.msra.mxu0 %v1055
    %1421 = vmatprep.subr.bf16.mxu0 %v1060
    %1422 = vmatpush1.bf16.msra.mxu0 %v1059
    %1423 = vmatprep.subr.bf16.mxu0 %v1064
    %1424 = vmatpush1.bf16.msra.mxu0 %v1063
    %1425 = vmatprep.subr.bf16.mxu0 %v1068
    %1426 = vmatpush1.bf16.msra.mxu0 %v1067
    %1427 = vmatprep.subr.bf16.mxu0 %v1072
    %1428 = vmatpush1.bf16.msra.mxu0 %v1071
    %1429 = vmatprep.subr.bf16.mxu0 %v1076
    %1430 = vmatpush1.bf16.msra.mxu0 %v1075
    %1431 = vmatprep.subr.bf16.mxu0 %v1080
    %1432 = vmatpush1.bf16.msra.mxu0 %v1079
    %1433 = vmatprep.subr.bf16.mxu0 %v1084
    %1434 = vmatpush1.bf16.msra.mxu0 %v1083
    %1435 = vmatprep.subr.bf16.mxu0 %v1088
    %1436 = vmatpush1.bf16.msra.mxu0 %v1087
    %1437 = vmatprep.subr.bf16.mxu0 %v1092
    %1438 = vmatpush1.bf16.msra.mxu0 %v1091
    %1439 = vmatprep.subr.bf16.mxu0 %v1096
    %1440 = vmatpush1.bf16.msra.mxu0 %v1095
    %1441 = vmatprep.subr.bf16.mxu0 %v1100
    %1442 = vmatpush1.bf16.msra.mxu0 %v1099
    %1443 = vmatprep.subr.bf16.mxu0 %v1104
    %1444 = vmatpush1.bf16.msra.mxu0 %v1103
    %1445 = vmatprep.mubr.bf16.mxu0 %v1411
    %1446 = vmatmul.mubr.bf16.gmra.mrb[0].mxu0 %v1279
    %v1447 = vpop.f32.mrb[0].mxu0
    %v1448 = vadd.f32 %v834, %v1447
    %v1449 = vpop.f32.mrb[0].mxu0
    %v1450 = vadd.f32 %v838, %v1449
    %v1451 = vpop.f32.mrb[0].mxu0
    %v1452 = vpop.f32.mrb[0].mxu0
    %1453 = vdwg.mxu0
    %1454 = vmatprep.subr.bf16.mxu0 %v1046
    %1455 = vmatpush1.bf16.msra.mxu0 %v1045
    %1456 = vmatprep.subr.bf16.mxu0 %v1050
    %1457 = vmatpush1.bf16.msra.mxu0 %v1049
    %1458 = vmatprep.subr.bf16.mxu0 %v1054
    %1459 = vmatpush1.bf16.msra.mxu0 %v1053
    %1460 = vmatprep.subr.bf16.mxu0 %v1058
    %1461 = vmatpush1.bf16.msra.mxu0 %v1057
    %1462 = vmatprep.subr.bf16.mxu0 %v1062
    %1463 = vmatpush1.bf16.msra.mxu0 %v1061
    %1464 = vmatprep.subr.bf16.mxu0 %v1066
    %1465 = vmatpush1.bf16.msra.mxu0 %v1065
    %1466 = vmatprep.subr.bf16.mxu0 %v1070
    %1467 = vmatpush1.bf16.msra.mxu0 %v1069
    %1468 = vmatprep.subr.bf16.mxu0 %v1074
    %1469 = vmatpush1.bf16.msra.mxu0 %v1073
    %1470 = vmatprep.subr.bf16.mxu0 %v1078
    %1471 = vmatpush1.bf16.msra.mxu0 %v1077
    %1472 = vmatprep.subr.bf16.mxu0 %v1082
    %1473 = vmatpush1.bf16.msra.mxu0 %v1081
    %1474 = vmatprep.subr.bf16.mxu0 %v1086
    %1475 = vmatpush1.bf16.msra.mxu0 %v1085
    %1476 = vmatprep.subr.bf16.mxu0 %v1090
    %1477 = vmatpush1.bf16.msra.mxu0 %v1089
    %1478 = vmatprep.subr.bf16.mxu0 %v1094
    %1479 = vmatpush1.bf16.msra.mxu0 %v1093
    %1480 = vmatprep.subr.bf16.mxu0 %v1098
    %1481 = vmatpush1.bf16.msra.mxu0 %v1097
    %1482 = vmatprep.subr.bf16.mxu0 %v1102
    %1483 = vmatpush1.bf16.msra.mxu0 %v1101
    %1484 = vmatprep.subr.bf16.mxu0 %v1106
    %1485 = vmatpush1.bf16.msra.mxu0 %v1105
    %1486 = vmatprep.mubr.bf16.mxu0 %v1411
    %1487 = vmatmul.mubr.bf16.gmra.mrb[0].mxu0 %v1279
    %v1488 = vpop.f32.mrb[0].mxu0
    %v1489 = vadd.f32 %v842, %v1488
    %v1490 = vpop.f32.mrb[0].mxu0
    %v1491 = vadd.f32 %v846, %v1490
    %v1492 = vpop.f32.mrb[0].mxu0
    %v1493 = vpop.f32.mrb[0].mxu0
    %1494 = vdwg.mxu0
    %v1495 = vxor.u32 %v1448, 2147483648
    %v1496 = vmul.f32 %v1495, 1.442695
    %v1497 = vpow.pop %v1496
    %v1498 = vadd.f32 %v1497, 1.0
    %v1499 = vrcp.pop %v1498
    %v1500 = vmul.f32 1.0, %v1499
    %v1501 = vxor.u32 %v1450, 2147483648
    %v1502 = vmul.f32 %v1501, 1.442695
    %v1503 = vpow.pop %v1502
    %v1504 = vadd.f32 %v1503, 1.0
    %v1505 = vrcp.pop %v1504
    %v1506 = vmul.f32 1.0, %v1505
    %v1507 = vtanh.pop %v1489
    %v1508 = vxor.u32 %v1491, 2147483648
    %v1509 = vmul.f32 %v1508, 1.442695
    %v1510 = vpow.pop %v1509
    %v1511 = vadd.f32 %v1510, 1.0
    %v1512 = vrcp.pop %v1511
    %v1513 = vmul.f32 1.0, %v1512
    %v1514 = vmul.f32 %v1506, %v1274
    %v1515 = vmul.f32 %v1500, %v1507
    %v1516 = vadd.f32 %v1514, %v1515
    %v1517 = vtanh.pop %v1516
    %v1518 = vmul.f32 %v1513, %v1517
    %v1519 = vpack.c.bf16 %v1405, %v1405
    %v1521 = vrot.slane %v1519, 2
    %1523 = vmatprep.subr.bf16.mxu0 %v530
    %1524 = vmatpush1.bf16.msra.mxu0 %v529
    %1525 = vmatprep.subr.bf16.mxu0 %v534
    %1526 = vmatpush1.bf16.msra.mxu0 %v533
    %1527 = vmatprep.subr.bf16.mxu0 %v538
    %1528 = vmatpush1.bf16.msra.mxu0 %v537
    %1529 = vmatprep.subr.bf16.mxu0 %v542
    %1530 = vmatpush1.bf16.msra.mxu0 %v541
    %1531 = vmatprep.subr.bf16.mxu0 %v546
    %1532 = vmatpush1.bf16.msra.mxu0 %v545
    %1533 = vmatprep.subr.bf16.mxu0 %v550
    %1534 = vmatpush1.bf16.msra.mxu0 %v549
    %1535 = vmatprep.subr.bf16.mxu0 %v554
    %1536 = vmatpush1.bf16.msra.mxu0 %v553
    %1537 = vmatprep.subr.bf16.mxu0 %v558
    %1538 = vmatpush1.bf16.msra.mxu0 %v557
    %1539 = vmatprep.subr.bf16.mxu0 0
    %1540 = vmatpush1.bf16.msra.mxu0 0
    %1541 = vmatprep.subr.bf16.mxu0 0
    %1542 = vmatpush1.bf16.msra.mxu0 0
    %1543 = vmatprep.subr.bf16.mxu0 0
    %1544 = vmatpush1.bf16.msra.mxu0 0
    %1545 = vmatprep.subr.bf16.mxu0 0
    %1546 = vmatpush1.bf16.msra.mxu0 0
    %1547 = vmatprep.subr.bf16.mxu0 0
    %1548 = vmatpush1.bf16.msra.mxu0 0
    %1549 = vmatprep.subr.bf16.mxu0 0
    %1550 = vmatpush1.bf16.msra.mxu0 0
    %1551 = vmatprep.subr.bf16.mxu0 0
    %1552 = vmatpush1.bf16.msra.mxu0 0
    %1553 = vmatprep.subr.bf16.mxu0 0
    %1554 = vmatpush1.bf16.msra.mxu0 0
    %1555 = vmatprep.mubr.bf16.mxu0 0
    %1556 = vmatmul.mubr.bf16.gmra.mrb[0].mxu0 %v1521
    %v1557 = vpop.f32.mrb[0].mxu0
    %v1558 = vadd.f32 0.0, %v1557
    %v1559 = vpop.f32.mrb[0].mxu0
    %v1560 = vadd.f32 0.0, %v1559
    %v1561 = vpop.f32.mrb[0].mxu0
    %v1562 = vpop.f32.mrb[0].mxu0
    %1563 = vdwg.mxu0
    %1564 = vmatprep.subr.bf16.mxu0 %v532
    %1565 = vmatpush1.bf16.msra.mxu0 %v531
    %1566 = vmatprep.subr.bf16.mxu0 %v536
    %1567 = vmatpush1.bf16.msra.mxu0 %v535
    %1568 = vmatprep.subr.bf16.mxu0 %v540
    %1569 = vmatpush1.bf16.msra.mxu0 %v539
    %1570 = vmatprep.subr.bf16.mxu0 %v544
    %1571 = vmatpush1.bf16.msra.mxu0 %v543
    %1572 = vmatprep.subr.bf16.mxu0 %v548
    %1573 = vmatpush1.bf16.msra.mxu0 %v547
    %1574 = vmatprep.subr.bf16.mxu0 %v552
    %1575 = vmatpush1.bf16.msra.mxu0 %v551
    %1576 = vmatprep.subr.bf16.mxu0 %v556
    %1577 = vmatpush1.bf16.msra.mxu0 %v555
    %1578 = vmatprep.subr.bf16.mxu0 %v560
    %1579 = vmatpush1.bf16.msra.mxu0 %v559
    %1580 = vmatprep.subr.bf16.mxu0 0
    %1581 = vmatpush1.bf16.msra.mxu0 0
    %1582 = vmatprep.subr.bf16.mxu0 0
    %1583 = vmatpush1.bf16.msra.mxu0 0
    %1584 = vmatprep.subr.bf16.mxu0 0
    %1585 = vmatpush1.bf16.msra.mxu0 0
    %1586 = vmatprep.subr.bf16.mxu0 0
    %1587 = vmatpush1.bf16.msra.mxu0 0
    %1588 = vmatprep.subr.bf16.mxu0 0
    %1589 = vmatpush1.bf16.msra.mxu0 0
    %1590 = vmatprep.subr.bf16.mxu0 0
    %1591 = vmatpush1.bf16.msra.mxu0 0
    %1592 = vmatprep.subr.bf16.mxu0 0
    %1593 = vmatpush1.bf16.msra.mxu0 0
    %1594 = vmatprep.subr.bf16.mxu0 0
    %1595 = vmatpush1.bf16.msra.mxu0 0
    %1596 = vmatprep.mubr.bf16.mxu0 0
    %1597 = vmatmul.mubr.bf16.gmra.mrb[0].mxu0 %v1521
    %v1598 = vpop.f32.mrb[0].mxu0
    %v1599 = vadd.f32 0.0, %v1598
    %v1600 = vpop.f32.mrb[0].mxu0
    %v1601 = vadd.f32 0.0, %v1600
    %v1602 = vpop.f32.mrb[0].mxu0
    %v1603 = vpop.f32.mrb[0].mxu0
    %1604 = vdwg.mxu0
    %v1609 = vrot.slane %v1558, 2
    %v1610 = vrot.slane %v1560, 2
    %v1611 = vrot.slane %v1599, 2
    %v1612 = vrot.slane %v1601, 2
    %v1617 = vadd.f32 %v382, %v1609
    %v1618 = vadd.f32 %v384, %v1610
    %v1619 = vadd.f32 %v425, %v1611
    %v1620 = vadd.f32 %v427, %v1612
    %v1621 = vxor.u32 %v1617, 2147483648
    %v1622 = vmul.f32 %v1621, 1.442695
    %v1623 = vpow.pop %v1622
    %v1624 = vadd.f32 %v1623, 1.0
    %v1625 = vrcp.pop %v1624
    %v1626 = vmul.f32 1.0, %v1625
    %v1627 = vxor.u32 %v1618, 2147483648
    %v1628 = vmul.f32 %v1627, 1.442695
    %v1629 = vpow.pop %v1628
    %v1630 = vadd.f32 %v1629, 1.0
    %v1631 = vrcp.pop %v1630
    %v1632 = vmul.f32 1.0, %v1631
    %v1633 = vtanh.pop %v1619
    %v1634 = vxor.u32 %v1620, 2147483648
    %v1635 = vmul.f32 %v1634, 1.442695
    %v1636 = vpow.pop %v1635
    %v1637 = vadd.f32 %v1636, 1.0
    %v1638 = vrcp.pop %v1637
    %v1639 = vmul.f32 1.0, %v1638
    %v1641 = vrot.slane %v1403, 6
    %v1643 = vmul.f32 %v1632, %v1641
    %v1644 = vmul.f32 %v1626, %v1633
    %v1645 = vadd.f32 %v1643, %v1644
    %v1646 = vtanh.pop %v1645
    %v1647 = vmul.f32 %v1639, %v1646
    %v1649 = vrot.slane %v1518, 4
    %v1651 = vpack.c.bf16 %v1649, %v1649
    %v1653 = vrot.slane %v1651, 2
    %1655 = vmatprep.subr.bf16.mxu0 %v1044
    %1656 = vmatpush1.bf16.msra.mxu0 %v1043
    %1657 = vmatprep.subr.bf16.mxu0 %v1048
    %1658 = vmatpush1.bf16.msra.mxu0 %v1047
    %1659 = vmatprep.subr.bf16.mxu0 %v1052
    %1660 = vmatpush1.bf16.msra.mxu0 %v1051
    %1661 = vmatprep.subr.bf16.mxu0 %v1056
    %1662 = vmatpush1.bf16.msra.mxu0 %v1055
    %1663 = vmatprep.subr.bf16.mxu0 %v1060
    %1664 = vmatpush1.bf16.msra.mxu0 %v1059
    %1665 = vmatprep.subr.bf16.mxu0 %v1064
    %1666 = vmatpush1.bf16.msra.mxu0 %v1063
    %1667 = vmatprep.subr.bf16.mxu0 %v1068
    %1668 = vmatpush1.bf16.msra.mxu0 %v1067
    %1669 = vmatprep.subr.bf16.mxu0 %v1072
    %1670 = vmatpush1.bf16.msra.mxu0 %v1071
    %1671 = vmatprep.subr.bf16.mxu0 %v1076
    %1672 = vmatpush1.bf16.msra.mxu0 %v1075
    %1673 = vmatprep.subr.bf16.mxu0 %v1080
    %1674 = vmatpush1.bf16.msra.mxu0 %v1079
    %1675 = vmatprep.subr.bf16.mxu0 %v1084
    %1676 = vmatpush1.bf16.msra.mxu0 %v1083
    %1677 = vmatprep.subr.bf16.mxu0 %v1088
    %1678 = vmatpush1.bf16.msra.mxu0 %v1087
    %1679 = vmatprep.subr.bf16.mxu0 %v1092
    %1680 = vmatpush1.bf16.msra.mxu0 %v1091
    %1681 = vmatprep.subr.bf16.mxu0 %v1096
    %1682 = vmatpush1.bf16.msra.mxu0 %v1095
    %1683 = vmatprep.subr.bf16.mxu0 %v1100
    %1684 = vmatpush1.bf16.msra.mxu0 %v1099
    %1685 = vmatprep.subr.bf16.mxu0 %v1104
    %1686 = vmatpush1.bf16.msra.mxu0 %v1103
    %1687 = vmatprep.mubr.bf16.mxu0 %v1653
    %1688 = vmatmul.mubr.bf16.gmra.mrb[0].mxu0 %v1521
    %v1689 = vpop.f32.mrb[0].mxu0
    %v1690 = vadd.f32 %v834, %v1689
    %v1691 = vpop.f32.mrb[0].mxu0
    %v1692 = vadd.f32 %v838, %v1691
    %v1693 = vpop.f32.mrb[0].mxu0
    %v1694 = vpop.f32.mrb[0].mxu0
    %1695 = vdwg.mxu0
    %1696 = vmatprep.subr.bf16.mxu0 %v1046
    %1697 = vmatpush1.bf16.msra.mxu0 %v1045
    %1698 = vmatprep.subr.bf16.mxu0 %v1050
    %1699 = vmatpush1.bf16.msra.mxu0 %v1049
    %1700 = vmatprep.subr.bf16.mxu0 %v1054
    %1701 = vmatpush1.bf16.msra.mxu0 %v1053
    %1702 = vmatprep.subr.bf16.mxu0 %v1058
    %1703 = vmatpush1.bf16.msra.mxu0 %v1057
    %1704 = vmatprep.subr.bf16.mxu0 %v1062
    %1705 = vmatpush1.bf16.msra.mxu0 %v1061
    %1706 = vmatprep.subr.bf16.mxu0 %v1066
    %1707 = vmatpush1.bf16.msra.mxu0 %v1065
    %1708 = vmatprep.subr.bf16.mxu0 %v1070
    %1709 = vmatpush1.bf16.msra.mxu0 %v1069
    %1710 = vmatprep.subr.bf16.mxu0 %v1074
    %1711 = vmatpush1.bf16.msra.mxu0 %v1073
    %1712 = vmatprep.subr.bf16.mxu0 %v1078
    %1713 = vmatpush1.bf16.msra.mxu0 %v1077
    %1714 = vmatprep.subr.bf16.mxu0 %v1082
    %1715 = vmatpush1.bf16.msra.mxu0 %v1081
    %1716 = vmatprep.subr.bf16.mxu0 %v1086
    %1717 = vmatpush1.bf16.msra.mxu0 %v1085
    %1718 = vmatprep.subr.bf16.mxu0 %v1090
    %1719 = vmatpush1.bf16.msra.mxu0 %v1089
    %1720 = vmatprep.subr.bf16.mxu0 %v1094
    %1721 = vmatpush1.bf16.msra.mxu0 %v1093
    %1722 = vmatprep.subr.bf16.mxu0 %v1098
    %1723 = vmatpush1.bf16.msra.mxu0 %v1097
    %1724 = vmatprep.subr.bf16.mxu0 %v1102
    %1725 = vmatpush1.bf16.msra.mxu0 %v1101
    %1726 = vmatprep.subr.bf16.mxu0 %v1106
    %1727 = vmatpush1.bf16.msra.mxu0 %v1105
    %1728 = vmatprep.mubr.bf16.mxu0 %v1653
    %1729 = vmatmul.mubr.bf16.gmra.mrb[0].mxu0 %v1521
    %v1730 = vpop.f32.mrb[0].mxu0
    %v1731 = vadd.f32 %v842, %v1730
    %v1732 = vpop.f32.mrb[0].mxu0
    %v1733 = vadd.f32 %v846, %v1732
    %v1734 = vpop.f32.mrb[0].mxu0
    %v1735 = vpop.f32.mrb[0].mxu0
    %1736 = vdwg.mxu0
    %v1737 = vxor.u32 %v1690, 2147483648
    %v1738 = vmul.f32 %v1737, 1.442695
    %v1739 = vpow.pop %v1738
    %v1740 = vadd.f32 %v1739, 1.0
    %v1741 = vrcp.pop %v1740
    %v1742 = vmul.f32 1.0, %v1741
    %v1743 = vxor.u32 %v1692, 2147483648
    %v1744 = vmul.f32 %v1743, 1.442695
    %v1745 = vpow.pop %v1744
    %v1746 = vadd.f32 %v1745, 1.0
    %v1747 = vrcp.pop %v1746
    %v1748 = vmul.f32 1.0, %v1747
    %v1749 = vtanh.pop %v1731
    %v1750 = vxor.u32 %v1733, 2147483648
    %v1751 = vmul.f32 %v1750, 1.442695
    %v1752 = vpow.pop %v1751
    %v1753 = vadd.f32 %v1752, 1.0
    %v1754 = vrcp.pop %v1753
    %v1755 = vmul.f32 1.0, %v1754
    %v1756 = vmul.f32 %v1748, %v1516
    %v1757 = vmul.f32 %v1742, %v1749
    %v1758 = vadd.f32 %v1756, %v1757
    %v1759 = vtanh.pop %v1758
    %v1760 = vmul.f32 %v1755, %v1759
    %v1761 = vpack.c.bf16 %v1647, %v1647
    %v1763 = vrot.slane %v1761, 3
    %1765 = vmatprep.subr.bf16.mxu0 %v530
    %1766 = vmatpush1.bf16.msra.mxu0 %v529
    %1767 = vmatprep.subr.bf16.mxu0 %v534
    %1768 = vmatpush1.bf16.msra.mxu0 %v533
    %1769 = vmatprep.subr.bf16.mxu0 %v538
    %1770 = vmatpush1.bf16.msra.mxu0 %v537
    %1771 = vmatprep.subr.bf16.mxu0 %v542
    %1772 = vmatpush1.bf16.msra.mxu0 %v541
    %1773 = vmatprep.subr.bf16.mxu0 %v546
    %1774 = vmatpush1.bf16.msra.mxu0 %v545
    %1775 = vmatprep.subr.bf16.mxu0 %v550
    %1776 = vmatpush1.bf16.msra.mxu0 %v549
    %1777 = vmatprep.subr.bf16.mxu0 %v554
    %1778 = vmatpush1.bf16.msra.mxu0 %v553
    %1779 = vmatprep.subr.bf16.mxu0 %v558
    %1780 = vmatpush1.bf16.msra.mxu0 %v557
    %1781 = vmatprep.subr.bf16.mxu0 0
    %1782 = vmatpush1.bf16.msra.mxu0 0
    %1783 = vmatprep.subr.bf16.mxu0 0
    %1784 = vmatpush1.bf16.msra.mxu0 0
    %1785 = vmatprep.subr.bf16.mxu0 0
    %1786 = vmatpush1.bf16.msra.mxu0 0
    %1787 = vmatprep.subr.bf16.mxu0 0
    %1788 = vmatpush1.bf16.msra.mxu0 0
    %1789 = vmatprep.subr.bf16.mxu0 0
    %1790 = vmatpush1.bf16.msra.mxu0 0
    %1791 = vmatprep.subr.bf16.mxu0 0
    %1792 = vmatpush1.bf16.msra.mxu0 0
    %1793 = vmatprep.subr.bf16.mxu0 0
    %1794 = vmatpush1.bf16.msra.mxu0 0
    %1795 = vmatprep.subr.bf16.mxu0 0
    %1796 = vmatpush1.bf16.msra.mxu0 0
    %1797 = vmatprep.mubr.bf16.mxu0 0
    %1798 = vmatmul.mubr.bf16.gmra.mrb[0].mxu0 %v1763
    %v1799 = vpop.f32.mrb[0].mxu0
    %v1800 = vadd.f32 0.0, %v1799
    %v1801 = vpop.f32.mrb[0].mxu0
    %v1802 = vadd.f32 0.0, %v1801
    %v1803 = vpop.f32.mrb[0].mxu0
    %v1804 = vpop.f32.mrb[0].mxu0
    %1805 = vdwg.mxu0
    %1806 = vmatprep.subr.bf16.mxu0 %v532
    %1807 = vmatpush1.bf16.msra.mxu0 %v531
    %1808 = vmatprep.subr.bf16.mxu0 %v536
    %1809 = vmatpush1.bf16.msra.mxu0 %v535
    %1810 = vmatprep.subr.bf16.mxu0 %v540
    %1811 = vmatpush1.bf16.msra.mxu0 %v539
    %1812 = vmatprep.subr.bf16.mxu0 %v544
    %1813 = vmatpush1.bf16.msra.mxu0 %v543
    %1814 = vmatprep.subr.bf16.mxu0 %v548
    %1815 = vmatpush1.bf16.msra.mxu0 %v547
    %1816 = vmatprep.subr.bf16.mxu0 %v552
    %1817 = vmatpush1.bf16.msra.mxu0 %v551
    %1818 = vmatprep.subr.bf16.mxu0 %v556
    %1819 = vmatpush1.bf16.msra.mxu0 %v555
    %1820 = vmatprep.subr.bf16.mxu0 %v560
    %1821 = vmatpush1.bf16.msra.mxu0 %v559
    %1822 = vmatprep.subr.bf16.mxu0 0
    %1823 = vmatpush1.bf16.msra.mxu0 0
    %1824 = vmatprep.subr.bf16.mxu0 0
    %1825 = vmatpush1.bf16.msra.mxu0 0
    %1826 = vmatprep.subr.bf16.mxu0 0
    %1827 = vmatpush1.bf16.msra.mxu0 0
    %1828 = vmatprep.subr.bf16.mxu0 0
    %1829 = vmatpush1.bf16.msra.mxu0 0
    %1830 = vmatprep.subr.bf16.mxu0 0
    %1831 = vmatpush1.bf16.msra.mxu0 0
    %1832 = vmatprep.subr.bf16.mxu0 0
    %1833 = vmatpush1.bf16.msra.mxu0 0
    %1834 = vmatprep.subr.bf16.mxu0 0
    %1835 = vmatpush1.bf16.msra.mxu0 0
    %1836 = vmatprep.subr.bf16.mxu0 0
    %1837 = vmatpush1.bf16.msra.mxu0 0
    %1838 = vmatprep.mubr.bf16.mxu0 0
    %1839 = vmatmul.mubr.bf16.gmra.mrb[0].mxu0 %v1763
    %v1840 = vpop.f32.mrb[0].mxu0
    %v1841 = vadd.f32 0.0, %v1840
    %v1842 = vpop.f32.mrb[0].mxu0
    %v1843 = vadd.f32 0.0, %v1842
    %v1844 = vpop.f32.mrb[0].mxu0
    %v1845 = vpop.f32.mrb[0].mxu0
    %1846 = vdwg.mxu0
    %v1847 = vadd.f32 %v386, %v1800
    %v1848 = vadd.f32 %v388, %v1802
    %v1849 = vadd.f32 %v429, %v1841
    %v1850 = vadd.f32 %v431, %v1843
    %v1851 = vxor.u32 %v1847, 2147483648
    %v1852 = vmul.f32 %v1851, 1.442695
    %v1853 = vpow.pop %v1852
    %v1854 = vadd.f32 %v1853, 1.0
    %v1855 = vrcp.pop %v1854
    %v1856 = vmul.f32 1.0, %v1855
    %v1857 = vxor.u32 %v1848, 2147483648
    %v1858 = vmul.f32 %v1857, 1.442695
    %v1859 = vpow.pop %v1858
    %v1860 = vadd.f32 %v1859, 1.0
    %v1861 = vrcp.pop %v1860
    %v1862 = vmul.f32 1.0, %v1861
    %v1863 = vtanh.pop %v1849
    %v1864 = vxor.u32 %v1850, 2147483648
    %v1865 = vmul.f32 %v1864, 1.442695
    %v1866 = vpow.pop %v1865
    %v1867 = vadd.f32 %v1866, 1.0
    %v1868 = vrcp.pop %v1867
    %v1869 = vmul.f32 1.0, %v1868
    %v1871 = vrot.slane %v1645, 6
    %v1873 = vmul.f32 %v1862, %v1871
    %v1874 = vmul.f32 %v1856, %v1863
    %v1875 = vadd.f32 %v1873, %v1874
    %v1876 = vtanh.pop %v1875
    %v1877 = vmul.f32 %v1869, %v1876
    %v1879 = vrot.slane %v1760, 2
    %v1881 = vpack.c.bf16 %v1879, %v1879
    %v1883 = vrot.slane %v1881, 3
    %1885 = vmatprep.subr.bf16.mxu0 %v1044
    %1886 = vmatpush1.bf16.msra.mxu0 %v1043
    %1887 = vmatprep.subr.bf16.mxu0 %v1048
    %1888 = vmatpush1.bf16.msra.mxu0 %v1047
    %1889 = vmatprep.subr.bf16.mxu0 %v1052
    %1890 = vmatpush1.bf16.msra.mxu0 %v1051
    %1891 = vmatprep.subr.bf16.mxu0 %v1056
    %1892 = vmatpush1.bf16.msra.mxu0 %v1055
    %1893 = vmatprep.subr.bf16.mxu0 %v1060
    %1894 = vmatpush1.bf16.msra.mxu0 %v1059
    %1895 = vmatprep.subr.bf16.mxu0 %v1064
    %1896 = vmatpush1.bf16.msra.mxu0 %v1063
    %1897 = vmatprep.subr.bf16.mxu0 %v1068
    %1898 = vmatpush1.bf16.msra.mxu0 %v1067
    %1899 = vmatprep.subr.bf16.mxu0 %v1072
    %1900 = vmatpush1.bf16.msra.mxu0 %v1071
    %1901 = vmatprep.subr.bf16.mxu0 %v1076
    %1902 = vmatpush1.bf16.msra.mxu0 %v1075
    %1903 = vmatprep.subr.bf16.mxu0 %v1080
    %1904 = vmatpush1.bf16.msra.mxu0 %v1079
    %1905 = vmatprep.subr.bf16.mxu0 %v1084
    %1906 = vmatpush1.bf16.msra.mxu0 %v1083
    %1907 = vmatprep.subr.bf16.mxu0 %v1088
    %1908 = vmatpush1.bf16.msra.mxu0 %v1087
    %1909 = vmatprep.subr.bf16.mxu0 %v1092
    %1910 = vmatpush1.bf16.msra.mxu0 %v1091
    %1911 = vmatprep.subr.bf16.mxu0 %v1096
    %1912 = vmatpush1.bf16.msra.mxu0 %v1095
    %1913 = vmatprep.subr.bf16.mxu0 %v1100
    %1914 = vmatpush1.bf16.msra.mxu0 %v1099
    %1915 = vmatprep.subr.bf16.mxu0 %v1104
    %1916 = vmatpush1.bf16.msra.mxu0 %v1103
    %1917 = vmatprep.mubr.bf16.mxu0 %v1883
    %1918 = vmatmul.mubr.bf16.gmra.mrb[0].mxu0 %v1763
    %v1919 = vpop.f32.mrb[0].mxu0
    %v1920 = vadd.f32 %v834, %v1919
    %v1921 = vpop.f32.mrb[0].mxu0
    %v1922 = vadd.f32 %v838, %v1921
    %v1923 = vpop.f32.mrb[0].mxu0
    %v1924 = vpop.f32.mrb[0].mxu0
    %1925 = vdwg.mxu0
    %1926 = vmatprep.subr.bf16.mxu0 %v1046
    %1927 = vmatpush1.bf16.msra.mxu0 %v1045
    %1928 = vmatprep.subr.bf16.mxu0 %v1050
    %1929 = vmatpush1.bf16.msra.mxu0 %v1049
    %1930 = vmatprep.subr.bf16.mxu0 %v1054
    %1931 = vmatpush1.bf16.msra.mxu0 %v1053
    %1932 = vmatprep.subr.bf16.mxu0 %v1058
    %1933 = vmatpush1.bf16.msra.mxu0 %v1057
    %1934 = vmatprep.subr.bf16.mxu0 %v1062
    %1935 = vmatpush1.bf16.msra.mxu0 %v1061
    %1936 = vmatprep.subr.bf16.mxu0 %v1066
    %1937 = vmatpush1.bf16.msra.mxu0 %v1065
    %1938 = vmatprep.subr.bf16.mxu0 %v1070
    %1939 = vmatpush1.bf16.msra.mxu0 %v1069
    %1940 = vmatprep.subr.bf16.mxu0 %v1074
    %1941 = vmatpush1.bf16.msra.mxu0 %v1073
    %1942 = vmatprep.subr.bf16.mxu0 %v1078
    %1943 = vmatpush1.bf16.msra.mxu0 %v1077
    %1944 = vmatprep.subr.bf16.mxu0 %v1082
    %1945 = vmatpush1.bf16.msra.mxu0 %v1081
    %1946 = vmatprep.subr.bf16.mxu0 %v1086
    %1947 = vmatpush1.bf16.msra.mxu0 %v1085
    %1948 = vmatprep.subr.bf16.mxu0 %v1090
    %1949 = vmatpush1.bf16.msra.mxu0 %v1089
    %1950 = vmatprep.subr.bf16.mxu0 %v1094
    %1951 = vmatpush1.bf16.msra.mxu0 %v1093
    %1952 = vmatprep.subr.bf16.mxu0 %v1098
    %1953 = vmatpush1.bf16.msra.mxu0 %v1097
    %1954 = vmatprep.subr.bf16.mxu0 %v1102
    %1955 = vmatpush1.bf16.msra.mxu0 %v1101
    %1956 = vmatprep.subr.bf16.mxu0 %v1106
    %1957 = vmatpush1.bf16.msra.mxu0 %v1105
    %1958 = vmatprep.mubr.bf16.mxu0 %v1883
    %1959 = vmatmul.mubr.bf16.gmra.mrb[0].mxu0 %v1763
    %v1960 = vpop.f32.mrb[0].mxu0
    %v1961 = vadd.f32 %v842, %v1960
    %v1962 = vpop.f32.mrb[0].mxu0
    %v1963 = vadd.f32 %v846, %v1962
    %v1964 = vpop.f32.mrb[0].mxu0
    %v1965 = vpop.f32.mrb[0].mxu0
    %1966 = vdwg.mxu0
    %v1967 = vxor.u32 %v1920, 2147483648
    %v1968 = vmul.f32 %v1967, 1.442695
    %v1969 = vpow.pop %v1968
    %v1970 = vadd.f32 %v1969, 1.0
    %v1971 = vrcp.pop %v1970
    %v1972 = vmul.f32 1.0, %v1971
    %v1973 = vxor.u32 %v1922, 2147483648
    %v1974 = vmul.f32 %v1973, 1.442695
    %v1975 = vpow.pop %v1974
    %v1976 = vadd.f32 %v1975, 1.0
    %v1977 = vrcp.pop %v1976
    %v1978 = vmul.f32 1.0, %v1977
    %v1979 = vtanh.pop %v1961
    %v1980 = vxor.u32 %v1963, 2147483648
    %v1981 = vmul.f32 %v1980, 1.442695
    %v1982 = vpow.pop %v1981
    %v1983 = vadd.f32 %v1982, 1.0
    %v1984 = vrcp.pop %v1983
    %v1985 = vmul.f32 1.0, %v1984
    %v1986 = vmul.f32 %v1978, %v1758
    %v1987 = vmul.f32 %v1972, %v1979
    %v1988 = vadd.f32 %v1986, %v1987
    %v1989 = vtanh.pop %v1988
    %v1990 = vmul.f32 %v1985, %v1989
    %v1991 = vpack.c.bf16 %v1877, %v1877
    %1992 = vmatprep.subr.bf16.mxu0 %v530
    %1993 = vmatpush1.bf16.msra.mxu0 %v529
    %1994 = vmatprep.subr.bf16.mxu0 %v534
    %1995 = vmatpush1.bf16.msra.mxu0 %v533
    %1996 = vmatprep.subr.bf16.mxu0 %v538
    %1997 = vmatpush1.bf16.msra.mxu0 %v537
    %1998 = vmatprep.subr.bf16.mxu0 %v542
    %1999 = vmatpush1.bf16.msra.mxu0 %v541
    %2000 = vmatprep.subr.bf16.mxu0 %v546
    %2001 = vmatpush1.bf16.msra.mxu0 %v545
    %2002 = vmatprep.subr.bf16.mxu0 %v550
    %2003 = vmatpush1.bf16.msra.mxu0 %v549
    %2004 = vmatprep.subr.bf16.mxu0 %v554
    %2005 = vmatpush1.bf16.msra.mxu0 %v553
    %2006 = vmatprep.subr.bf16.mxu0 %v558
    %2007 = vmatpush1.bf16.msra.mxu0 %v557
    %2008 = vmatprep.subr.bf16.mxu0 0
    %2009 = vmatpush1.bf16.msra.mxu0 0
    %2010 = vmatprep.subr.bf16.mxu0 0
    %2011 = vmatpush1.bf16.msra.mxu0 0
    %2012 = vmatprep.subr.bf16.mxu0 0
    %2013 = vmatpush1.bf16.msra.mxu0 0
    %2014 = vmatprep.subr.bf16.mxu0 0
    %2015 = vmatpush1.bf16.msra.mxu0 0
    %2016 = vmatprep.subr.bf16.mxu0 0
    %2017 = vmatpush1.bf16.msra.mxu0 0
    %2018 = vmatprep.subr.bf16.mxu0 0
    %2019 = vmatpush1.bf16.msra.mxu0 0
    %2020 = vmatprep.subr.bf16.mxu0 0
    %2021 = vmatpush1.bf16.msra.mxu0 0
    %2022 = vmatprep.subr.bf16.mxu0 0
    %2023 = vmatpush1.bf16.msra.mxu0 0
    %2024 = vmatprep.mubr.bf16.mxu0 0
    %2025 = vmatmul.mubr.bf16.gmra.mrb[0].mxu0 %v1991
    %v2026 = vpop.f32.mrb[0].mxu0
    %v2027 = vadd.f32 0.0, %v2026
    %v2028 = vpop.f32.mrb[0].mxu0
    %v2029 = vadd.f32 0.0, %v2028
    %v2030 = vpop.f32.mrb[0].mxu0
    %v2031 = vpop.f32.mrb[0].mxu0
    %2032 = vdwg.mxu0
    %2033 = vmatprep.subr.bf16.mxu0 %v532
    %2034 = vmatpush1.bf16.msra.mxu0 %v531
    %2035 = vmatprep.subr.bf16.mxu0 %v536
    %2036 = vmatpush1.bf16.msra.mxu0 %v535
    %2037 = vmatprep.subr.bf16.mxu0 %v540
    %2038 = vmatpush1.bf16.msra.mxu0 %v539
    %2039 = vmatprep.subr.bf16.mxu0 %v544
    %2040 = vmatpush1.bf16.msra.mxu0 %v543
    %2041 = vmatprep.subr.bf16.mxu0 %v548
    %2042 = vmatpush1.bf16.msra.mxu0 %v547
    %2043 = vmatprep.subr.bf16.mxu0 %v552
    %2044 = vmatpush1.bf16.msra.mxu0 %v551
    %2045 = vmatprep.subr.bf16.mxu0 %v556
    %2046 = vmatpush1.bf16.msra.mxu0 %v555
    %2047 = vmatprep.subr.bf16.mxu0 %v560
    %2048 = vmatpush1.bf16.msra.mxu0 %v559
    %2049 = vmatprep.subr.bf16.mxu0 0
    %2050 = vmatpush1.bf16.msra.mxu0 0
    %2051 = vmatprep.subr.bf16.mxu0 0
    %2052 = vmatpush1.bf16.msra.mxu0 0
    %2053 = vmatprep.subr.bf16.mxu0 0
    %2054 = vmatpush1.bf16.msra.mxu0 0
    %2055 = vmatprep.subr.bf16.mxu0 0
    %2056 = vmatpush1.bf16.msra.mxu0 0
    %2057 = vmatprep.subr.bf16.mxu0 0
    %2058 = vmatpush1.bf16.msra.mxu0 0
    %2059 = vmatprep.subr.bf16.mxu0 0
    %2060 = vmatpush1.bf16.msra.mxu0 0
    %2061 = vmatprep.subr.bf16.mxu0 0
    %2062 = vmatpush1.bf16.msra.mxu0 0
    %2063 = vmatprep.subr.bf16.mxu0 0
    %2064 = vmatpush1.bf16.msra.mxu0 0
    %2065 = vmatprep.mubr.bf16.mxu0 0
    %2066 = vmatmul.mubr.bf16.gmra.mrb[0].mxu0 %v1991
    %v2067 = vpop.f32.mrb[0].mxu0
    %v2068 = vadd.f32 0.0, %v2067
    %v2069 = vpop.f32.mrb[0].mxu0
    %v2070 = vadd.f32 0.0, %v2069
    %v2071 = vpop.f32.mrb[0].mxu0
    %v2072 = vpop.f32.mrb[0].mxu0
    %2073 = vdwg.mxu0
    %v2078 = vrot.slane %v2027, 6
    %v2079 = vrot.slane %v2029, 6
    %v2080 = vrot.slane %v2068, 6
    %v2081 = vrot.slane %v2070, 6
    %v2086 = vadd.f32 %v386, %v2078
    %v2087 = vadd.f32 %v388, %v2079
    %v2088 = vadd.f32 %v429, %v2080
    %v2089 = vadd.f32 %v431, %v2081
    %v2090 = vxor.u32 %v2086, 2147483648
    %v2091 = vmul.f32 %v2090, 1.442695
    %v2092 = vpow.pop %v2091
    %v2093 = vadd.f32 %v2092, 1.0
    %v2094 = vrcp.pop %v2093
    %v2095 = vmul.f32 1.0, %v2094
    %v2096 = vxor.u32 %v2087, 2147483648
    %v2097 = vmul.f32 %v2096, 1.442695
    %v2098 = vpow.pop %v2097
    %v2099 = vadd.f32 %v2098, 1.0
    %v2100 = vrcp.pop %v2099
    %v2101 = vmul.f32 1.0, %v2100
    %v2102 = vtanh.pop %v2088
    %v2103 = vxor.u32 %v2089, 2147483648
    %v2104 = vmul.f32 %v2103, 1.442695
    %v2105 = vpow.pop %v2104
    %v2106 = vadd.f32 %v2105, 1.0
    %v2107 = vrcp.pop %v2106
    %v2108 = vmul.f32 1.0, %v2107
    %v2110 = vrot.slane %v1875, 6
    %v2112 = vmul.f32 %v2101, %v2110
    %v2113 = vmul.f32 %v2095, %v2102
    %v2114 = vadd.f32 %v2112, %v2113
    %v2115 = vtanh.pop %v2114
    %v2116 = vmul.f32 %v2108, %v2115
    %v2117 = vpack.c.bf16 %v1990, %v1990
    %2118 = vmatprep.subr.bf16.mxu0 %v1044
    %2119 = vmatpush1.bf16.msra.mxu0 %v1043
    %2120 = vmatprep.subr.bf16.mxu0 %v1048
    %2121 = vmatpush1.bf16.msra.mxu0 %v1047
    %2122 = vmatprep.subr.bf16.mxu0 %v1052
    %2123 = vmatpush1.bf16.msra.mxu0 %v1051
    %2124 = vmatprep.subr.bf16.mxu0 %v1056
    %2125 = vmatpush1.bf16.msra.mxu0 %v1055
    %2126 = vmatprep.subr.bf16.mxu0 %v1060
    %2127 = vmatpush1.bf16.msra.mxu0 %v1059
    %2128 = vmatprep.subr.bf16.mxu0 %v1064
    %2129 = vmatpush1.bf16.msra.mxu0 %v1063
    %2130 = vmatprep.subr.bf16.mxu0 %v1068
    %2131 = vmatpush1.bf16.msra.mxu0 %v1067
    %2132 = vmatprep.subr.bf16.mxu0 %v1072
    %2133 = vmatpush1.bf16.msra.mxu0 %v1071
    %2134 = vmatprep.subr.bf16.mxu0 %v1076
    %2135 = vmatpush1.bf16.msra.mxu0 %v1075
    %2136 = vmatprep.subr.bf16.mxu0 %v1080
    %2137 = vmatpush1.bf16.msra.mxu0 %v1079
    %2138 = vmatprep.subr.bf16.mxu0 %v1084
    %2139 = vmatpush1.bf16.msra.mxu0 %v1083
    %2140 = vmatprep.subr.bf16.mxu0 %v1088
    %2141 = vmatpush1.bf16.msra.mxu0 %v1087
    %2142 = vmatprep.subr.bf16.mxu0 %v1092
    %2143 = vmatpush1.bf16.msra.mxu0 %v1091
    %2144 = vmatprep.subr.bf16.mxu0 %v1096
    %2145 = vmatpush1.bf16.msra.mxu0 %v1095
    %2146 = vmatprep.subr.bf16.mxu0 %v1100
    %2147 = vmatpush1.bf16.msra.mxu0 %v1099
    %2148 = vmatprep.subr.bf16.mxu0 %v1104
    %2149 = vmatpush1.bf16.msra.mxu0 %v1103
    %2150 = vmatprep.mubr.bf16.mxu0 %v2117
    %2151 = vmatmul.mubr.bf16.gmra.mrb[0].mxu0 %v1991
    %v2152 = vpop.f32.mrb[0].mxu0
    %v2153 = vadd.f32 %v834, %v2152
    %v2154 = vpop.f32.mrb[0].mxu0
    %v2155 = vadd.f32 %v838, %v2154
    %v2156 = vpop.f32.mrb[0].mxu0
    %v2157 = vpop.f32.mrb[0].mxu0
    %2158 = vdwg.mxu0
    %2159 = vmatprep.subr.bf16.mxu0 %v1046
    %2160 = vmatpush1.bf16.msra.mxu0 %v1045
    %2161 = vmatprep.subr.bf16.mxu0 %v1050
    %2162 = vmatpush1.bf16.msra.mxu0 %v1049
    %2163 = vmatprep.subr.bf16.mxu0 %v1054
    %2164 = vmatpush1.bf16.msra.mxu0 %v1053
    %2165 = vmatprep.subr.bf16.mxu0 %v1058
    %2166 = vmatpush1.bf16.msra.mxu0 %v1057
    %2167 = vmatprep.subr.bf16.mxu0 %v1062
    %2168 = vmatpush1.bf16.msra.mxu0 %v1061
    %2169 = vmatprep.subr.bf16.mxu0 %v1066
    %2170 = vmatpush1.bf16.msra.mxu0 %v1065
    %2171 = vmatprep.subr.bf16.mxu0 %v1070
    %2172 = vmatpush1.bf16.msra.mxu0 %v1069
    %2173 = vmatprep.subr.bf16.mxu0 %v1074
    %2174 = vmatpush1.bf16.msra.mxu0 %v1073
    %2175 = vmatprep.subr.bf16.mxu0 %v1078
    %2176 = vmatpush1.bf16.msra.mxu0 %v1077
    %2177 = vmatprep.subr.bf16.mxu0 %v1082
    %2178 = vmatpush1.bf16.msra.mxu0 %v1081
    %2179 = vmatprep.subr.bf16.mxu0 %v1086
    %2180 = vmatpush1.bf16.msra.mxu0 %v1085
    %2181 = vmatprep.subr.bf16.mxu0 %v1090
    %2182 = vmatpush1.bf16.msra.mxu0 %v1089
    %2183 = vmatprep.subr.bf16.mxu0 %v1094
    %2184 = vmatpush1.bf16.msra.mxu0 %v1093
    %2185 = vmatprep.subr.bf16.mxu0 %v1098
    %2186 = vmatpush1.bf16.msra.mxu0 %v1097
    %2187 = vmatprep.subr.bf16.mxu0 %v1102
    %2188 = vmatpush1.bf16.msra.mxu0 %v1101
    %2189 = vmatprep.subr.bf16.mxu0 %v1106
    %2190 = vmatpush1.bf16.msra.mxu0 %v1105
    %2191 = vmatprep.mubr.bf16.mxu0 %v2117
    %2192 = vmatmul.mubr.bf16.gmra.mrb[0].mxu0 %v1991
    %v2193 = vpop.f32.mrb[0].mxu0
    %v2194 = vadd.f32 %v842, %v2193
    %v2195 = vpop.f32.mrb[0].mxu0
    %v2196 = vadd.f32 %v846, %v2195
    %v2197 = vpop.f32.mrb[0].mxu0
    %v2198 = vpop.f32.mrb[0].mxu0
    %2199 = vdwg.mxu0
    %v2200 = vxor.u32 %v2153, 2147483648
    %v2201 = vmul.f32 %v2200, 1.442695
    %v2202 = vpow.pop %v2201
    %v2203 = vadd.f32 %v2202, 1.0
    %v2204 = vrcp.pop %v2203
    %v2205 = vmul.f32 1.0, %v2204
    %v2206 = vxor.u32 %v2155, 2147483648
    %v2207 = vmul.f32 %v2206, 1.442695
    %v2208 = vpow.pop %v2207
    %v2209 = vadd.f32 %v2208, 1.0
    %v2210 = vrcp.pop %v2209
    %v2211 = vmul.f32 1.0, %v2210
    %v2212 = vtanh.pop %v2194
    %v2213 = vxor.u32 %v2196, 2147483648
    %v2214 = vmul.f32 %v2213, 1.442695
    %v2215 = vpow.pop %v2214
    %v2216 = vadd.f32 %v2215, 1.0
    %v2217 = vrcp.pop %v2216
    %v2218 = vmul.f32 1.0, %v2217
    %v2219 = vmul.f32 %v2211, %v1988
    %v2220 = vmul.f32 %v2205, %v2212
    %v2221 = vadd.f32 %v2219, %v2220
    %v2222 = vtanh.pop %v2221
    %v2223 = vmul.f32 %v2218, %v2222
    %v2224 = vpack.c.bf16 %v2116, %v2116
    %v2226 = vrot.slane %v2224, 1
    %2228 = vmatprep.subr.bf16.mxu0 %v530
    %2229 = vmatpush1.bf16.msra.mxu0 %v529
    %2230 = vmatprep.subr.bf16.mxu0 %v534
    %2231 = vmatpush1.bf16.msra.mxu0 %v533
    %2232 = vmatprep.subr.bf16.mxu0 %v538
    %2233 = vmatpush1.bf16.msra.mxu0 %v537
    %2234 = vmatprep.subr.bf16.mxu0 %v542
    %2235 = vmatpush1.bf16.msra.mxu0 %v541
    %2236 = vmatprep.subr.bf16.mxu0 %v546
    %2237 = vmatpush1.bf16.msra.mxu0 %v545
    %2238 = vmatprep.subr.bf16.mxu0 %v550
    %2239 = vmatpush1.bf16.msra.mxu0 %v549
    %2240 = vmatprep.subr.bf16.mxu0 %v554
    %2241 = vmatpush1.bf16.msra.mxu0 %v553
    %2242 = vmatprep.subr.bf16.mxu0 %v558
    %2243 = vmatpush1.bf16.msra.mxu0 %v557
    %2244 = vmatprep.subr.bf16.mxu0 0
    %2245 = vmatpush1.bf16.msra.mxu0 0
    %2246 = vmatprep.subr.bf16.mxu0 0
    %2247 = vmatpush1.bf16.msra.mxu0 0
    %2248 = vmatprep.subr.bf16.mxu0 0
    %2249 = vmatpush1.bf16.msra.mxu0 0
    %2250 = vmatprep.subr.bf16.mxu0 0
    %2251 = vmatpush1.bf16.msra.mxu0 0
    %2252 = vmatprep.subr.bf16.mxu0 0
    %2253 = vmatpush1.bf16.msra.mxu0 0
    %2254 = vmatprep.subr.bf16.mxu0 0
    %2255 = vmatpush1.bf16.msra.mxu0 0
    %2256 = vmatprep.subr.bf16.mxu0 0
    %2257 = vmatpush1.bf16.msra.mxu0 0
    %2258 = vmatprep.subr.bf16.mxu0 0
    %2259 = vmatpush1.bf16.msra.mxu0 0
    %2260 = vmatprep.mubr.bf16.mxu0 0
    %2261 = vmatmul.mubr.bf16.gmra.mrb[0].mxu0 %v2226
    %v2262 = vpop.f32.mrb[0].mxu0
    %v2263 = vadd.f32 0.0, %v2262
    %v2264 = vpop.f32.mrb[0].mxu0
    %v2265 = vadd.f32 0.0, %v2264
    %v2266 = vpop.f32.mrb[0].mxu0
    %v2267 = vpop.f32.mrb[0].mxu0
    %2268 = vdwg.mxu0
    %2269 = vmatprep.subr.bf16.mxu0 %v532
    %2270 = vmatpush1.bf16.msra.mxu0 %v531
    %2271 = vmatprep.subr.bf16.mxu0 %v536
    %2272 = vmatpush1.bf16.msra.mxu0 %v535
    %2273 = vmatprep.subr.bf16.mxu0 %v540
    %2274 = vmatpush1.bf16.msra.mxu0 %v539
    %2275 = vmatprep.subr.bf16.mxu0 %v544
    %2276 = vmatpush1.bf16.msra.mxu0 %v543
    %2277 = vmatprep.subr.bf16.mxu0 %v548
    %2278 = vmatpush1.bf16.msra.mxu0 %v547
    %2279 = vmatprep.subr.bf16.mxu0 %v552
    %2280 = vmatpush1.bf16.msra.mxu0 %v551
    %2281 = vmatprep.subr.bf16.mxu0 %v556
    %2282 = vmatpush1.bf16.msra.mxu0 %v555
    %2283 = vmatprep.subr.bf16.mxu0 %v560
    %2284 = vmatpush1.bf16.msra.mxu0 %v559
    %2285 = vmatprep.subr.bf16.mxu0 0
    %2286 = vmatpush1.bf16.msra.mxu0 0
    %2287 = vmatprep.subr.bf16.mxu0 0
    %2288 = vmatpush1.bf16.msra.mxu0 0
    %2289 = vmatprep.subr.bf16.mxu0 0
    %2290 = vmatpush1.bf16.msra.mxu0 0
    %2291 = vmatprep.subr.bf16.mxu0 0
    %2292 = vmatpush1.bf16.msra.mxu0 0
    %2293 = vmatprep.subr.bf16.mxu0 0
    %2294 = vmatpush1.bf16.msra.mxu0 0
    %2295 = vmatprep.subr.bf16.mxu0 0
    %2296 = vmatpush1.bf16.msra.mxu0 0
    %2297 = vmatprep.subr.bf16.mxu0 0
    %2298 = vmatpush1.bf16.msra.mxu0 0
    %2299 = vmatprep.subr.bf16.mxu0 0
    %2300 = vmatpush1.bf16.msra.mxu0 0
    %2301 = vmatprep.mubr.bf16.mxu0 0
    %2302 = vmatmul.mubr.bf16.gmra.mrb[0].mxu0 %v2226
    %v2303 = vpop.f32.mrb[0].mxu0
    %v2304 = vadd.f32 0.0, %v2303
    %v2305 = vpop.f32.mrb[0].mxu0
    %v2306 = vadd.f32 0.0, %v2305
    %v2307 = vpop.f32.mrb[0].mxu0
    %v2308 = vpop.f32.mrb[0].mxu0
    %2309 = vdwg.mxu0
    %v2314 = vrot.slane %v2263, 4
    %v2315 = vrot.slane %v2265, 4
    %v2316 = vrot.slane %v2304, 4
    %v2317 = vrot.slane %v2306, 4
    %v2322 = vadd.f32 %v386, %v2314
    %v2323 = vadd.f32 %v388, %v2315
    %v2324 = vadd.f32 %v429, %v2316
    %v2325 = vadd.f32 %v431, %v2317
    %v2326 = vxor.u32 %v2322, 2147483648
    %v2327 = vmul.f32 %v2326, 1.442695
    %v2328 = vpow.pop %v2327
    %v2329 = vadd.f32 %v2328, 1.0
    %v2330 = vrcp.pop %v2329
    %v2331 = vmul.f32 1.0, %v2330
    %v2332 = vxor.u32 %v2323, 2147483648
    %v2333 = vmul.f32 %v2332, 1.442695
    %v2334 = vpow.pop %v2333
    %v2335 = vadd.f32 %v2334, 1.0
    %v2336 = vrcp.pop %v2335
    %v2337 = vmul.f32 1.0, %v2336
    %v2338 = vtanh.pop %v2324
    %v2339 = vxor.u32 %v2325, 2147483648
    %v2340 = vmul.f32 %v2339, 1.442695
    %v2341 = vpow.pop %v2340
    %v2342 = vadd.f32 %v2341, 1.0
    %v2343 = vrcp.pop %v2342
    %v2344 = vmul.f32 1.0, %v2343
    %v2346 = vrot.slane %v2114, 6
    %v2348 = vmul.f32 %v2337, %v2346
    %v2349 = vmul.f32 %v2331, %v2338
    %v2350 = vadd.f32 %v2348, %v2349
    %v2351 = vtanh.pop %v2350
    %v2352 = vmul.f32 %v2344, %v2351
    %v2354 = vrot.slane %v2223, 6
    %v2356 = vpack.c.bf16 %v2354, %v2354
    %v2358 = vrot.slane %v2356, 1
    %2360 = vmatprep.subr.bf16.mxu0 %v1044
    %2361 = vmatpush1.bf16.msra.mxu0 %v1043
    %2362 = vmatprep.subr.bf16.mxu0 %v1048
    %2363 = vmatpush1.bf16.msra.mxu0 %v1047
    %2364 = vmatprep.subr.bf16.mxu0 %v1052
    %2365 = vmatpush1.bf16.msra.mxu0 %v1051
    %2366 = vmatprep.subr.bf16.mxu0 %v1056
    %2367 = vmatpush1.bf16.msra.mxu0 %v1055
    %2368 = vmatprep.subr.bf16.mxu0 %v1060
    %2369 = vmatpush1.bf16.msra.mxu0 %v1059
    %2370 = vmatprep.subr.bf16.mxu0 %v1064
    %2371 = vmatpush1.bf16.msra.mxu0 %v1063
    %2372 = vmatprep.subr.bf16.mxu0 %v1068
    %2373 = vmatpush1.bf16.msra.mxu0 %v1067
    %2374 = vmatprep.subr.bf16.mxu0 %v1072
    %2375 = vmatpush1.bf16.msra.mxu0 %v1071
    %2376 = vmatprep.subr.bf16.mxu0 %v1076
    %2377 = vmatpush1.bf16.msra.mxu0 %v1075
    %2378 = vmatprep.subr.bf16.mxu0 %v1080
    %2379 = vmatpush1.bf16.msra.mxu0 %v1079
    %2380 = vmatprep.subr.bf16.mxu0 %v1084
    %2381 = vmatpush1.bf16.msra.mxu0 %v1083
    %2382 = vmatprep.subr.bf16.mxu0 %v1088
    %2383 = vmatpush1.bf16.msra.mxu0 %v1087
    %2384 = vmatprep.subr.bf16.mxu0 %v1092
    %2385 = vmatpush1.bf16.msra.mxu0 %v1091
    %2386 = vmatprep.subr.bf16.mxu0 %v1096
    %2387 = vmatpush1.bf16.msra.mxu0 %v1095
    %2388 = vmatprep.subr.bf16.mxu0 %v1100
    %2389 = vmatpush1.bf16.msra.mxu0 %v1099
    %2390 = vmatprep.subr.bf16.mxu0 %v1104
    %2391 = vmatpush1.bf16.msra.mxu0 %v1103
    %2392 = vmatprep.mubr.bf16.mxu0 %v2358
    %2393 = vmatmul.mubr.bf16.gmra.mrb[0].mxu0 %v2226
    %v2394 = vpop.f32.mrb[0].mxu0
    %v2395 = vadd.f32 %v834, %v2394
    %v2396 = vpop.f32.mrb[0].mxu0
    %v2397 = vadd.f32 %v838, %v2396
    %v2398 = vpop.f32.mrb[0].mxu0
    %v2399 = vpop.f32.mrb[0].mxu0
    %2400 = vdwg.mxu0
    %2401 = vmatprep.subr.bf16.mxu0 %v1046
    %2402 = vmatpush1.bf16.msra.mxu0 %v1045
    %2403 = vmatprep.subr.bf16.mxu0 %v1050
    %2404 = vmatpush1.bf16.msra.mxu0 %v1049
    %2405 = vmatprep.subr.bf16.mxu0 %v1054
    %2406 = vmatpush1.bf16.msra.mxu0 %v1053
    %2407 = vmatprep.subr.bf16.mxu0 %v1058
    %2408 = vmatpush1.bf16.msra.mxu0 %v1057
    %2409 = vmatprep.subr.bf16.mxu0 %v1062
    %2410 = vmatpush1.bf16.msra.mxu0 %v1061
    %2411 = vmatprep.subr.bf16.mxu0 %v1066
    %2412 = vmatpush1.bf16.msra.mxu0 %v1065
    %2413 = vmatprep.subr.bf16.mxu0 %v1070
    %2414 = vmatpush1.bf16.msra.mxu0 %v1069
    %2415 = vmatprep.subr.bf16.mxu0 %v1074
    %2416 = vmatpush1.bf16.msra.mxu0 %v1073
    %2417 = vmatprep.subr.bf16.mxu0 %v1078
    %2418 = vmatpush1.bf16.msra.mxu0 %v1077
    %2419 = vmatprep.subr.bf16.mxu0 %v1082
    %2420 = vmatpush1.bf16.msra.mxu0 %v1081
    %2421 = vmatprep.subr.bf16.mxu0 %v1086
    %2422 = vmatpush1.bf16.msra.mxu0 %v1085
    %2423 = vmatprep.subr.bf16.mxu0 %v1090
    %2424 = vmatpush1.bf16.msra.mxu0 %v1089
    %2425 = vmatprep.subr.bf16.mxu0 %v1094
    %2426 = vmatpush1.bf16.msra.mxu0 %v1093
    %2427 = vmatprep.subr.bf16.mxu0 %v1098
    %2428 = vmatpush1.bf16.msra.mxu0 %v1097
    %2429 = vmatprep.subr.bf16.mxu0 %v1102
    %2430 = vmatpush1.bf16.msra.mxu0 %v1101
    %2431 = vmatprep.subr.bf16.mxu0 %v1106
    %2432 = vmatpush1.bf16.msra.mxu0 %v1105
    %2433 = vmatprep.mubr.bf16.mxu0 %v2358
    %2434 = vmatmul.mubr.bf16.gmra.mrb[0].mxu0 %v2226
    %v2435 = vpop.f32.mrb[0].mxu0
    %v2436 = vadd.f32 %v842, %v2435
    %v2437 = vpop.f32.mrb[0].mxu0
    %v2438 = vadd.f32 %v846, %v2437
    %v2439 = vpop.f32.mrb[0].mxu0
    %v2440 = vpop.f32.mrb[0].mxu0
    %2441 = vdwg.mxu0
    %v2442 = vxor.u32 %v2395, 2147483648
    %v2443 = vmul.f32 %v2442, 1.442695
    %v2444 = vpow.pop %v2443
    %v2445 = vadd.f32 %v2444, 1.0
    %v2446 = vrcp.pop %v2445
    %v2447 = vmul.f32 1.0, %v2446
    %v2448 = vxor.u32 %v2397, 2147483648
    %v2449 = vmul.f32 %v2448, 1.442695
    %v2450 = vpow.pop %v2449
    %v2451 = vadd.f32 %v2450, 1.0
    %v2452 = vrcp.pop %v2451
    %v2453 = vmul.f32 1.0, %v2452
    %v2454 = vtanh.pop %v2436
    %v2455 = vxor.u32 %v2438, 2147483648
    %v2456 = vmul.f32 %v2455, 1.442695
    %v2457 = vpow.pop %v2456
    %v2458 = vadd.f32 %v2457, 1.0
    %v2459 = vrcp.pop %v2458
    %v2460 = vmul.f32 1.0, %v2459
    %v2461 = vmul.f32 %v2453, %v2221
    %v2462 = vmul.f32 %v2447, %v2454
    %v2463 = vadd.f32 %v2461, %v2462
    %v2464 = vtanh.pop %v2463
    %v2465 = vmul.f32 %v2460, %v2464
    %v2466 = vpack.c.bf16 %v2352, %v2352
    %v2468 = vrot.slane %v2466, 2
    %2470 = vmatprep.subr.bf16.mxu0 %v530
    %2471 = vmatpush1.bf16.msra.mxu0 %v529
    %2472 = vmatprep.subr.bf16.mxu0 %v534
    %2473 = vmatpush1.bf16.msra.mxu0 %v533
    %2474 = vmatprep.subr.bf16.mxu0 %v538
    %2475 = vmatpush1.bf16.msra.mxu0 %v537
    %2476 = vmatprep.subr.bf16.mxu0 %v542
    %2477 = vmatpush1.bf16.msra.mxu0 %v541
    %2478 = vmatprep.subr.bf16.mxu0 %v546
    %2479 = vmatpush1.bf16.msra.mxu0 %v545
    %2480 = vmatprep.subr.bf16.mxu0 %v550
    %2481 = vmatpush1.bf16.msra.mxu0 %v549
    %2482 = vmatprep.subr.bf16.mxu0 %v554
    %2483 = vmatpush1.bf16.msra.mxu0 %v553
    %2484 = vmatprep.subr.bf16.mxu0 %v558
    %2485 = vmatpush1.bf16.msra.mxu0 %v557
    %2486 = vmatprep.subr.bf16.mxu0 0
    %2487 = vmatpush1.bf16.msra.mxu0 0
    %2488 = vmatprep.subr.bf16.mxu0 0
    %2489 = vmatpush1.bf16.msra.mxu0 0
    %2490 = vmatprep.subr.bf16.mxu0 0
    %2491 = vmatpush1.bf16.msra.mxu0 0
    %2492 = vmatprep.subr.bf16.mxu0 0
    %2493 = vmatpush1.bf16.msra.mxu0 0
    %2494 = vmatprep.subr.bf16.mxu0 0
    %2495 = vmatpush1.bf16.msra.mxu0 0
    %2496 = vmatprep.subr.bf16.mxu0 0
    %2497 = vmatpush1.bf16.msra.mxu0 0
    %2498 = vmatprep.subr.bf16.mxu0 0
    %2499 = vmatpush1.bf16.msra.mxu0 0
    %2500 = vmatprep.subr.bf16.mxu0 0
    %2501 = vmatpush1.bf16.msra.mxu0 0
    %2502 = vmatprep.mubr.bf16.mxu0 0
    %2503 = vmatmul.mubr.bf16.gmra.mrb[0].mxu0 %v2468
    %v2504 = vpop.f32.mrb[0].mxu0
    %v2505 = vadd.f32 0.0, %v2504
    %v2506 = vpop.f32.mrb[0].mxu0
    %v2507 = vadd.f32 0.0, %v2506
    %v2508 = vpop.f32.mrb[0].mxu0
    %v2509 = vpop.f32.mrb[0].mxu0
    %2510 = vdwg.mxu0
    %2511 = vmatprep.subr.bf16.mxu0 %v532
    %2512 = vmatpush1.bf16.msra.mxu0 %v531
    %2513 = vmatprep.subr.bf16.mxu0 %v536
    %2514 = vmatpush1.bf16.msra.mxu0 %v535
    %2515 = vmatprep.subr.bf16.mxu0 %v540
    %2516 = vmatpush1.bf16.msra.mxu0 %v539
    %2517 = vmatprep.subr.bf16.mxu0 %v544
    %2518 = vmatpush1.bf16.msra.mxu0 %v543
    %2519 = vmatprep.subr.bf16.mxu0 %v548
    %2520 = vmatpush1.bf16.msra.mxu0 %v547
    %2521 = vmatprep.subr.bf16.mxu0 %v552
    %2522 = vmatpush1.bf16.msra.mxu0 %v551
    %2523 = vmatprep.subr.bf16.mxu0 %v556
    %2524 = vmatpush1.bf16.msra.mxu0 %v555
    %2525 = vmatprep.subr.bf16.mxu0 %v560
    %2526 = vmatpush1.bf16.msra.mxu0 %v559
    %2527 = vmatprep.subr.bf16.mxu0 0
    %2528 = vmatpush1.bf16.msra.mxu0 0
    %2529 = vmatprep.subr.bf16.mxu0 0
    %2530 = vmatpush1.bf16.msra.mxu0 0
    %2531 = vmatprep.subr.bf16.mxu0 0
    %2532 = vmatpush1.bf16.msra.mxu0 0
    %2533 = vmatprep.subr.bf16.mxu0 0
    %2534 = vmatpush1.bf16.msra.mxu0 0
    %2535 = vmatprep.subr.bf16.mxu0 0
    %2536 = vmatpush1.bf16.msra.mxu0 0
    %2537 = vmatprep.subr.bf16.mxu0 0
    %2538 = vmatpush1.bf16.msra.mxu0 0
    %2539 = vmatprep.subr.bf16.mxu0 0
    %2540 = vmatpush1.bf16.msra.mxu0 0
    %2541 = vmatprep.subr.bf16.mxu0 0
    %2542 = vmatpush1.bf16.msra.mxu0 0
    %2543 = vmatprep.mubr.bf16.mxu0 0
    %2544 = vmatmul.mubr.bf16.gmra.mrb[0].mxu0 %v2468
    %v2545 = vpop.f32.mrb[0].mxu0
    %v2546 = vadd.f32 0.0, %v2545
    %v2547 = vpop.f32.mrb[0].mxu0
    %v2548 = vadd.f32 0.0, %v2547
    %v2549 = vpop.f32.mrb[0].mxu0
    %v2550 = vpop.f32.mrb[0].mxu0
    %2551 = vdwg.mxu0
    %v2556 = vrot.slane %v2505, 2
    %v2557 = vrot.slane %v2507, 2
    %v2558 = vrot.slane %v2546, 2
    %v2559 = vrot.slane %v2548, 2
    %v2564 = vadd.f32 %v386, %v2556
    %v2565 = vadd.f32 %v388, %v2557
    %v2566 = vadd.f32 %v429, %v2558
    %v2567 = vadd.f32 %v431, %v2559
    %v2568 = vxor.u32 %v2564, 2147483648
    %v2569 = vmul.f32 %v2568, 1.442695
    %v2570 = vpow.pop %v2569
    %v2571 = vadd.f32 %v2570, 1.0
    %v2572 = vrcp.pop %v2571
    %v2573 = vmul.f32 1.0, %v2572
    %v2574 = vxor.u32 %v2565, 2147483648
    %v2575 = vmul.f32 %v2574, 1.442695
    %v2576 = vpow.pop %v2575
    %v2577 = vadd.f32 %v2576, 1.0
    %v2578 = vrcp.pop %v2577
    %v2579 = vmul.f32 1.0, %v2578
    %v2580 = vtanh.pop %v2566
    %v2581 = vxor.u32 %v2567, 2147483648
    %v2582 = vmul.f32 %v2581, 1.442695
    %v2583 = vpow.pop %v2582
    %v2584 = vadd.f32 %v2583, 1.0
    %v2585 = vrcp.pop %v2584
    %v2586 = vmul.f32 1.0, %v2585
    %v2588 = vrot.slane %v2350, 6
    %v2590 = vmul.f32 %v2579, %v2588
    %v2591 = vmul.f32 %v2573, %v2580
    %v2592 = vadd.f32 %v2590, %v2591
    %v2593 = vtanh.pop %v2592
    %v2594 = vmul.f32 %v2586, %v2593
    %v2596 = vrot.slane %v2465, 4
    %v2598 = vpack.c.bf16 %v2596, %v2596
    %v2600 = vrot.slane %v2598, 2
    %2602 = vmatprep.subr.bf16.mxu0 %v1044
    %2603 = vmatpush1.bf16.msra.mxu0 %v1043
    %2604 = vmatprep.subr.bf16.mxu0 %v1048
    %2605 = vmatpush1.bf16.msra.mxu0 %v1047
    %2606 = vmatprep.subr.bf16.mxu0 %v1052
    %2607 = vmatpush1.bf16.msra.mxu0 %v1051
    %2608 = vmatprep.subr.bf16.mxu0 %v1056
    %2609 = vmatpush1.bf16.msra.mxu0 %v1055
    %2610 = vmatprep.subr.bf16.mxu0 %v1060
    %2611 = vmatpush1.bf16.msra.mxu0 %v1059
    %2612 = vmatprep.subr.bf16.mxu0 %v1064
    %2613 = vmatpush1.bf16.msra.mxu0 %v1063
    %2614 = vmatprep.subr.bf16.mxu0 %v1068
    %2615 = vmatpush1.bf16.msra.mxu0 %v1067
    %2616 = vmatprep.subr.bf16.mxu0 %v1072
    %2617 = vmatpush1.bf16.msra.mxu0 %v1071
    %2618 = vmatprep.subr.bf16.mxu0 %v1076
    %2619 = vmatpush1.bf16.msra.mxu0 %v1075
    %2620 = vmatprep.subr.bf16.mxu0 %v1080
    %2621 = vmatpush1.bf16.msra.mxu0 %v1079
    %2622 = vmatprep.subr.bf16.mxu0 %v1084
    %2623 = vmatpush1.bf16.msra.mxu0 %v1083
    %2624 = vmatprep.subr.bf16.mxu0 %v1088
    %2625 = vmatpush1.bf16.msra.mxu0 %v1087
    %2626 = vmatprep.subr.bf16.mxu0 %v1092
    %2627 = vmatpush1.bf16.msra.mxu0 %v1091
    %2628 = vmatprep.subr.bf16.mxu0 %v1096
    %2629 = vmatpush1.bf16.msra.mxu0 %v1095
    %2630 = vmatprep.subr.bf16.mxu0 %v1100
    %2631 = vmatpush1.bf16.msra.mxu0 %v1099
    %2632 = vmatprep.subr.bf16.mxu0 %v1104
    %2633 = vmatpush1.bf16.msra.mxu0 %v1103
    %2634 = vmatprep.mubr.bf16.mxu0 %v2600
    %2635 = vmatmul.mubr.bf16.gmra.mrb[0].mxu0 %v2468
    %v2636 = vpop.f32.mrb[0].mxu0
    %v2637 = vadd.f32 %v834, %v2636
    %v2638 = vpop.f32.mrb[0].mxu0
    %v2639 = vadd.f32 %v838, %v2638
    %v2640 = vpop.f32.mrb[0].mxu0
    %v2641 = vpop.f32.mrb[0].mxu0
    %2642 = vdwg.mxu0
    %2643 = vmatprep.subr.bf16.mxu0 %v1046
    %2644 = vmatpush1.bf16.msra.mxu0 %v1045
    %2645 = vmatprep.subr.bf16.mxu0 %v1050
    %2646 = vmatpush1.bf16.msra.mxu0 %v1049
    %2647 = vmatprep.subr.bf16.mxu0 %v1054
    %2648 = vmatpush1.bf16.msra.mxu0 %v1053
    %2649 = vmatprep.subr.bf16.mxu0 %v1058
    %2650 = vmatpush1.bf16.msra.mxu0 %v1057
    %2651 = vmatprep.subr.bf16.mxu0 %v1062
    %2652 = vmatpush1.bf16.msra.mxu0 %v1061
    %2653 = vmatprep.subr.bf16.mxu0 %v1066
    %2654 = vmatpush1.bf16.msra.mxu0 %v1065
    %2655 = vmatprep.subr.bf16.mxu0 %v1070
    %2656 = vmatpush1.bf16.msra.mxu0 %v1069
    %2657 = vmatprep.subr.bf16.mxu0 %v1074
    %2658 = vmatpush1.bf16.msra.mxu0 %v1073
    %2659 = vmatprep.subr.bf16.mxu0 %v1078
    %2660 = vmatpush1.bf16.msra.mxu0 %v1077
    %2661 = vmatprep.subr.bf16.mxu0 %v1082
    %2662 = vmatpush1.bf16.msra.mxu0 %v1081
    %2663 = vmatprep.subr.bf16.mxu0 %v1086
    %2664 = vmatpush1.bf16.msra.mxu0 %v1085
    %2665 = vmatprep.subr.bf16.mxu0 %v1090
    %2666 = vmatpush1.bf16.msra.mxu0 %v1089
    %2667 = vmatprep.subr.bf16.mxu0 %v1094
    %2668 = vmatpush1.bf16.msra.mxu0 %v1093
    %2669 = vmatprep.subr.bf16.mxu0 %v1098
    %2670 = vmatpush1.bf16.msra.mxu0 %v1097
    %2671 = vmatprep.subr.bf16.mxu0 %v1102
    %2672 = vmatpush1.bf16.msra.mxu0 %v1101
    %2673 = vmatprep.subr.bf16.mxu0 %v1106
    %2674 = vmatpush1.bf16.msra.mxu0 %v1105
    %2675 = vmatprep.mubr.bf16.mxu0 %v2600
    %2676 = vmatmul.mubr.bf16.gmra.mrb[0].mxu0 %v2468
    %v2677 = vpop.f32.mrb[0].mxu0
    %v2678 = vadd.f32 %v842, %v2677
    %v2679 = vpop.f32.mrb[0].mxu0
    %v2680 = vadd.f32 %v846, %v2679
    %v2681 = vpop.f32.mrb[0].mxu0
    %v2682 = vpop.f32.mrb[0].mxu0
    %2683 = vdwg.mxu0
    %v2684 = vxor.u32 %v2637, 2147483648
    %v2685 = vmul.f32 %v2684, 1.442695
    %v2686 = vpow.pop %v2685
    %v2687 = vadd.f32 %v2686, 1.0
    %v2688 = vrcp.pop %v2687
    %v2689 = vmul.f32 1.0, %v2688
    %v2690 = vxor.u32 %v2639, 2147483648
    %v2691 = vmul.f32 %v2690, 1.442695
    %v2692 = vpow.pop %v2691
    %v2693 = vadd.f32 %v2692, 1.0
    %v2694 = vrcp.pop %v2693
    %v2695 = vmul.f32 1.0, %v2694
    %v2696 = vtanh.pop %v2678
    %v2697 = vxor.u32 %v2680, 2147483648
    %v2698 = vmul.f32 %v2697, 1.442695
    %v2699 = vpow.pop %v2698
    %v2700 = vadd.f32 %v2699, 1.0
    %v2701 = vrcp.pop %v2700
    %v2702 = vmul.f32 1.0, %v2701
    %v2703 = vmul.f32 %v2695, %v2463
    %v2704 = vmul.f32 %v2689, %v2696
    %v2705 = vadd.f32 %v2703, %v2704
    %v2706 = vtanh.pop %v2705
    %v2707 = vmul.f32 %v2702, %v2706
    %v2709 = vrot.slane %v2707, 2
    %v2711 = vpack.c.bf16 %v2594, %v2594
    %v2712 = vpack.c.bf16 %v2709, %v2709
    %v2715 = vrot.slane %v2711, 3
    %v2716 = vrot.slane %v2712, 3
    %2719 = vmatprep.subr.bf16.mxu0 %v1044
    %2720 = vmatpush1.bf16.msra.mxu0 %v1043
    %2721 = vmatprep.subr.bf16.mxu0 %v1048
    %2722 = vmatpush1.bf16.msra.mxu0 %v1047
    %2723 = vmatprep.subr.bf16.mxu0 %v1052
    %2724 = vmatpush1.bf16.msra.mxu0 %v1051
    %2725 = vmatprep.subr.bf16.mxu0 %v1056
    %2726 = vmatpush1.bf16.msra.mxu0 %v1055
    %2727 = vmatprep.subr.bf16.mxu0 %v1060
    %2728 = vmatpush1.bf16.msra.mxu0 %v1059
    %2729 = vmatprep.subr.bf16.mxu0 %v1064
    %2730 = vmatpush1.bf16.msra.mxu0 %v1063
    %2731 = vmatprep.subr.bf16.mxu0 %v1068
    %2732 = vmatpush1.bf16.msra.mxu0 %v1067
    %2733 = vmatprep.subr.bf16.mxu0 %v1072
    %2734 = vmatpush1.bf16.msra.mxu0 %v1071
    %2735 = vmatprep.subr.bf16.mxu0 %v1076
    %2736 = vmatpush1.bf16.msra.mxu0 %v1075
    %2737 = vmatprep.subr.bf16.mxu0 %v1080
    %2738 = vmatpush1.bf16.msra.mxu0 %v1079
    %2739 = vmatprep.subr.bf16.mxu0 %v1084
    %2740 = vmatpush1.bf16.msra.mxu0 %v1083
    %2741 = vmatprep.subr.bf16.mxu0 %v1088
    %2742 = vmatpush1.bf16.msra.mxu0 %v1087
    %2743 = vmatprep.subr.bf16.mxu0 %v1092
    %2744 = vmatpush1.bf16.msra.mxu0 %v1091
    %2745 = vmatprep.subr.bf16.mxu0 %v1096
    %2746 = vmatpush1.bf16.msra.mxu0 %v1095
    %2747 = vmatprep.subr.bf16.mxu0 %v1100
    %2748 = vmatpush1.bf16.msra.mxu0 %v1099
    %2749 = vmatprep.subr.bf16.mxu0 %v1104
    %2750 = vmatpush1.bf16.msra.mxu0 %v1103
    %2751 = vmatprep.mubr.bf16.mxu0 %v2716
    %2752 = vmatmul.mubr.bf16.gmra.mrb[0].mxu0 %v2715
    %v2753 = vpop.f32.mrb[0].mxu0
    %v2754 = vadd.f32 %v834, %v2753
    %v2755 = vpop.f32.mrb[0].mxu0
    %v2756 = vadd.f32 %v838, %v2755
    %v2757 = vpop.f32.mrb[0].mxu0
    %v2758 = vpop.f32.mrb[0].mxu0
    %2759 = vdwg.mxu0
    %2760 = vmatprep.subr.bf16.mxu0 %v1046
    %2761 = vmatpush1.bf16.msra.mxu0 %v1045
    %2762 = vmatprep.subr.bf16.mxu0 %v1050
    %2763 = vmatpush1.bf16.msra.mxu0 %v1049
    %2764 = vmatprep.subr.bf16.mxu0 %v1054
    %2765 = vmatpush1.bf16.msra.mxu0 %v1053
    %2766 = vmatprep.subr.bf16.mxu0 %v1058
    %2767 = vmatpush1.bf16.msra.mxu0 %v1057
    %2768 = vmatprep.subr.bf16.mxu0 %v1062
    %2769 = vmatpush1.bf16.msra.mxu0 %v1061
    %2770 = vmatprep.subr.bf16.mxu0 %v1066
    %2771 = vmatpush1.bf16.msra.mxu0 %v1065
    %2772 = vmatprep.subr.bf16.mxu0 %v1070
    %2773 = vmatpush1.bf16.msra.mxu0 %v1069
    %2774 = vmatprep.subr.bf16.mxu0 %v1074
    %2775 = vmatpush1.bf16.msra.mxu0 %v1073
    %2776 = vmatprep.subr.bf16.mxu0 %v1078
    %2777 = vmatpush1.bf16.msra.mxu0 %v1077
    %2778 = vmatprep.subr.bf16.mxu0 %v1082
    %2779 = vmatpush1.bf16.msra.mxu0 %v1081
    %2780 = vmatprep.subr.bf16.mxu0 %v1086
    %2781 = vmatpush1.bf16.msra.mxu0 %v1085
    %2782 = vmatprep.subr.bf16.mxu0 %v1090
    %2783 = vmatpush1.bf16.msra.mxu0 %v1089
    %2784 = vmatprep.subr.bf16.mxu0 %v1094
    %2785 = vmatpush1.bf16.msra.mxu0 %v1093
    %2786 = vmatprep.subr.bf16.mxu0 %v1098
    %2787 = vmatpush1.bf16.msra.mxu0 %v1097
    %2788 = vmatprep.subr.bf16.mxu0 %v1102
    %2789 = vmatpush1.bf16.msra.mxu0 %v1101
    %2790 = vmatprep.subr.bf16.mxu0 %v1106
    %2791 = vmatpush1.bf16.msra.mxu0 %v1105
    %2792 = vmatprep.mubr.bf16.mxu0 %v2716
    %2793 = vmatmul.mubr.bf16.gmra.mrb[0].mxu0 %v2715
    %v2794 = vpop.f32.mrb[0].mxu0
    %v2795 = vadd.f32 %v842, %v2794
    %v2796 = vpop.f32.mrb[0].mxu0
    %v2797 = vadd.f32 %v846, %v2796
    %v2798 = vpop.f32.mrb[0].mxu0
    %v2799 = vpop.f32.mrb[0].mxu0
    %2800 = vdwg.mxu0
    %v2801 = vxor.u32 %v2754, 2147483648
    %v2802 = vmul.f32 %v2801, 1.442695
    %v2803 = vpow.pop %v2802
    %v2804 = vadd.f32 %v2803, 1.0
    %v2805 = vrcp.pop %v2804
    %v2806 = vmul.f32 1.0, %v2805
    %v2807 = vxor.u32 %v2756, 2147483648
    %v2808 = vmul.f32 %v2807, 1.442695
    %v2809 = vpow.pop %v2808
    %v2810 = vadd.f32 %v2809, 1.0
    %v2811 = vrcp.pop %v2810
    %v2812 = vmul.f32 1.0, %v2811
    %v2813 = vtanh.pop %v2795
    %v2814 = vxor.u32 %v2797, 2147483648
    %v2815 = vmul.f32 %v2814, 1.442695
    %v2816 = vpow.pop %v2815
    %v2817 = vadd.f32 %v2816, 1.0
    %v2818 = vrcp.pop %v2817
    %v2819 = vmul.f32 1.0, %v2818
    %v2820 = vmul.f32 %v2812, %v2705
    %v2821 = vmul.f32 %v2806, %v2813
    %v2822 = vadd.f32 %v2820, %v2821
    %v2823 = vtanh.pop %v2822
    %v2824 = vmul.f32 %v2819, %v2823
    %v2825 = vpack.c.bf16 %v2824, %v2824
    %v2827 = vlaneseq
    %v2828 = vshrl.u32 %v2827, 7
    %v2829 = vsub.s32 0, %v2828
    %v2830 = vrot.slane %v291, %v2829
    %v2831 = vlaneseq
    %v2832 = vshrl.u32 %v2831, 7
    %v2833 = vsub.s32 1, %v2832
    %v2834 = vrot.slane %v291, %v2833
    %v2835 = vlaneseq
    %v2836 = vshrl.u32 %v2835, 7
    %v2837 = vsub.s32 2, %v2836
    %v2838 = vrot.slane %v291, %v2837
    %v2839 = vlaneseq
    %v2840 = vshrl.u32 %v2839, 7
    %v2841 = vsub.s32 3, %v2840
    %v2842 = vrot.slane %v291, %v2841
    %v2879 = vunpack.c.l.b16 %v143
    %v2880 = vunpack.c.h.b16 %v143
    %v2881 = vunpack.c.l.b16 %v144
    %v2882 = vunpack.c.h.b16 %v144
    %v2883 = vunpack.c.l.b16 %v145
    %v2884 = vunpack.c.h.b16 %v145
    %v2885 = vunpack.c.l.b16 %v146
    %v2886 = vunpack.c.h.b16 %v146
    %v2887 = vunpack.c.l.b16 %v147
    %v2888 = vunpack.c.h.b16 %v147
    %v2889 = vunpack.c.l.b16 %v148
    %v2890 = vunpack.c.h.b16 %v148
    %v2891 = vunpack.c.l.b16 %v149
    %v2892 = vunpack.c.h.b16 %v149
    %v2893 = vunpack.c.l.b16 %v150
    %v2894 = vunpack.c.h.b16 %v150
    %v2895 = vunpack.c.l.b16 %v151
    %v2896 = vunpack.c.h.b16 %v151
    %v2897 = vunpack.c.l.b16 %v152
    %v2898 = vunpack.c.h.b16 %v152
    %v2899 = vunpack.c.l.b16 %v153
    %v2900 = vunpack.c.h.b16 %v153
    %v2901 = vunpack.c.l.b16 %v154
    %v2902 = vunpack.c.h.b16 %v154
    %v2903 = vunpack.c.l.b16 %v155
    %v2904 = vunpack.c.h.b16 %v155
    %v2905 = vunpack.c.l.b16 %v156
    %v2906 = vunpack.c.h.b16 %v156
    %v2907 = vunpack.c.l.b16 %v157
    %v2908 = vunpack.c.h.b16 %v157
    %v2909 = vunpack.c.l.b16 %v158
    %v2910 = vunpack.c.h.b16 %v158
    %v2911 = vunpack.c.l.b16 %v159
    %v2912 = vunpack.c.h.b16 %v159
    %v2913 = vunpack.c.l.b16 %v160
    %v2914 = vunpack.c.h.b16 %v160
    %v2915 = vunpack.c.l.b16 %v161
    %v2916 = vunpack.c.h.b16 %v161
    %v2917 = vunpack.c.l.b16 %v162
    %v2918 = vunpack.c.h.b16 %v162
    %v2919 = vunpack.c.l.b16 %v163
    %v2920 = vunpack.c.h.b16 %v163
    %v2921 = vunpack.c.l.b16 %v164
    %v2922 = vunpack.c.h.b16 %v164
    %v2923 = vunpack.c.l.b16 %v165
    %v2924 = vunpack.c.h.b16 %v165
    %v2925 = vunpack.c.l.b16 %v166
    %v2926 = vunpack.c.h.b16 %v166
    %v2927 = vunpack.c.l.b16 %v167
    %v2928 = vunpack.c.h.b16 %v167
    %v2929 = vunpack.c.l.b16 %v168
    %v2930 = vunpack.c.h.b16 %v168
    %v2931 = vunpack.c.l.b16 %v169
    %v2932 = vunpack.c.h.b16 %v169
    %v2933 = vunpack.c.l.b16 %v170
    %v2934 = vunpack.c.h.b16 %v170
    %v2935 = vunpack.c.l.b16 %v171
    %v2936 = vunpack.c.h.b16 %v171
    %v2937 = vunpack.c.l.b16 %v172
    %v2938 = vunpack.c.h.b16 %v172
    %v2939 = vunpack.c.l.b16 %v173
    %v2940 = vunpack.c.h.b16 %v173
    %v2941 = vunpack.c.l.b16 %v174
    %v2942 = vunpack.c.h.b16 %v174
    %v2943 = vpack.c.b16 %v2883, %v2879
    %v2944 = vpack.c.b16 %v2884, %v2880
    %v2945 = vpack.c.b16 %v2885, %v2881
    %v2946 = vpack.c.b16 %v2886, %v2882
    %v2947 = vpack.c.b16 %v2891, %v2887
    %v2948 = vpack.c.b16 %v2892, %v2888
    %v2949 = vpack.c.b16 %v2893, %v2889
    %v2950 = vpack.c.b16 %v2894, %v2890
    %v2951 = vpack.c.b16 %v2899, %v2895
    %v2952 = vpack.c.b16 %v2900, %v2896
    %v2953 = vpack.c.b16 %v2901, %v2897
    %v2954 = vpack.c.b16 %v2902, %v2898
    %v2955 = vpack.c.b16 %v2907, %v2903
    %v2956 = vpack.c.b16 %v2908, %v2904
    %v2957 = vpack.c.b16 %v2909, %v2905
    %v2958 = vpack.c.b16 %v2910, %v2906
    %v2959 = vpack.c.b16 %v2915, %v2911
    %v2960 = vpack.c.b16 %v2916, %v2912
    %v2961 = vpack.c.b16 %v2917, %v2913
    %v2962 = vpack.c.b16 %v2918, %v2914
    %v2963 = vpack.c.b16 %v2923, %v2919
    %v2964 = vpack.c.b16 %v2924, %v2920
    %v2965 = vpack.c.b16 %v2925, %v2921
    %v2966 = vpack.c.b16 %v2926, %v2922
    %v2967 = vpack.c.b16 %v2931, %v2927
    %v2968 = vpack.c.b16 %v2932, %v2928
    %v2969 = vpack.c.b16 %v2933, %v2929
    %v2970 = vpack.c.b16 %v2934, %v2930
    %v2971 = vpack.c.b16 %v2939, %v2935
    %v2972 = vpack.c.b16 %v2940, %v2936
    %v2973 = vpack.c.b16 %v2941, %v2937
    %v2974 = vpack.c.b16 %v2942, %v2938
    %3007 = vmatprep.subr.bf16.mxu0 %v2944
    %3008 = vmatpush1.bf16.msra.mxu0 %v2943
    %3009 = vmatprep.subr.bf16.mxu0 %v2948
    %3010 = vmatpush1.bf16.msra.mxu0 %v2947
    %3011 = vmatprep.subr.bf16.mxu0 %v2952
    %3012 = vmatpush1.bf16.msra.mxu0 %v2951
    %3013 = vmatprep.subr.bf16.mxu0 %v2956
    %3014 = vmatpush1.bf16.msra.mxu0 %v2955
    %3015 = vmatprep.subr.bf16.mxu0 %v2960
    %3016 = vmatpush1.bf16.msra.mxu0 %v2959
    %3017 = vmatprep.subr.bf16.mxu0 %v2964
    %3018 = vmatpush1.bf16.msra.mxu0 %v2963
    %3019 = vmatprep.subr.bf16.mxu0 %v2968
    %3020 = vmatpush1.bf16.msra.mxu0 %v2967
    %3021 = vmatprep.subr.bf16.mxu0 %v2972
    %3022 = vmatpush1.bf16.msra.mxu0 %v2971
    %3023 = vmatprep.subr.bf16.mxu0 0
    %3024 = vmatpush1.bf16.msra.mxu0 0
    %3025 = vmatprep.subr.bf16.mxu0 0
    %3026 = vmatpush1.bf16.msra.mxu0 0
    %3027 = vmatprep.subr.bf16.mxu0 0
    %3028 = vmatpush1.bf16.msra.mxu0 0
    %3029 = vmatprep.subr.bf16.mxu0 0
    %3030 = vmatpush1.bf16.msra.mxu0 0
    %3031 = vmatprep.subr.bf16.mxu0 0
    %3032 = vmatpush1.bf16.msra.mxu0 0
    %3033 = vmatprep.subr.bf16.mxu0 0
    %3034 = vmatpush1.bf16.msra.mxu0 0
    %3035 = vmatprep.subr.bf16.mxu0 0
    %3036 = vmatpush1.bf16.msra.mxu0 0
    %3037 = vmatprep.subr.bf16.mxu0 0
    %3038 = vmatpush1.bf16.msra.mxu0 0
    %3039 = vmatprep.mubr.bf16.mxu0 0
    %3040 = vmatmul.mubr.bf16.gmra.mrb[0].mxu0 %v2825
    %v3041 = vpop.f32.mrb[0].mxu0
    %v3042 = vadd.f32 %v2830, %v3041
    %v3043 = vpop.f32.mrb[0].mxu0
    %v3044 = vadd.f32 %v2834, %v3043
    %v3045 = vpop.f32.mrb[0].mxu0
    %v3046 = vpop.f32.mrb[0].mxu0
    %3047 = vdwg.mxu0
    %3048 = vmatprep.subr.bf16.mxu0 %v2946
    %3049 = vmatpush1.bf16.msra.mxu0 %v2945
    %3050 = vmatprep.subr.bf16.mxu0 %v2950
    %3051 = vmatpush1.bf16.msra.mxu0 %v2949
    %3052 = vmatprep.subr.bf16.mxu0 %v2954
    %3053 = vmatpush1.bf16.msra.mxu0 %v2953
    %3054 = vmatprep.subr.bf16.mxu0 %v2958
    %3055 = vmatpush1.bf16.msra.mxu0 %v2957
    %3056 = vmatprep.subr.bf16.mxu0 %v2962
    %3057 = vmatpush1.bf16.msra.mxu0 %v2961
    %3058 = vmatprep.subr.bf16.mxu0 %v2966
    %3059 = vmatpush1.bf16.msra.mxu0 %v2965
    %3060 = vmatprep.subr.bf16.mxu0 %v2970
    %3061 = vmatpush1.bf16.msra.mxu0 %v2969
    %3062 = vmatprep.subr.bf16.mxu0 %v2974
    %3063 = vmatpush1.bf16.msra.mxu0 %v2973
    %3064 = vmatprep.subr.bf16.mxu0 0
    %3065 = vmatpush1.bf16.msra.mxu0 0
    %3066 = vmatprep.subr.bf16.mxu0 0
    %3067 = vmatpush1.bf16.msra.mxu0 0
    %3068 = vmatprep.subr.bf16.mxu0 0
    %3069 = vmatpush1.bf16.msra.mxu0 0
    %3070 = vmatprep.subr.bf16.mxu0 0
    %3071 = vmatpush1.bf16.msra.mxu0 0
    %3072 = vmatprep.subr.bf16.mxu0 0
    %3073 = vmatpush1.bf16.msra.mxu0 0
    %3074 = vmatprep.subr.bf16.mxu0 0
    %3075 = vmatpush1.bf16.msra.mxu0 0
    %3076 = vmatprep.subr.bf16.mxu0 0
    %3077 = vmatpush1.bf16.msra.mxu0 0
    %3078 = vmatprep.subr.bf16.mxu0 0
    %3079 = vmatpush1.bf16.msra.mxu0 0
    %3080 = vmatprep.mubr.bf16.mxu0 0
    %3081 = vmatmul.mubr.bf16.gmra.mrb[0].mxu0 %v2825
    %v3082 = vpop.f32.mrb[0].mxu0
    %v3083 = vadd.f32 %v2838, %v3082
    %v3084 = vpop.f32.mrb[0].mxu0
    %v3085 = vadd.f32 %v2842, %v3084
    %v3086 = vpop.f32.mrb[0].mxu0
    %v3087 = vpop.f32.mrb[0].mxu0
    %3088 = vdwg.mxu0
    %v3121 = vunpack.c.l.b16 %v175
    %v3122 = vunpack.c.h.b16 %v175
    %v3123 = vunpack.c.l.b16 %v176
    %v3124 = vunpack.c.h.b16 %v176
    %v3125 = vunpack.c.l.b16 %v177
    %v3126 = vunpack.c.h.b16 %v177
    %v3127 = vunpack.c.l.b16 %v178
    %v3128 = vunpack.c.h.b16 %v178
    %v3129 = vunpack.c.l.b16 %v179
    %v3130 = vunpack.c.h.b16 %v179
    %v3131 = vunpack.c.l.b16 %v180
    %v3132 = vunpack.c.h.b16 %v180
    %v3133 = vunpack.c.l.b16 %v181
    %v3134 = vunpack.c.h.b16 %v181
    %v3135 = vunpack.c.l.b16 %v182
    %v3136 = vunpack.c.h.b16 %v182
    %v3137 = vunpack.c.l.b16 %v183
    %v3138 = vunpack.c.h.b16 %v183
    %v3139 = vunpack.c.l.b16 %v184
    %v3140 = vunpack.c.h.b16 %v184
    %v3141 = vunpack.c.l.b16 %v185
    %v3142 = vunpack.c.h.b16 %v185
    %v3143 = vunpack.c.l.b16 %v186
    %v3144 = vunpack.c.h.b16 %v186
    %v3145 = vunpack.c.l.b16 %v187
    %v3146 = vunpack.c.h.b16 %v187
    %v3147 = vunpack.c.l.b16 %v188
    %v3148 = vunpack.c.h.b16 %v188
    %v3149 = vunpack.c.l.b16 %v189
    %v3150 = vunpack.c.h.b16 %v189
    %v3151 = vunpack.c.l.b16 %v190
    %v3152 = vunpack.c.h.b16 %v190
    %v3153 = vunpack.c.l.b16 %v191
    %v3154 = vunpack.c.h.b16 %v191
    %v3155 = vunpack.c.l.b16 %v192
    %v3156 = vunpack.c.h.b16 %v192
    %v3157 = vunpack.c.l.b16 %v193
    %v3158 = vunpack.c.h.b16 %v193
    %v3159 = vunpack.c.l.b16 %v194
    %v3160 = vunpack.c.h.b16 %v194
    %v3161 = vunpack.c.l.b16 %v195
    %v3162 = vunpack.c.h.b16 %v195
    %v3163 = vunpack.c.l.b16 %v196
    %v3164 = vunpack.c.h.b16 %v196
    %v3165 = vunpack.c.l.b16 %v197
    %v3166 = vunpack.c.h.b16 %v197
    %v3167 = vunpack.c.l.b16 %v198
    %v3168 = vunpack.c.h.b16 %v198
    %v3169 = vunpack.c.l.b16 %v199
    %v3170 = vunpack.c.h.b16 %v199
    %v3171 = vunpack.c.l.b16 %v200
    %v3172 = vunpack.c.h.b16 %v200
    %v3173 = vunpack.c.l.b16 %v201
    %v3174 = vunpack.c.h.b16 %v201
    %v3175 = vunpack.c.l.b16 %v202
    %v3176 = vunpack.c.h.b16 %v202
    %v3177 = vunpack.c.l.b16 %v203
    %v3178 = vunpack.c.h.b16 %v203
    %v3179 = vunpack.c.l.b16 %v204
    %v3180 = vunpack.c.h.b16 %v204
    %v3181 = vunpack.c.l.b16 %v205
    %v3182 = vunpack.c.h.b16 %v205
    %v3183 = vunpack.c.l.b16 %v206
    %v3184 = vunpack.c.h.b16 %v206
    %v3185 = vpack.c.b16 %v3125, %v3121
    %v3186 = vpack.c.b16 %v3126, %v3122
    %v3187 = vpack.c.b16 %v3127, %v3123
    %v3188 = vpack.c.b16 %v3128, %v3124
    %v3189 = vpack.c.b16 %v3133, %v3129
    %v3190 = vpack.c.b16 %v3134, %v3130
    %v3191 = vpack.c.b16 %v3135, %v3131
    %v3192 = vpack.c.b16 %v3136, %v3132
    %v3193 = vpack.c.b16 %v3141, %v3137
    %v3194 = vpack.c.b16 %v3142, %v3138
    %v3195 = vpack.c.b16 %v3143, %v3139
    %v3196 = vpack.c.b16 %v3144, %v3140
    %v3197 = vpack.c.b16 %v3149, %v3145
    %v3198 = vpack.c.b16 %v3150, %v3146
    %v3199 = vpack.c.b16 %v3151, %v3147
    %v3200 = vpack.c.b16 %v3152, %v3148
    %v3201 = vpack.c.b16 %v3157, %v3153
    %v3202 = vpack.c.b16 %v3158, %v3154
    %v3203 = vpack.c.b16 %v3159, %v3155
    %v3204 = vpack.c.b16 %v3160, %v3156
    %v3205 = vpack.c.b16 %v3165, %v3161
    %v3206 = vpack.c.b16 %v3166, %v3162
    %v3207 = vpack.c.b16 %v3167, %v3163
    %v3208 = vpack.c.b16 %v3168, %v3164
    %v3209 = vpack.c.b16 %v3173, %v3169
    %v3210 = vpack.c.b16 %v3174, %v3170
    %v3211 = vpack.c.b16 %v3175, %v3171
    %v3212 = vpack.c.b16 %v3176, %v3172
    %v3213 = vpack.c.b16 %v3181, %v3177
    %v3214 = vpack.c.b16 %v3182, %v3178
    %v3215 = vpack.c.b16 %v3183, %v3179
    %v3216 = vpack.c.b16 %v3184, %v3180
    %3249 = vmatprep.subr.bf16.mxu0 %v3186
    %3250 = vmatpush1.bf16.msra.mxu0 %v3185
    %3251 = vmatprep.subr.bf16.mxu0 %v3190
    %3252 = vmatpush1.bf16.msra.mxu0 %v3189
    %3253 = vmatprep.subr.bf16.mxu0 %v3194
    %3254 = vmatpush1.bf16.msra.mxu0 %v3193
    %3255 = vmatprep.subr.bf16.mxu0 %v3198
    %3256 = vmatpush1.bf16.msra.mxu0 %v3197
    %3257 = vmatprep.subr.bf16.mxu0 %v3202
    %3258 = vmatpush1.bf16.msra.mxu0 %v3201
    %3259 = vmatprep.subr.bf16.mxu0 %v3206
    %3260 = vmatpush1.bf16.msra.mxu0 %v3205
    %3261 = vmatprep.subr.bf16.mxu0 %v3210
    %3262 = vmatpush1.bf16.msra.mxu0 %v3209
    %3263 = vmatprep.subr.bf16.mxu0 %v3214
    %3264 = vmatpush1.bf16.msra.mxu0 %v3213
    %3265 = vmatprep.subr.bf16.mxu0 0
    %3266 = vmatpush1.bf16.msra.mxu0 0
    %3267 = vmatprep.subr.bf16.mxu0 0
    %3268 = vmatpush1.bf16.msra.mxu0 0
    %3269 = vmatprep.subr.bf16.mxu0 0
    %3270 = vmatpush1.bf16.msra.mxu0 0
    %3271 = vmatprep.subr.bf16.mxu0 0
    %3272 = vmatpush1.bf16.msra.mxu0 0
    %3273 = vmatprep.subr.bf16.mxu0 0
    %3274 = vmatpush1.bf16.msra.mxu0 0
    %3275 = vmatprep.subr.bf16.mxu0 0
    %3276 = vmatpush1.bf16.msra.mxu0 0
    %3277 = vmatprep.subr.bf16.mxu0 0
    %3278 = vmatpush1.bf16.msra.mxu0 0
    %3279 = vmatprep.subr.bf16.mxu0 0
    %3280 = vmatpush1.bf16.msra.mxu0 0
    %3281 = vmatprep.mubr.bf16.mxu0 0
    %3282 = vmatmul.mubr.bf16.gmra.mrb[0].mxu0 0
    %v3283 = vpop.f32.mrb[0].mxu0
    %v3284 = vadd.f32 0.0, %v3283
    %v3285 = vpop.f32.mrb[0].mxu0
    %v3286 = vadd.f32 0.0, %v3285
    %v3287 = vpop.f32.mrb[0].mxu0
    %v3288 = vpop.f32.mrb[0].mxu0
    %3289 = vdwg.mxu0
    %3290 = vmatprep.subr.bf16.mxu0 %v3188
    %3291 = vmatpush1.bf16.msra.mxu0 %v3187
    %3292 = vmatprep.subr.bf16.mxu0 %v3192
    %3293 = vmatpush1.bf16.msra.mxu0 %v3191
    %3294 = vmatprep.subr.bf16.mxu0 %v3196
    %3295 = vmatpush1.bf16.msra.mxu0 %v3195
    %3296 = vmatprep.subr.bf16.mxu0 %v3200
    %3297 = vmatpush1.bf16.msra.mxu0 %v3199
    %3298 = vmatprep.subr.bf16.mxu0 %v3204
    %3299 = vmatpush1.bf16.msra.mxu0 %v3203
    %3300 = vmatprep.subr.bf16.mxu0 %v3208
    %3301 = vmatpush1.bf16.msra.mxu0 %v3207
    %3302 = vmatprep.subr.bf16.mxu0 %v3212
    %3303 = vmatpush1.bf16.msra.mxu0 %v3211
    %3304 = vmatprep.subr.bf16.mxu0 %v3216
    %3305 = vmatpush1.bf16.msra.mxu0 %v3215
    %3306 = vmatprep.subr.bf16.mxu0 0
    %3307 = vmatpush1.bf16.msra.mxu0 0
    %3308 = vmatprep.subr.bf16.mxu0 0
    %3309 = vmatpush1.bf16.msra.mxu0 0
    %3310 = vmatprep.subr.bf16.mxu0 0
    %3311 = vmatpush1.bf16.msra.mxu0 0
    %3312 = vmatprep.subr.bf16.mxu0 0
    %3313 = vmatpush1.bf16.msra.mxu0 0
    %3314 = vmatprep.subr.bf16.mxu0 0
    %3315 = vmatpush1.bf16.msra.mxu0 0
    %3316 = vmatprep.subr.bf16.mxu0 0
    %3317 = vmatpush1.bf16.msra.mxu0 0
    %3318 = vmatprep.subr.bf16.mxu0 0
    %3319 = vmatpush1.bf16.msra.mxu0 0
    %3320 = vmatprep.subr.bf16.mxu0 0
    %3321 = vmatpush1.bf16.msra.mxu0 0
    %3322 = vmatprep.mubr.bf16.mxu0 0
    %3323 = vmatmul.mubr.bf16.gmra.mrb[0].mxu0 0
    %v3324 = vpop.f32.mrb[0].mxu0
    %v3325 = vadd.f32 0.0, %v3324
    %v3326 = vpop.f32.mrb[0].mxu0
    %v3327 = vadd.f32 0.0, %v3326
    %v3328 = vpop.f32.mrb[0].mxu0
    %v3329 = vpop.f32.mrb[0].mxu0
    %3330 = vdwg.mxu0
    %v3331 = vadd.f32 %v3042, %v3284
    %v3332 = vadd.f32 %v3044, %v3286
    %v3333 = vadd.f32 %v3083, %v3325
    %v3334 = vadd.f32 %v3085, %v3327
    %v3335 = vxor.u32 %v3331, 2147483648
    %v3336 = vmul.f32 %v3335, 1.442695
    %v3337 = vpow.pop %v3336
    %v3338 = vadd.f32 %v3337, 1.0
    %v3339 = vrcp.pop %v3338
    %v3340 = vmul.f32 1.0, %v3339
    %v3341 = vxor.u32 %v3332, 2147483648
    %v3342 = vmul.f32 %v3341, 1.442695
    %v3343 = vpow.pop %v3342
    %v3344 = vadd.f32 %v3343, 1.0
    %v3345 = vrcp.pop %v3344
    %v3346 = vmul.f32 1.0, %v3345
    %v3347 = vtanh.pop %v3333
    %v3348 = vxor.u32 %v3334, 2147483648
    %v3349 = vmul.f32 %v3348, 1.442695
    %v3350 = vpow.pop %v3349
    %v3351 = vadd.f32 %v3350, 1.0
    %v3352 = vrcp.pop %v3351
    %v3353 = vmul.f32 1.0, %v3352
    %v3354 = vmul.f32 %v3346, 0.0
    %v3355 = vmul.f32 %v3340, %v3347
    %v3356 = vadd.f32 %v3354, %v3355
    %v3357 = vtanh.pop %v3356
    %v3358 = vmul.f32 %v3353, %v3357
    %v3359 = vpack.c.bf16 %v3358, %v3358
    %3360 = vmatprep.subr.bf16.mxu0 %v3186
    %3361 = vmatpush1.bf16.msra.mxu0 %v3185
    %3362 = vmatprep.subr.bf16.mxu0 %v3190
    %3363 = vmatpush1.bf16.msra.mxu0 %v3189
    %3364 = vmatprep.subr.bf16.mxu0 %v3194
    %3365 = vmatpush1.bf16.msra.mxu0 %v3193
    %3366 = vmatprep.subr.bf16.mxu0 %v3198
    %3367 = vmatpush1.bf16.msra.mxu0 %v3197
    %3368 = vmatprep.subr.bf16.mxu0 %v3202
    %3369 = vmatpush1.bf16.msra.mxu0 %v3201
    %3370 = vmatprep.subr.bf16.mxu0 %v3206
    %3371 = vmatpush1.bf16.msra.mxu0 %v3205
    %3372 = vmatprep.subr.bf16.mxu0 %v3210
    %3373 = vmatpush1.bf16.msra.mxu0 %v3209
    %3374 = vmatprep.subr.bf16.mxu0 %v3214
    %3375 = vmatpush1.bf16.msra.mxu0 %v3213
    %3376 = vmatprep.subr.bf16.mxu0 0
    %3377 = vmatpush1.bf16.msra.mxu0 0
    %3378 = vmatprep.subr.bf16.mxu0 0
    %3379 = vmatpush1.bf16.msra.mxu0 0
    %3380 = vmatprep.subr.bf16.mxu0 0
    %3381 = vmatpush1.bf16.msra.mxu0 0
    %3382 = vmatprep.subr.bf16.mxu0 0
    %3383 = vmatpush1.bf16.msra.mxu0 0
    %3384 = vmatprep.subr.bf16.mxu0 0
    %3385 = vmatpush1.bf16.msra.mxu0 0
    %3386 = vmatprep.subr.bf16.mxu0 0
    %3387 = vmatpush1.bf16.msra.mxu0 0
    %3388 = vmatprep.subr.bf16.mxu0 0
    %3389 = vmatpush1.bf16.msra.mxu0 0
    %3390 = vmatprep.subr.bf16.mxu0 0
    %3391 = vmatpush1.bf16.msra.mxu0 0
    %3392 = vmatprep.mubr.bf16.mxu0 0
    %3393 = vmatmul.mubr.bf16.gmra.mrb[0].mxu0 %v3359
    %v3394 = vpop.f32.mrb[0].mxu0
    %v3395 = vadd.f32 0.0, %v3394
    %v3396 = vpop.f32.mrb[0].mxu0
    %v3397 = vadd.f32 0.0, %v3396
    %v3398 = vpop.f32.mrb[0].mxu0
    %v3399 = vpop.f32.mrb[0].mxu0
    %3400 = vdwg.mxu0
    %3401 = vmatprep.subr.bf16.mxu0 %v3188
    %3402 = vmatpush1.bf16.msra.mxu0 %v3187
    %3403 = vmatprep.subr.bf16.mxu0 %v3192
    %3404 = vmatpush1.bf16.msra.mxu0 %v3191
    %3405 = vmatprep.subr.bf16.mxu0 %v3196
    %3406 = vmatpush1.bf16.msra.mxu0 %v3195
    %3407 = vmatprep.subr.bf16.mxu0 %v3200
    %3408 = vmatpush1.bf16.msra.mxu0 %v3199
    %3409 = vmatprep.subr.bf16.mxu0 %v3204
    %3410 = vmatpush1.bf16.msra.mxu0 %v3203
    %3411 = vmatprep.subr.bf16.mxu0 %v3208
    %3412 = vmatpush1.bf16.msra.mxu0 %v3207
    %3413 = vmatprep.subr.bf16.mxu0 %v3212
    %3414 = vmatpush1.bf16.msra.mxu0 %v3211
    %3415 = vmatprep.subr.bf16.mxu0 %v3216
    %3416 = vmatpush1.bf16.msra.mxu0 %v3215
    %3417 = vmatprep.subr.bf16.mxu0 0
    %3418 = vmatpush1.bf16.msra.mxu0 0
    %3419 = vmatprep.subr.bf16.mxu0 0
    %3420 = vmatpush1.bf16.msra.mxu0 0
    %3421 = vmatprep.subr.bf16.mxu0 0
    %3422 = vmatpush1.bf16.msra.mxu0 0
    %3423 = vmatprep.subr.bf16.mxu0 0
    %3424 = vmatpush1.bf16.msra.mxu0 0
    %3425 = vmatprep.subr.bf16.mxu0 0
    %3426 = vmatpush1.bf16.msra.mxu0 0
    %3427 = vmatprep.subr.bf16.mxu0 0
    %3428 = vmatpush1.bf16.msra.mxu0 0
    %3429 = vmatprep.subr.bf16.mxu0 0
    %3430 = vmatpush1.bf16.msra.mxu0 0
    %3431 = vmatprep.subr.bf16.mxu0 0
    %3432 = vmatpush1.bf16.msra.mxu0 0
    %3433 = vmatprep.mubr.bf16.mxu0 0
    %3434 = vmatmul.mubr.bf16.gmra.mrb[0].mxu0 %v3359
    %v3435 = vpop.f32.mrb[0].mxu0
    %v3436 = vadd.f32 0.0, %v3435
    %v3437 = vpop.f32.mrb[0].mxu0
    %v3438 = vadd.f32 0.0, %v3437
    %v3439 = vpop.f32.mrb[0].mxu0
    %v3440 = vpop.f32.mrb[0].mxu0
    %3441 = vdwg.mxu0
    %v3446 = vrot.slane %v3395, 7
    %v3447 = vrot.slane %v3397, 7
    %v3448 = vrot.slane %v3436, 7
    %v3449 = vrot.slane %v3438, 7
    %v3454 = vadd.f32 %v3042, %v3446
    %v3455 = vadd.f32 %v3044, %v3447
    %v3456 = vadd.f32 %v3083, %v3448
    %v3457 = vadd.f32 %v3085, %v3449
    %v3458 = vxor.u32 %v3454, 2147483648
    %v3459 = vmul.f32 %v3458, 1.442695
    %v3460 = vpow.pop %v3459
    %v3461 = vadd.f32 %v3460, 1.0
    %v3462 = vrcp.pop %v3461
    %v3463 = vmul.f32 1.0, %v3462
    %v3464 = vxor.u32 %v3455, 2147483648
    %v3465 = vmul.f32 %v3464, 1.442695
    %v3466 = vpow.pop %v3465
    %v3467 = vadd.f32 %v3466, 1.0
    %v3468 = vrcp.pop %v3467
    %v3469 = vmul.f32 1.0, %v3468
    %v3470 = vtanh.pop %v3456
    %v3471 = vxor.u32 %v3457, 2147483648
    %v3472 = vmul.f32 %v3471, 1.442695
    %v3473 = vpow.pop %v3472
    %v3474 = vadd.f32 %v3473, 1.0
    %v3475 = vrcp.pop %v3474
    %v3476 = vmul.f32 1.0, %v3475
    %v3478 = vrot.slane %v3356, 7
    %v3480 = vmul.f32 %v3469, %v3478
    %v3481 = vmul.f32 %v3463, %v3470
    %v3482 = vadd.f32 %v3480, %v3481
    %v3483 = vtanh.pop %v3482
    %v3484 = vmul.f32 %v3476, %v3483
    %v3549 = vunpack.c.l.b16 %v207
    %v3550 = vunpack.c.h.b16 %v207
    %v3551 = vunpack.c.l.b16 %v208
    %v3552 = vunpack.c.h.b16 %v208
    %v3553 = vunpack.c.l.b16 %v209
    %v3554 = vunpack.c.h.b16 %v209
    %v3555 = vunpack.c.l.b16 %v210
    %v3556 = vunpack.c.h.b16 %v210
    %v3557 = vunpack.c.l.b16 %v211
    %v3558 = vunpack.c.h.b16 %v211
    %v3559 = vunpack.c.l.b16 %v212
    %v3560 = vunpack.c.h.b16 %v212
    %v3561 = vunpack.c.l.b16 %v213
    %v3562 = vunpack.c.h.b16 %v213
    %v3563 = vunpack.c.l.b16 %v214
    %v3564 = vunpack.c.h.b16 %v214
    %v3565 = vunpack.c.l.b16 %v215
    %v3566 = vunpack.c.h.b16 %v215
    %v3567 = vunpack.c.l.b16 %v216
    %v3568 = vunpack.c.h.b16 %v216
    %v3569 = vunpack.c.l.b16 %v217
    %v3570 = vunpack.c.h.b16 %v217
    %v3571 = vunpack.c.l.b16 %v218
    %v3572 = vunpack.c.h.b16 %v218
    %v3573 = vunpack.c.l.b16 %v219
    %v3574 = vunpack.c.h.b16 %v219
    %v3575 = vunpack.c.l.b16 %v220
    %v3576 = vunpack.c.h.b16 %v220
    %v3577 = vunpack.c.l.b16 %v221
    %v3578 = vunpack.c.h.b16 %v221
    %v3579 = vunpack.c.l.b16 %v222
    %v3580 = vunpack.c.h.b16 %v222
    %v3581 = vunpack.c.l.b16 %v223
    %v3582 = vunpack.c.h.b16 %v223
    %v3583 = vunpack.c.l.b16 %v224
    %v3584 = vunpack.c.h.b16 %v224
    %v3585 = vunpack.c.l.b16 %v225
    %v3586 = vunpack.c.h.b16 %v225
    %v3587 = vunpack.c.l.b16 %v226
    %v3588 = vunpack.c.h.b16 %v226
    %v3589 = vunpack.c.l.b16 %v227
    %v3590 = vunpack.c.h.b16 %v227
    %v3591 = vunpack.c.l.b16 %v228
    %v3592 = vunpack.c.h.b16 %v228
    %v3593 = vunpack.c.l.b16 %v229
    %v3594 = vunpack.c.h.b16 %v229
    %v3595 = vunpack.c.l.b16 %v230
    %v3596 = vunpack.c.h.b16 %v230
    %v3597 = vunpack.c.l.b16 %v231
    %v3598 = vunpack.c.h.b16 %v231
    %v3599 = vunpack.c.l.b16 %v232
    %v3600 = vunpack.c.h.b16 %v232
    %v3601 = vunpack.c.l.b16 %v233
    %v3602 = vunpack.c.h.b16 %v233
    %v3603 = vunpack.c.l.b16 %v234
    %v3604 = vunpack.c.h.b16 %v234
    %v3605 = vunpack.c.l.b16 %v235
    %v3606 = vunpack.c.h.b16 %v235
    %v3607 = vunpack.c.l.b16 %v236
    %v3608 = vunpack.c.h.b16 %v236
    %v3609 = vunpack.c.l.b16 %v237
    %v3610 = vunpack.c.h.b16 %v237
    %v3611 = vunpack.c.l.b16 %v238
    %v3612 = vunpack.c.h.b16 %v238
    %v3613 = vunpack.c.l.b16 %v239
    %v3614 = vunpack.c.h.b16 %v239
    %v3615 = vunpack.c.l.b16 %v240
    %v3616 = vunpack.c.h.b16 %v240
    %v3617 = vunpack.c.l.b16 %v241
    %v3618 = vunpack.c.h.b16 %v241
    %v3619 = vunpack.c.l.b16 %v242
    %v3620 = vunpack.c.h.b16 %v242
    %v3621 = vunpack.c.l.b16 %v243
    %v3622 = vunpack.c.h.b16 %v243
    %v3623 = vunpack.c.l.b16 %v244
    %v3624 = vunpack.c.h.b16 %v244
    %v3625 = vunpack.c.l.b16 %v245
    %v3626 = vunpack.c.h.b16 %v245
    %v3627 = vunpack.c.l.b16 %v246
    %v3628 = vunpack.c.h.b16 %v246
    %v3629 = vunpack.c.l.b16 %v247
    %v3630 = vunpack.c.h.b16 %v247
    %v3631 = vunpack.c.l.b16 %v248
    %v3632 = vunpack.c.h.b16 %v248
    %v3633 = vunpack.c.l.b16 %v249
    %v3634 = vunpack.c.h.b16 %v249
    %v3635 = vunpack.c.l.b16 %v250
    %v3636 = vunpack.c.h.b16 %v250
    %v3637 = vunpack.c.l.b16 %v251
    %v3638 = vunpack.c.h.b16 %v251
    %v3639 = vunpack.c.l.b16 %v252
    %v3640 = vunpack.c.h.b16 %v252
    %v3641 = vunpack.c.l.b16 %v253
    %v3642 = vunpack.c.h.b16 %v253
    %v3643 = vunpack.c.l.b16 %v254
    %v3644 = vunpack.c.h.b16 %v254
    %v3645 = vunpack.c.l.b16 %v255
    %v3646 = vunpack.c.h.b16 %v255
    %v3647 = vunpack.c.l.b16 %v256
    %v3648 = vunpack.c.h.b16 %v256
    %v3649 = vunpack.c.l.b16 %v257
    %v3650 = vunpack.c.h.b16 %v257
    %v3651 = vunpack.c.l.b16 %v258
    %v3652 = vunpack.c.h.b16 %v258
    %v3653 = vunpack.c.l.b16 %v259
    %v3654 = vunpack.c.h.b16 %v259
    %v3655 = vunpack.c.l.b16 %v260
    %v3656 = vunpack.c.h.b16 %v260
    %v3657 = vunpack.c.l.b16 %v261
    %v3658 = vunpack.c.h.b16 %v261
    %v3659 = vunpack.c.l.b16 %v262
    %v3660 = vunpack.c.h.b16 %v262
    %v3661 = vunpack.c.l.b16 %v263
    %v3662 = vunpack.c.h.b16 %v263
    %v3663 = vunpack.c.l.b16 %v264
    %v3664 = vunpack.c.h.b16 %v264
    %v3665 = vunpack.c.l.b16 %v265
    %v3666 = vunpack.c.h.b16 %v265
    %v3667 = vunpack.c.l.b16 %v266
    %v3668 = vunpack.c.h.b16 %v266
    %v3669 = vunpack.c.l.b16 %v267
    %v3670 = vunpack.c.h.b16 %v267
    %v3671 = vunpack.c.l.b16 %v268
    %v3672 = vunpack.c.h.b16 %v268
    %v3673 = vunpack.c.l.b16 %v269
    %v3674 = vunpack.c.h.b16 %v269
    %v3675 = vunpack.c.l.b16 %v270
    %v3676 = vunpack.c.h.b16 %v270
    %v3677 = vpack.c.b16 %v3553, %v3549
    %v3678 = vpack.c.b16 %v3554, %v3550
    %v3679 = vpack.c.b16 %v3555, %v3551
    %v3680 = vpack.c.b16 %v3556, %v3552
    %v3681 = vpack.c.b16 %v3561, %v3557
    %v3682 = vpack.c.b16 %v3562, %v3558
    %v3683 = vpack.c.b16 %v3563, %v3559
    %v3684 = vpack.c.b16 %v3564, %v3560
    %v3685 = vpack.c.b16 %v3569, %v3565
    %v3686 = vpack.c.b16 %v3570, %v3566
    %v3687 = vpack.c.b16 %v3571, %v3567
    %v3688 = vpack.c.b16 %v3572, %v3568
    %v3689 = vpack.c.b16 %v3577, %v3573
    %v3690 = vpack.c.b16 %v3578, %v3574
    %v3691 = vpack.c.b16 %v3579, %v3575
    %v3692 = vpack.c.b16 %v3580, %v3576
    %v3693 = vpack.c.b16 %v3585, %v3581
    %v3694 = vpack.c.b16 %v3586, %v3582
    %v3695 = vpack.c.b16 %v3587, %v3583
    %v3696 = vpack.c.b16 %v3588, %v3584
    %v3697 = vpack.c.b16 %v3593, %v3589
    %v3698 = vpack.c.b16 %v3594, %v3590
    %v3699 = vpack.c.b16 %v3595, %v3591
    %v3700 = vpack.c.b16 %v3596, %v3592
    %v3701 = vpack.c.b16 %v3601, %v3597
    %v3702 = vpack.c.b16 %v3602, %v3598
    %v3703 = vpack.c.b16 %v3603, %v3599
    %v3704 = vpack.c.b16 %v3604, %v3600
    %v3705 = vpack.c.b16 %v3609, %v3605
    %v3706 = vpack.c.b16 %v3610, %v3606
    %v3707 = vpack.c.b16 %v3611, %v3607
    %v3708 = vpack.c.b16 %v3612, %v3608
    %v3709 = vpack.c.b16 %v3617, %v3613
    %v3710 = vpack.c.b16 %v3618, %v3614
    %v3711 = vpack.c.b16 %v3619, %v3615
    %v3712 = vpack.c.b16 %v3620, %v3616
    %v3713 = vpack.c.b16 %v3625, %v3621
    %v3714 = vpack.c.b16 %v3626, %v3622
    %v3715 = vpack.c.b16 %v3627, %v3623
    %v3716 = vpack.c.b16 %v3628, %v3624
    %v3717 = vpack.c.b16 %v3633, %v3629
    %v3718 = vpack.c.b16 %v3634, %v3630
    %v3719 = vpack.c.b16 %v3635, %v3631
    %v3720 = vpack.c.b16 %v3636, %v3632
    %v3721 = vpack.c.b16 %v3641, %v3637
    %v3722 = vpack.c.b16 %v3642, %v3638
    %v3723 = vpack.c.b16 %v3643, %v3639
    %v3724 = vpack.c.b16 %v3644, %v3640
    %v3725 = vpack.c.b16 %v3649, %v3645
    %v3726 = vpack.c.b16 %v3650, %v3646
    %v3727 = vpack.c.b16 %v3651, %v3647
    %v3728 = vpack.c.b16 %v3652, %v3648
    %v3729 = vpack.c.b16 %v3657, %v3653
    %v3730 = vpack.c.b16 %v3658, %v3654
    %v3731 = vpack.c.b16 %v3659, %v3655
    %v3732 = vpack.c.b16 %v3660, %v3656
    %v3733 = vpack.c.b16 %v3665, %v3661
    %v3734 = vpack.c.b16 %v3666, %v3662
    %v3735 = vpack.c.b16 %v3667, %v3663
    %v3736 = vpack.c.b16 %v3668, %v3664
    %v3737 = vpack.c.b16 %v3673, %v3669
    %v3738 = vpack.c.b16 %v3674, %v3670
    %v3739 = vpack.c.b16 %v3675, %v3671
    %v3740 = vpack.c.b16 %v3676, %v3672
    %v3806 = vlaneseq
    %v3807 = vshrl.u32 %v3806, 7
    %v3808 = vsub.s32 0, %v3807
    %v3809 = vrot.slane %v293, %v3808
    %v3810 = vlaneseq
    %v3811 = vshrl.u32 %v3810, 7
    %v3812 = vsub.s32 1, %v3811
    %v3813 = vrot.slane %v293, %v3812
    %v3814 = vlaneseq
    %v3815 = vshrl.u32 %v3814, 7
    %v3816 = vsub.s32 2, %v3815
    %v3817 = vrot.slane %v293, %v3816
    %v3818 = vlaneseq
    %v3819 = vshrl.u32 %v3818, 7
    %v3820 = vsub.s32 3, %v3819
    %v3821 = vrot.slane %v293, %v3820
    %3826 = vmatprep.subr.bf16.mxu0 %v3678
    %3827 = vmatpush1.bf16.msra.mxu0 %v3677
    %3828 = vmatprep.subr.bf16.mxu0 %v3682
    %3829 = vmatpush1.bf16.msra.mxu0 %v3681
    %3830 = vmatprep.subr.bf16.mxu0 %v3686
    %3831 = vmatpush1.bf16.msra.mxu0 %v3685
    %3832 = vmatprep.subr.bf16.mxu0 %v3690
    %3833 = vmatpush1.bf16.msra.mxu0 %v3689
    %3834 = vmatprep.subr.bf16.mxu0 %v3694
    %3835 = vmatpush1.bf16.msra.mxu0 %v3693
    %3836 = vmatprep.subr.bf16.mxu0 %v3698
    %3837 = vmatpush1.bf16.msra.mxu0 %v3697
    %3838 = vmatprep.subr.bf16.mxu0 %v3702
    %3839 = vmatpush1.bf16.msra.mxu0 %v3701
    %3840 = vmatprep.subr.bf16.mxu0 %v3706
    %3841 = vmatpush1.bf16.msra.mxu0 %v3705
    %3842 = vmatprep.subr.bf16.mxu0 %v3710
    %3843 = vmatpush1.bf16.msra.mxu0 %v3709
    %3844 = vmatprep.subr.bf16.mxu0 %v3714
    %3845 = vmatpush1.bf16.msra.mxu0 %v3713
    %3846 = vmatprep.subr.bf16.mxu0 %v3718
    %3847 = vmatpush1.bf16.msra.mxu0 %v3717
    %3848 = vmatprep.subr.bf16.mxu0 %v3722
    %3849 = vmatpush1.bf16.msra.mxu0 %v3721
    %3850 = vmatprep.subr.bf16.mxu0 %v3726
    %3851 = vmatpush1.bf16.msra.mxu0 %v3725
    %3852 = vmatprep.subr.bf16.mxu0 %v3730
    %3853 = vmatpush1.bf16.msra.mxu0 %v3729
    %3854 = vmatprep.subr.bf16.mxu0 %v3734
    %3855 = vmatpush1.bf16.msra.mxu0 %v3733
    %3856 = vmatprep.subr.bf16.mxu0 %v3738
    %3857 = vmatpush1.bf16.msra.mxu0 %v3737
    %3858 = vmatprep.mubr.bf16.mxu0 %v829
    %3859 = vmatmul.mubr.bf16.gmra.mrb[0].mxu0 %v3359
    %v3860 = vpop.f32.mrb[0].mxu0
    %v3861 = vadd.f32 %v3809, %v3860
    %v3862 = vpop.f32.mrb[0].mxu0
    %v3863 = vadd.f32 %v3813, %v3862
    %v3864 = vpop.f32.mrb[0].mxu0
    %v3865 = vpop.f32.mrb[0].mxu0
    %3866 = vdwg.mxu0
    %3867 = vmatprep.subr.bf16.mxu0 %v3680
    %3868 = vmatpush1.bf16.msra.mxu0 %v3679
    %3869 = vmatprep.subr.bf16.mxu0 %v3684
    %3870 = vmatpush1.bf16.msra.mxu0 %v3683
    %3871 = vmatprep.subr.bf16.mxu0 %v3688
    %3872 = vmatpush1.bf16.msra.mxu0 %v3687
    %3873 = vmatprep.subr.bf16.mxu0 %v3692
    %3874 = vmatpush1.bf16.msra.mxu0 %v3691
    %3875 = vmatprep.subr.bf16.mxu0 %v3696
    %3876 = vmatpush1.bf16.msra.mxu0 %v3695
    %3877 = vmatprep.subr.bf16.mxu0 %v3700
    %3878 = vmatpush1.bf16.msra.mxu0 %v3699
    %3879 = vmatprep.subr.bf16.mxu0 %v3704
    %3880 = vmatpush1.bf16.msra.mxu0 %v3703
    %3881 = vmatprep.subr.bf16.mxu0 %v3708
    %3882 = vmatpush1.bf16.msra.mxu0 %v3707
    %3883 = vmatprep.subr.bf16.mxu0 %v3712
    %3884 = vmatpush1.bf16.msra.mxu0 %v3711
    %3885 = vmatprep.subr.bf16.mxu0 %v3716
    %3886 = vmatpush1.bf16.msra.mxu0 %v3715
    %3887 = vmatprep.subr.bf16.mxu0 %v3720
    %3888 = vmatpush1.bf16.msra.mxu0 %v3719
    %3889 = vmatprep.subr.bf16.mxu0 %v3724
    %3890 = vmatpush1.bf16.msra.mxu0 %v3723
    %3891 = vmatprep.subr.bf16.mxu0 %v3728
    %3892 = vmatpush1.bf16.msra.mxu0 %v3727
    %3893 = vmatprep.subr.bf16.mxu0 %v3732
    %3894 = vmatpush1.bf16.msra.mxu0 %v3731
    %3895 = vmatprep.subr.bf16.mxu0 %v3736
    %3896 = vmatpush1.bf16.msra.mxu0 %v3735
    %3897 = vmatprep.subr.bf16.mxu0 %v3740
    %3898 = vmatpush1.bf16.msra.mxu0 %v3739
    %3899 = vmatprep.mubr.bf16.mxu0 %v829
    %3900 = vmatmul.mubr.bf16.gmra.mrb[0].mxu0 %v3359
    %v3901 = vpop.f32.mrb[0].mxu0
    %v3902 = vadd.f32 %v3817, %v3901
    %v3903 = vpop.f32.mrb[0].mxu0
    %v3904 = vadd.f32 %v3821, %v3903
    %v3905 = vpop.f32.mrb[0].mxu0
    %v3906 = vpop.f32.mrb[0].mxu0
    %3907 = vdwg.mxu0
    %v3908 = vxor.u32 %v3861, 2147483648
    %v3909 = vmul.f32 %v3908, 1.442695
    %v3910 = vpow.pop %v3909
    %v3911 = vadd.f32 %v3910, 1.0
    %v3912 = vrcp.pop %v3911
    %v3913 = vmul.f32 1.0, %v3912
    %v3914 = vxor.u32 %v3863, 2147483648
    %v3915 = vmul.f32 %v3914, 1.442695
    %v3916 = vpow.pop %v3915
    %v3917 = vadd.f32 %v3916, 1.0
    %v3918 = vrcp.pop %v3917
    %v3919 = vmul.f32 1.0, %v3918
    %v3920 = vtanh.pop %v3902
    %v3921 = vxor.u32 %v3904, 2147483648
    %v3922 = vmul.f32 %v3921, 1.442695
    %v3923 = vpow.pop %v3922
    %v3924 = vadd.f32 %v3923, 1.0
    %v3925 = vrcp.pop %v3924
    %v3926 = vmul.f32 1.0, %v3925
    %v3927 = vmul.f32 %v3919, 0.0
    %v3928 = vmul.f32 %v3913, %v3920
    %v3929 = vadd.f32 %v3927, %v3928
    %v3930 = vtanh.pop %v3929
    %v3931 = vmul.f32 %v3926, %v3930
    %v3932 = vpack.c.bf16 %v3931, %v3931
    %v3949 = vunpack.c.l.b16 %v271
    %v3950 = vunpack.c.l.b16 %v272
    %v3951 = vunpack.c.l.b16 %v273
    %v3952 = vunpack.c.l.b16 %v274
    %v3953 = vunpack.c.l.b16 %v275
    %v3954 = vunpack.c.l.b16 %v276
    %v3955 = vunpack.c.l.b16 %v277
    %v3956 = vunpack.c.l.b16 %v278
    %v3957 = vunpack.c.l.b16 %v279
    %v3958 = vunpack.c.l.b16 %v280
    %v3959 = vunpack.c.l.b16 %v281
    %v3960 = vunpack.c.l.b16 %v282
    %v3961 = vunpack.c.l.b16 %v283
    %v3962 = vunpack.c.l.b16 %v284
    %v3963 = vunpack.c.l.b16 %v285
    %v3964 = vunpack.c.l.b16 %v286
    %v3965 = vpack.c.b16 %v3950, %v3949
    %v3966 = vpack.c.b16 %v3952, %v3951
    %v3967 = vpack.c.b16 %v3954, %v3953
    %v3968 = vpack.c.b16 %v3956, %v3955
    %v3969 = vpack.c.b16 %v3958, %v3957
    %v3970 = vpack.c.b16 %v3960, %v3959
    %v3971 = vpack.c.b16 %v3962, %v3961
    %v3972 = vpack.c.b16 %v3964, %v3963
    %3981 = vmatprep.subr.bf16.mxu0 0
    %3982 = vmatpush1.bf16.msra.mxu0 %v3965
    %3983 = vmatprep.subr.bf16.mxu0 0
    %3984 = vmatpush1.bf16.msra.mxu0 %v3966
    %3985 = vmatprep.subr.bf16.mxu0 0
    %3986 = vmatpush1.bf16.msra.mxu0 %v3967
    %3987 = vmatprep.subr.bf16.mxu0 0
    %3988 = vmatpush1.bf16.msra.mxu0 %v3968
    %3989 = vmatprep.subr.bf16.mxu0 0
    %3990 = vmatpush1.bf16.msra.mxu0 %v3969
    %3991 = vmatprep.subr.bf16.mxu0 0
    %3992 = vmatpush1.bf16.msra.mxu0 %v3970
    %3993 = vmatprep.subr.bf16.mxu0 0
    %3994 = vmatpush1.bf16.msra.mxu0 %v3971
    %3995 = vmatprep.subr.bf16.mxu0 0
    %3996 = vmatpush1.bf16.msra.mxu0 %v3972
    %3997 = vmatprep.subr.bf16.mxu0 0
    %3998 = vmatpush1.bf16.msra.mxu0 0
    %3999 = vmatprep.subr.bf16.mxu0 0
    %4000 = vmatpush1.bf16.msra.mxu0 0
    %4001 = vmatprep.subr.bf16.mxu0 0
    %4002 = vmatpush1.bf16.msra.mxu0 0
    %4003 = vmatprep.subr.bf16.mxu0 0
    %4004 = vmatpush1.bf16.msra.mxu0 0
    %4005 = vmatprep.subr.bf16.mxu0 0
    %4006 = vmatpush1.bf16.msra.mxu0 0
    %4007 = vmatprep.subr.bf16.mxu0 0
    %4008 = vmatpush1.bf16.msra.mxu0 0
    %4009 = vmatprep.subr.bf16.mxu0 0
    %4010 = vmatpush1.bf16.msra.mxu0 0
    %4011 = vmatprep.subr.bf16.mxu0 0
    %4012 = vmatpush1.bf16.msra.mxu0 0
    %4013 = vmatprep.mubr.bf16.mxu0 0
    %4014 = vmatmul.mubr.bf16.gmra.mrb[0].mxu0 %v3932
    %v4015 = vpop.f32.mrb[0].mxu0
    %v4016 = vadd.f32 %v294, %v4015
    %v4017 = vpop.f32.mrb[0].mxu0
    %v4018 = vpop.f32.mrb[0].mxu0
    %v4019 = vpop.f32.mrb[0].mxu0
    %4020 = vdwg.mxu0
    %4021 = vst [vmem:[%s3] sm:$0x1] %v4016
    %v4023 = vrot.slane %v3931, 7
    %v4025 = vpack.c.bf16 %v3484, %v3484
    %v4026 = vpack.c.bf16 %v4023, %v4023
    %v4028 = vshrl.u32 %v4025, 16
    %v4031 = vshrl.u32 %v4026, 16
    %4035 = vmatprep.subr.bf16.mxu0 %v3678
    %4036 = vmatpush1.bf16.msra.mxu0 %v3677
    %4037 = vmatprep.subr.bf16.mxu0 %v3682
    %4038 = vmatpush1.bf16.msra.mxu0 %v3681
    %4039 = vmatprep.subr.bf16.mxu0 %v3686
    %4040 = vmatpush1.bf16.msra.mxu0 %v3685
    %4041 = vmatprep.subr.bf16.mxu0 %v3690
    %4042 = vmatpush1.bf16.msra.mxu0 %v3689
    %4043 = vmatprep.subr.bf16.mxu0 %v3694
    %4044 = vmatpush1.bf16.msra.mxu0 %v3693
    %4045 = vmatprep.subr.bf16.mxu0 %v3698
    %4046 = vmatpush1.bf16.msra.mxu0 %v3697
    %4047 = vmatprep.subr.bf16.mxu0 %v3702
    %4048 = vmatpush1.bf16.msra.mxu0 %v3701
    %4049 = vmatprep.subr.bf16.mxu0 %v3706
    %4050 = vmatpush1.bf16.msra.mxu0 %v3705
    %4051 = vmatprep.subr.bf16.mxu0 %v3710
    %4052 = vmatpush1.bf16.msra.mxu0 %v3709
    %4053 = vmatprep.subr.bf16.mxu0 %v3714
    %4054 = vmatpush1.bf16.msra.mxu0 %v3713
    %4055 = vmatprep.subr.bf16.mxu0 %v3718
    %4056 = vmatpush1.bf16.msra.mxu0 %v3717
    %4057 = vmatprep.subr.bf16.mxu0 %v3722
    %4058 = vmatpush1.bf16.msra.mxu0 %v3721
    %4059 = vmatprep.subr.bf16.mxu0 %v3726
    %4060 = vmatpush1.bf16.msra.mxu0 %v3725
    %4061 = vmatprep.subr.bf16.mxu0 %v3730
    %4062 = vmatpush1.bf16.msra.mxu0 %v3729
    %4063 = vmatprep.subr.bf16.mxu0 %v3734
    %4064 = vmatpush1.bf16.msra.mxu0 %v3733
    %4065 = vmatprep.subr.bf16.mxu0 %v3738
    %4066 = vmatpush1.bf16.msra.mxu0 %v3737
    %4067 = vmatprep.mubr.bf16.mxu0 %v4031
    %4068 = vmatmul.mubr.bf16.gmra.mrb[0].mxu0 %v4028
    %v4069 = vpop.f32.mrb[0].mxu0
    %v4070 = vadd.f32 %v3809, %v4069
    %v4071 = vpop.f32.mrb[0].mxu0
    %v4072 = vadd.f32 %v3813, %v4071
    %v4073 = vpop.f32.mrb[0].mxu0
    %v4074 = vpop.f32.mrb[0].mxu0
    %4075 = vdwg.mxu0
    %4076 = vmatprep.subr.bf16.mxu0 %v3680
    %4077 = vmatpush1.bf16.msra.mxu0 %v3679
    %4078 = vmatprep.subr.bf16.mxu0 %v3684
    %4079 = vmatpush1.bf16.msra.mxu0 %v3683
    %4080 = vmatprep.subr.bf16.mxu0 %v3688
    %4081 = vmatpush1.bf16.msra.mxu0 %v3687
    %4082 = vmatprep.subr.bf16.mxu0 %v3692
    %4083 = vmatpush1.bf16.msra.mxu0 %v3691
    %4084 = vmatprep.subr.bf16.mxu0 %v3696
    %4085 = vmatpush1.bf16.msra.mxu0 %v3695
    %4086 = vmatprep.subr.bf16.mxu0 %v3700
    %4087 = vmatpush1.bf16.msra.mxu0 %v3699
    %4088 = vmatprep.subr.bf16.mxu0 %v3704
    %4089 = vmatpush1.bf16.msra.mxu0 %v3703
    %4090 = vmatprep.subr.bf16.mxu0 %v3708
    %4091 = vmatpush1.bf16.msra.mxu0 %v3707
    %4092 = vmatprep.subr.bf16.mxu0 %v3712
    %4093 = vmatpush1.bf16.msra.mxu0 %v3711
    %4094 = vmatprep.subr.bf16.mxu0 %v3716
    %4095 = vmatpush1.bf16.msra.mxu0 %v3715
    %4096 = vmatprep.subr.bf16.mxu0 %v3720
    %4097 = vmatpush1.bf16.msra.mxu0 %v3719
    %4098 = vmatprep.subr.bf16.mxu0 %v3724
    %4099 = vmatpush1.bf16.msra.mxu0 %v3723
    %4100 = vmatprep.subr.bf16.mxu0 %v3728
    %4101 = vmatpush1.bf16.msra.mxu0 %v3727
    %4102 = vmatprep.subr.bf16.mxu0 %v3732
    %4103 = vmatpush1.bf16.msra.mxu0 %v3731
    %4104 = vmatprep.subr.bf16.mxu0 %v3736
    %4105 = vmatpush1.bf16.msra.mxu0 %v3735
    %4106 = vmatprep.subr.bf16.mxu0 %v3740
    %4107 = vmatpush1.bf16.msra.mxu0 %v3739
    %4108 = vmatprep.mubr.bf16.mxu0 %v4031
    %4109 = vmatmul.mubr.bf16.gmra.mrb[0].mxu0 %v4028
    %v4110 = vpop.f32.mrb[0].mxu0
    %v4111 = vadd.f32 %v3817, %v4110
    %v4112 = vpop.f32.mrb[0].mxu0
    %v4113 = vadd.f32 %v3821, %v4112
    %v4114 = vpop.f32.mrb[0].mxu0
    %v4115 = vpop.f32.mrb[0].mxu0
    %4116 = vdwg.mxu0
    %v4117 = vxor.u32 %v4070, 2147483648
    %v4118 = vmul.f32 %v4117, 1.442695
    %v4119 = vpow.pop %v4118
    %v4120 = vadd.f32 %v4119, 1.0
    %v4121 = vrcp.pop %v4120
    %v4122 = vmul.f32 1.0, %v4121
    %v4123 = vxor.u32 %v4072, 2147483648
    %v4124 = vmul.f32 %v4123, 1.442695
    %v4125 = vpow.pop %v4124
    %v4126 = vadd.f32 %v4125, 1.0
    %v4127 = vrcp.pop %v4126
    %v4128 = vmul.f32 1.0, %v4127
    %v4129 = vtanh.pop %v4111
    %v4130 = vxor.u32 %v4113, 2147483648
    %v4131 = vmul.f32 %v4130, 1.442695
    %v4132 = vpow.pop %v4131
    %v4133 = vadd.f32 %v4132, 1.0
    %v4134 = vrcp.pop %v4133
    %v4135 = vmul.f32 1.0, %v4134
    %v4136 = vmul.f32 %v4128, %v3929
    %v4137 = vmul.f32 %v4122, %v4129
    %v4138 = vadd.f32 %v4136, %v4137
    %v4139 = vtanh.pop %v4138
    %v4140 = vmul.f32 %v4135, %v4139
    %v4141 = vpack.c.bf16 %v4140, %v4140
    %4142 = vmatprep.subr.bf16.mxu0 0
    %4143 = vmatpush1.bf16.msra.mxu0 %v3965
    %4144 = vmatprep.subr.bf16.mxu0 0
    %4145 = vmatpush1.bf16.msra.mxu0 %v3966
    %4146 = vmatprep.subr.bf16.mxu0 0
    %4147 = vmatpush1.bf16.msra.mxu0 %v3967
    %4148 = vmatprep.subr.bf16.mxu0 0
    %4149 = vmatpush1.bf16.msra.mxu0 %v3968
    %4150 = vmatprep.subr.bf16.mxu0 0
    %4151 = vmatpush1.bf16.msra.mxu0 %v3969
    %4152 = vmatprep.subr.bf16.mxu0 0
    %4153 = vmatpush1.bf16.msra.mxu0 %v3970
    %4154 = vmatprep.subr.bf16.mxu0 0
    %4155 = vmatpush1.bf16.msra.mxu0 %v3971
    %4156 = vmatprep.subr.bf16.mxu0 0
    %4157 = vmatpush1.bf16.msra.mxu0 %v3972
    %4158 = vmatprep.subr.bf16.mxu0 0
    %4159 = vmatpush1.bf16.msra.mxu0 0
    %4160 = vmatprep.subr.bf16.mxu0 0
    %4161 = vmatpush1.bf16.msra.mxu0 0
    %4162 = vmatprep.subr.bf16.mxu0 0
    %4163 = vmatpush1.bf16.msra.mxu0 0
    %4164 = vmatprep.subr.bf16.mxu0 0
    %4165 = vmatpush1.bf16.msra.mxu0 0
    %4166 = vmatprep.subr.bf16.mxu0 0
    %4167 = vmatpush1.bf16.msra.mxu0 0
    %4168 = vmatprep.subr.bf16.mxu0 0
    %4169 = vmatpush1.bf16.msra.mxu0 0
    %4170 = vmatprep.subr.bf16.mxu0 0
    %4171 = vmatpush1.bf16.msra.mxu0 0
    %4172 = vmatprep.subr.bf16.mxu0 0
    %4173 = vmatpush1.bf16.msra.mxu0 0
    %4174 = vmatprep.mubr.bf16.mxu0 0
    %4175 = vmatmul.mubr.bf16.gmra.mrb[0].mxu0 %v4141
    %v4176 = vpop.f32.mrb[0].mxu0
    %v4177 = vadd.f32 %v294, %v4176
    %v4178 = vpop.f32.mrb[0].mxu0
    %v4179 = vpop.f32.mrb[0].mxu0
    %v4180 = vpop.f32.mrb[0].mxu0
    %4181 = vdwg.mxu0
    %4182 = vst [vmem:[%s3 + $0x1] sm:$0x1] %v4177
    // Predicated region
    $region22: #{forward.1} parent=1 // pred_check
      _
    $region23: #{forward.1} parent=1 // pred_check_branch
      %4184 = sbr.rel (0) target = $region25
    $region24: #{forward.1} parent=1 // pred_region
      _
    $region25: #{forward.1} parent=1 // pred_fallthru
      _
    // Predicated region
    $region26: #{forward.1} parent=1 // pred_check
      _
    $region27: #{forward.1} parent=1 // pred_check_branch
      %4186 = sbr.rel (0) target = $region29
    $region28: #{forward.1} parent=1 // pred_region
      _
    $region29: #{forward.1} parent=1 // pred_fallthru
      _
    %4187 = vsyncpa [#allocation3], 1
    %4188 = vsyncpa [#allocation5], 1

</llo_original>
